<compile_context>
chip_gen: v5e
topology: v5e:2x2
jax: 0.10.0
libtpu: 0.0.40
codegen_flags: <defaults>
</compile_context>

<pallas_src>
import functools

import jax
import jax.numpy as jnp
from jax.experimental import pallas as pl
from jax.experimental.pallas import tpu as pltpu


# ----------------------------------------------------------------------------
# Shared helpers
# ----------------------------------------------------------------------------
def _layernorm(x, g, b, eps):
    mean = jnp.mean(x, axis=-1, keepdims=True)
    var = jnp.mean((x - mean) * (x - mean), axis=-1, keepdims=True)
    inv = jax.lax.rsqrt(var + eps)
    return (x - mean) * inv * g + b


def _dot_nt(a, b):
    """a (m,k) @ b(n,k)^T -> (m,n); lets the MXU handle the transpose."""
    return jax.lax.dot_general(a, b, (((1,), (1,)), ((), ())),
                               preferred_element_type=jnp.float32)


# ----------------------------------------------------------------------------
# Kernels
# ----------------------------------------------------------------------------
def _embed_ln_kernel(x_ref, g_ref, b_ref, o_ref, *, eps):
    """Pure LayerNorm over the last dim on a (tm, H) row tile."""
    o_ref[...] = _layernorm(x_ref[...], g_ref[...], b_ref[...], eps).astype(o_ref.dtype)


def _attn_block_kernel(x_ref, wqkv_ref, bqkv_ref, wo_ref, bo_ref, g_ref, b_ref,
                       o_ref, qkv_s, ctx_s, *, num_heads, head_dim, eps):
    """One sequence (grid over batch): QKV -> MHA -> out proj -> +residual -> LN."""
    H = num_heads * head_dim
    x = x_ref[...]                                                   # (S, H) f32

    # Fused QKV projection: bf16 MXU operands, f32 accumulation.
    qkv = jnp.dot(x.astype(jnp.bfloat16), wqkv_ref[...],
                  preferred_element_type=jnp.float32) + bqkv_ref[...]
    qkv_s[...] = qkv        # park in VMEM scratch; per-head slices read from the ref

    scale = 1.0 / (head_dim ** 0.5)

    # Rolled head loop: body emitted once.  head_dim=128 => every slice below is a
    # 128-lane-aligned, full-vreg-wide view (no sub-lane extracts / relayouts).
    @pl.loop(0, num_heads)
    def _(h):
        q_off = pl.multiple_of(h * head_dim, head_dim)
        k_off = pl.multiple_of(H + h * head_dim, head_dim)
        v_off = pl.multiple_of(2 * H + h * head_dim, head_dim)

        q = qkv_s[:, pl.ds(q_off, head_dim)] * scale                 # scale folded into q
        k = qkv_s[:, pl.ds(k_off, head_dim)]
        v = qkv_s[:, pl.ds(v_off, head_dim)]

        s = _dot_nt(q.astype(jnp.bfloat16), k.astype(jnp.bfloat16))  # (S, S) f32
        m = jnp.max(s, axis=-1, keepdims=True)
        p = jnp.exp(s - m)
        inv = pl.reciprocal(jnp.sum(p, axis=-1, keepdims=True), approx=True)  # EUP slot
        ctx = jnp.dot(p.astype(jnp.bfloat16), v.astype(jnp.bfloat16),
                      preferred_element_type=jnp.float32) * inv      # (S, dh)
        ctx_s[:, pl.ds(q_off, head_dim)] = ctx                       # lane-slice store

    # Single full-K output projection (K = H fills the MXU weight rows).
    attn = jnp.dot(ctx_s[...].astype(jnp.bfloat16), wo_ref[...],
                   preferred_element_type=jnp.float32)
    hres = attn + bo_ref[...] + x                                    # bias + residual (f32)
    o_ref[...] = _layernorm(hres, g_ref[...], b_ref[...], eps).astype(o_ref.dtype)


def _ffn_block_kernel(x_ref, w1_ref, b1_ref, w2_ref, b2_ref, g_ref, b_ref,
                      o_ref, *, eps):
    """Row tile: FFN1 + gelu -> FFN2 -> +residual -> LN (bf16 MXU, f32 accum)."""
    x = x_ref[...]                                                   # (tm, H) f32
    h1 = jnp.dot(x.astype(jnp.bfloat16), w1_ref[...],
                 preferred_element_type=jnp.float32) + b1_ref[...]
    h1 = jax.nn.gelu(h1)   # TODO(synk): tanh-approx gelu; PyTorch BERT may use exact erf.
    h2 = jnp.dot(h1.astype(jnp.bfloat16), w2_ref[...],
                 preferred_element_type=jnp.float32) + b2_ref[...]
    o_ref[...] = _layernorm(h2 + x, g_ref[...], b_ref[...], eps).astype(o_ref.dtype)


# ----------------------------------------------------------------------------
# pallas_call wrappers
# ----------------------------------------------------------------------------
_CPARAMS_1AX = pltpu.CompilerParams(dimension_semantics=("parallel",),
                                    vmem_limit_bytes=32 * 1024 * 1024)


def embed_layernorm_pallas(x, gamma, beta, eps=1e-12):
    M, H = x.shape
    tm = 8 if M % 8 == 0 else M
    return pl.pallas_call(
        functools.partial(_embed_ln_kernel, eps=eps),
        out_shape=jax.ShapeDtypeStruct((M, H), jnp.float32),
        grid=(M // tm,),
        in_specs=[pl.BlockSpec((tm, H), lambda i: (i, 0)),
                  pl.BlockSpec((1, H), lambda i: (0, 0)),
                  pl.BlockSpec((1, H), lambda i: (0, 0))],
        out_specs=pl.BlockSpec((tm, H), lambda i: (i, 0)),
        compiler_params=_CPARAMS_1AX,
    )(x, gamma.reshape(1, H), beta.reshape(1, H))


def attn_block_pallas(x2d, wqkv, bqkv, wo, bo, gamma, beta, *, B, S,
                      num_heads, head_dim, eps=1e-12):
    M, H = x2d.shape
    assert M == B * S and H == num_heads * head_dim
    kernel = functools.partial(_attn_block_kernel, num_heads=num_heads,
                               head_dim=head_dim, eps=eps)
    return pl.pallas_call(
        kernel,
        out_shape=jax.ShapeDtypeStruct((M, H), jnp.float32),
        grid=(B,),  # one sequence per grid step; "parallel" -> splits across v7x's 2 TCs
        in_specs=[
            pl.BlockSpec((S, H), lambda b: (b, 0)),        # activation tile
            pl.BlockSpec((H, 3 * H), lambda b: (0, 0)),    # weights: constant index maps
            pl.BlockSpec((1, 3 * H), lambda b: (0, 0)),    #   => VMEM-resident across steps
            pl.BlockSpec((H, H), lambda b: (0, 0)),
            pl.BlockSpec((1, H), lambda b: (0, 0)),
            pl.BlockSpec((1, H), lambda b: (0, 0)),
            pl.BlockSpec((1, H), lambda b: (0, 0)),
        ],
        out_specs=pl.BlockSpec((S, H), lambda b: (b, 0)),
        scratch_shapes=[pltpu.VMEM((S, 3 * H), jnp.float32),   # parked qkv
                        pltpu.VMEM((S, H), jnp.float32)],      # per-head ctx slab
        compiler_params=_CPARAMS_1AX,
    )(x2d, wqkv, bqkv.reshape(1, 3 * H), wo, bo.reshape(1, H),
      gamma.reshape(1, H), beta.reshape(1, H))


def ffn_block_pallas(x2d, w1, b1, w2, b2, gamma, beta, eps=1e-12):
    M, H = x2d.shape
    F = w1.shape[1]
    tm = 8 if M % 8 == 0 else M
    return pl.pallas_call(
        functools.partial(_ffn_block_kernel, eps=eps),
        out_shape=jax.ShapeDtypeStruct((M, H), jnp.float32),
        grid=(M // tm,),
        in_specs=[pl.BlockSpec((tm, H), lambda i: (i, 0)),
                  pl.BlockSpec((H, F), lambda i: (0, 0)),
                  pl.BlockSpec((1, F), lambda i: (0, 0)),
                  pl.BlockSpec((F, H), lambda i: (0, 0)),
                  pl.BlockSpec((1, H), lambda i: (0, 0)),
                  pl.BlockSpec((1, H), lambda i: (0, 0)),
                  pl.BlockSpec((1, H), lambda i: (0, 0))],
        out_specs=pl.BlockSpec((tm, H), lambda i: (i, 0)),
        compiler_params=_CPARAMS_1AX,
    )(x2d, w1, b1.reshape(1, F), w2, b2.reshape(1, H),
      gamma.reshape(1, H), beta.reshape(1, H))


# ----------------------------------------------------------------------------
# Model (parameters + forward)
# ----------------------------------------------------------------------------
class Config:
    # Small synthetic stand-in for the original BERT-sized config (hidden=768).
    vocab_size = 100
    max_len = 8                 # sequence length
    hidden = 256                # stands in for 768; multiple of 128 -> lane-dense stores
    num_heads = 2
    head_dim = 128              # 128-lane-aligned head slices (real BERT dh=64 -> pair-pack)
    ffn = 1024                  # 4 * hidden
    num_layers = 2
    area_attention = False      # TODO(synk): AreaAttention class not provided; disabled.


def init_params(cfg, key):
    ks = iter(jax.random.split(key, 64))

    def w_bf16(shape, scale=0.02):
        # MXU weight operands stored in bf16 (halves VMEM/HBM traffic; f32 accum in-kernel).
        return (scale * jax.random.normal(next(ks), shape)).astype(jnp.bfloat16)

    def w_f32(shape, scale=0.02):
        return (scale * jax.random.normal(next(ks), shape)).astype(jnp.float32)

    def zeros(shape):
        return jnp.zeros(shape, jnp.float32)

    def ones(shape):
        return jnp.ones(shape, jnp.float32)

    H, F = cfg.hidden, cfg.ffn
    params = {
        "word_emb": w_f32((cfg.vocab_size, H)),
        "pos_emb": w_f32((cfg.max_len, H)),
        "emb_ln_g": ones((H,)),
        "emb_ln_b": zeros((H,)),
        "layers": [],
    }
    for _ in range(cfg.num_layers):
        params["layers"].append({
            # Fused QKV weight/bias: [Wq | Wk | Wv] along the output axis.
            "wqkv": w_bf16((H, 3 * H)), "bqkv": zeros((3 * H,)),
            "wo": w_bf16((H, H)), "bo": zeros((H,)),
            "ln1_g": ones((H,)), "ln1_b": zeros((H,)),
            "w_ffn1": w_bf16((H, F)), "b_ffn1": zeros((F,)),
            "w_ffn2": w_bf16((F, H)), "b_ffn2": zeros((H,)),
            "ln2_g": ones((H,)), "ln2_b": zeros((H,)),
        })
    return params


def deep_flatten_forward(cfg, params, x):
    """Mirrors DeepFlatten.forward(x): HTransformer(x)[0][:, 0, :]."""
    B, S = x.shape
    H = cfg.hidden

    # Embedding lookup is plain-JAX glue; everything downstream is Pallas.
    tok = jnp.take(params["word_emb"], x, axis=0)                    # (B, S, H)
    pos = params["pos_emb"][:S][None, :, :]                          # (1, S, H)
    emb = (tok + pos).reshape(B * S, H)
    h = embed_layernorm_pallas(emb, params["emb_ln_g"], params["emb_ln_b"])

    # TODO(synk): no attention mask (all toy sequences are exactly max_len).
    for lp in params["layers"]:
        h = attn_block_pallas(h, lp["wqkv"], lp["bqkv"], lp["wo"], lp["bo"],
                              lp["ln1_g"], lp["ln1_b"], B=B, S=S,
                              num_heads=cfg.num_heads, head_dim=cfg.head_dim)
        h = ffn_block_pallas(h, lp["w_ffn1"], lp["b_ffn1"],
                             lp["w_ffn2"], lp["b_ffn2"],
                             lp["ln2_g"], lp["ln2_b"])

    h = h.reshape(B, S, H)
    # TODO(synk): config.area_attention branch (AreaAttention) omitted; cfg.area_attention=False.
    return h[:, 0, :]                                                # CLS token: (B, H)


# ----------------------------------------------------------------------------
# Main
# ----------------------------------------------------------------------------
if __name__ == "__main__":
    cfg = Config()
    key = jax.random.PRNGKey(0)
    kp, kx = jax.random.split(key)

    params = init_params(cfg, kp)

    batch = 2
    x = jax.random.randint(kx, (batch, cfg.max_len), 0, cfg.vocab_size, dtype=jnp.int32)

    fwd = jax.jit(functools.partial(deep_flatten_forward, cfg))
    out = fwd(params, x)
    jax.block_until_ready(out)

    assert out.shape == (batch, cfg.hidden)
    assert bool(jnp.all(jnp.isfinite(out)))
    print("KERNEL_OK")
</pallas_src>

<mosaic_0001>
module attributes {stable_mosaic.version = 11 : i64} {
  func.func @_embed_ln_kernel(%arg0: i32, %arg1: memref<8x256xf32, #tpu.memory_space<vmem>>, %arg2: memref<1x256xf32, #tpu.memory_space<vmem>>, %arg3: memref<1x256xf32, #tpu.memory_space<vmem>>, %arg4: memref<8x256xf32, #tpu.memory_space<vmem>>) attributes {dimension_semantics = [#tpu.dimension_semantics<parallel>], iteration_bounds = array<i64: 2>, scalar_prefetch = 0 : i64, scratch_operands = 0 : i64, tpu.core_type = #tpu.core_type<tc>, window_params = [{transform_indices = @transform_0, window_bounds = array<i64: 8, 256>}, {pipeline_mode = #tpu.pipeline_mode<synchronous>, transform_indices = @transform_1, window_bounds = array<i64: 1, 256>}, {pipeline_mode = #tpu.pipeline_mode<synchronous>, transform_indices = @transform_2, window_bounds = array<i64: 1, 256>}, {transform_indices = @transform_3, window_bounds = array<i64: 8, 256>}]} {
    %c0 = arith.constant 0 : index
    %c0_0 = arith.constant 0 : index
    %0 = vector.load %arg1[%c0, %c0_0] : memref<8x256xf32, #tpu.memory_space<vmem>>, vector<8x256xf32>
    %c0_1 = arith.constant 0 : index
    %c0_2 = arith.constant 0 : index
    %1 = vector.load %arg2[%c0_1, %c0_2] : memref<1x256xf32, #tpu.memory_space<vmem>>, vector<1x256xf32>
    %c0_3 = arith.constant 0 : index
    %c0_4 = arith.constant 0 : index
    %2 = vector.load %arg3[%c0_3, %c0_4] : memref<1x256xf32, #tpu.memory_space<vmem>>, vector<1x256xf32>
    %cst = arith.constant dense<0.000000e+00> : vector<8xf32>
    %3 = vector.multi_reduction <add>, %0, %cst [1] : vector<8x256xf32> to vector<8xf32>
    %4 = vector.shape_cast %3 : vector<8xf32> to vector<8x1xf32>
    %cst_5 = arith.constant 2.560000e+02 : f32
    %5 = vector.broadcast %cst_5 : f32 to vector<8x1xf32>
    %6 = arith.divf %4, %5 : vector<8x1xf32>
    %7 = vector.broadcast %6 : vector<8x1xf32> to vector<8x256xf32>
    %8 = arith.subf %0, %7 : vector<8x256xf32>
    %9 = vector.broadcast %6 : vector<8x1xf32> to vector<8x256xf32>
    %10 = arith.subf %0, %9 : vector<8x256xf32>
    %11 = arith.mulf %8, %10 : vector<8x256xf32>
    %cst_6 = arith.constant dense<0.000000e+00> : vector<8xf32>
    %12 = vector.multi_reduction <add>, %11, %cst_6 [1] : vector<8x256xf32> to vector<8xf32>
    %13 = vector.shape_cast %12 : vector<8xf32> to vector<8x1xf32>
    %cst_7 = arith.constant 2.560000e+02 : f32
    %14 = vector.broadcast %cst_7 : f32 to vector<8x1xf32>
    %15 = arith.divf %13, %14 : vector<8x1xf32>
    %cst_8 = arith.constant 9.99999996E-13 : f32
    %16 = vector.broadcast %cst_8 : f32 to vector<8x1xf32>
    %17 = arith.addf %15, %16 : vector<8x1xf32>
    %18 = math.rsqrt %17 : vector<8x1xf32>
    %19 = vector.broadcast %6 : vector<8x1xf32> to vector<8x256xf32>
    %20 = arith.subf %0, %19 : vector<8x256xf32>
    %21 = vector.broadcast %18 : vector<8x1xf32> to vector<8x256xf32>
    %22 = arith.mulf %20, %21 : vector<8x256xf32>
    %23 = vector.broadcast %1 : vector<1x256xf32> to vector<8x256xf32>
    %24 = arith.mulf %22, %23 : vector<8x256xf32>
    %25 = vector.broadcast %2 : vector<1x256xf32> to vector<8x256xf32>
    %26 = arith.addf %24, %25 : vector<8x256xf32>
    %c0_9 = arith.constant 0 : index
    %c0_10 = arith.constant 0 : index
    %27 = vector.load %arg4[%c0_9, %c0_10] : memref<8x256xf32, #tpu.memory_space<vmem>>, vector<8x256xf32>
    tpu.vector_store %arg4[%c0_9, %c0_10], %26 {strides = array<i32>} : memref<8x256xf32, #tpu.memory_space<vmem>>, vector<8x256xf32>,
    return
  }
  func.func @transform_0(%arg0: i32) -> (i32, i32) {
    %c0_i32 = arith.constant 0 : i32
    %c0_i32_0 = arith.constant 0 : i32
    return %arg0, %c0_i32 : i32, i32
  }
  func.func @transform_1(%arg0: i32) -> (i32, i32) {
    %c0_i32 = arith.constant 0 : i32
    %c0_i32_0 = arith.constant 0 : i32
    %c0_i32_1 = arith.constant 0 : i32
    return %c0_i32, %c0_i32_0 : i32, i32
  }
  func.func @transform_2(%arg0: i32) -> (i32, i32) {
    %c0_i32 = arith.constant 0 : i32
    %c0_i32_0 = arith.constant 0 : i32
    %c0_i32_1 = arith.constant 0 : i32
    return %c0_i32, %c0_i32_0 : i32, i32
  }
  func.func @transform_3(%arg0: i32) -> (i32, i32) {
    %c0_i32 = arith.constant 0 : i32
    %c0_i32_0 = arith.constant 0 : i32
    return %arg0, %c0_i32 : i32, i32
  }
}

module attributes {stable_mosaic.version = 11 : i64} {
  func.func @_ffn_block_kernel(%arg0: i32, %arg1: memref<8x256xf32, #tpu.memory_space<vmem>>, %arg2: memref<256x1024xbf16, #tpu.memory_space<vmem>>, %arg3: memref<1x1024xf32, #tpu.memory_space<vmem>>, %arg4: memref<1024x256xbf16, #tpu.memory_space<vmem>>, %arg5: memref<1x256xf32, #tpu.memory_space<vmem>>, %arg6: memref<1x256xf32, #tpu.memory_space<vmem>>, %arg7: memref<1x256xf32, #tpu.memory_space<vmem>>, %arg8: memref<8x256xf32, #tpu.memory_space<vmem>>) attributes {dimension_semantics = [#tpu.dimension_semantics<parallel>], iteration_bounds = array<i64: 2>, scalar_prefetch = 0 : i64, scratch_operands = 0 : i64, tpu.core_type = #tpu.core_type<tc>, window_params = [{transform_indices = @transform_0, window_bounds = array<i64: 8, 256>}, {pipeline_mode = #tpu.pipeline_mode<synchronous>, transform_indices = @transform_1, window_bounds = array<i64: 256, 1024>}, {pipeline_mode = #tpu.pipeline_mode<synchronous>, transform_indices = @transform_2, window_bounds = array<i64: 1, 1024>}, {pipeline_mode = #tpu.pipeline_mode<synchronous>, transform_indices = @transform_3, window_bounds = array<i64: 1024, 256>}, {pipeline_mode = #tpu.pipeline_mode<synchronous>, transform_indices = @transform_4, window_bounds = array<i64: 1, 256>}, {pipeline_mode = #tpu.pipeline_mode<synchronous>, transform_indices = @transform_5, window_bounds = array<i64: 1, 256>}, {pipeline_mode = #tpu.pipeline_mode<synchronous>, transform_indices = @transform_6, window_bounds = array<i64: 1, 256>}, {transform_indices = @transform_7, window_bounds = array<i64: 8, 256>}]} {
    %c0 = arith.constant 0 : index
    %c0_0 = arith.constant 0 : index
    %0 = vector.load %arg1[%c0, %c0_0] : memref<8x256xf32, #tpu.memory_space<vmem>>, vector<8x256xf32>
    %1 = arith.truncf %0 : vector<8x256xf32> to vector<8x256xbf16>
    %c0_1 = arith.constant 0 : index
    %c0_2 = arith.constant 0 : index
    %2 = vector.load %arg2[%c0_1, %c0_2] : memref<256x1024xbf16, #tpu.memory_space<vmem>>, vector<256x1024xbf16>
    %cst = arith.constant dense<0.000000e+00> : vector<8x1024xf32>
    %3 = tpu.matmul %1, %2, %cst {dimension_numbers = #tpu.dot_dimension_numbers<[1], [0], [0], [1], [0, 0, 1, 1], [], []>} : vector<8x256xbf16>, vector<256x1024xbf16>, vector<8x1024xf32> -> vector<8x1024xf32>
    %c0_3 = arith.constant 0 : index
    %c0_4 = arith.constant 0 : index
    %4 = vector.load %arg3[%c0_3, %c0_4] : memref<1x1024xf32, #tpu.memory_space<vmem>>, vector<1x1024xf32>
    %5 = vector.broadcast %4 : vector<1x1024xf32> to vector<8x1024xf32>
    %6 = arith.addf %3, %5 : vector<8x1024xf32>
    %7 = arith.mulf %6, %6 : vector<8x1024xf32>
    %8 = arith.mulf %6, %7 : vector<8x1024xf32>
    %cst_5 = arith.constant 4.471500e-02 : f32
    %9 = vector.broadcast %cst_5 : f32 to vector<8x1024xf32>
    %10 = arith.mulf %9, %8 : vector<8x1024xf32>
    %11 = arith.addf %6, %10 : vector<8x1024xf32>
    %cst_6 = arith.constant 0.797884583 : f32
    %12 = vector.broadcast %cst_6 : f32 to vector<8x1024xf32>
    %13 = arith.mulf %12, %11 : vector<8x1024xf32>
    %14 = math.tanh %13 : vector<8x1024xf32>
    %cst_7 = arith.constant 1.000000e+00 : f32
    %15 = vector.broadcast %cst_7 : f32 to vector<8x1024xf32>
    %16 = arith.addf %15, %14 : vector<8x1024xf32>
    %cst_8 = arith.constant 5.000000e-01 : f32
    %17 = vector.broadcast %cst_8 : f32 to vector<8x1024xf32>
    %18 = arith.mulf %17, %16 : vector<8x1024xf32>
    %19 = arith.mulf %6, %18 : vector<8x1024xf32>
    %20 = arith.truncf %19 : vector<8x1024xf32> to vector<8x1024xbf16>
    %c0_9 = arith.constant 0 : index
    %c0_10 = arith.constant 0 : index
    %21 = vector.load %arg4[%c0_9, %c0_10] : memref<1024x256xbf16, #tpu.memory_space<vmem>>, vector<1024x256xbf16>
    %cst_11 = arith.constant dense<0.000000e+00> : vector<8x256xf32>
    %22 = tpu.matmul %20, %21, %cst_11 {dimension_numbers = #tpu.dot_dimension_numbers<[1], [0], [0], [1], [0, 0, 1, 1], [], []>} : vector<8x1024xbf16>, vector<1024x256xbf16>, vector<8x256xf32> -> vector<8x256xf32>
    %c0_12 = arith.constant 0 : index
    %c0_13 = arith.constant 0 : index
    %23 = vector.load %arg5[%c0_12, %c0_13] : memref<1x256xf32, #tpu.memory_space<vmem>>, vector<1x256xf32>
    %24 = vector.broadcast %23 : vector<1x256xf32> to vector<8x256xf32>
    %25 = arith.addf %22, %24 : vector<8x256xf32>
    %26 = arith.addf %25, %0 : vector<8x256xf32>
    %c0_14 = arith.constant 0 : index
    %c0_15 = arith.constant 0 : index
    %27 = vector.load %arg6[%c0_14, %c0_15] : memref<1x256xf32, #tpu.memory_space<vmem>>, vector<1x256xf32>
    %c0_16 = arith.constant 0 : index
    %c0_17 = arith.constant 0 : index
    %28 = vector.load %arg7[%c0_16, %c0_17] : memref<1x256xf32, #tpu.memory_space<vmem>>, vector<1x256xf32>
    %cst_18 = arith.constant dense<0.000000e+00> : vector<8xf32>
    %29 = vector.multi_reduction <add>, %26, %cst_18 [1] : vector<8x256xf32> to vector<8xf32>
    %30 = vector.shape_cast %29 : vector<8xf32> to vector<8x1xf32>
    %cst_19 = arith.constant 2.560000e+02 : f32
    %31 = vector.broadcast %cst_19 : f32 to vector<8x1xf32>
    %32 = arith.divf %30, %31 : vector<8x1xf32>
    %33 = vector.broadcast %32 : vector<8x1xf32> to vector<8x256xf32>
    %34 = arith.subf %26, %33 : vector<8x256xf32>
    %35 = vector.broadcast %32 : vector<8x1xf32> to vector<8x256xf32>
    %36 = arith.subf %26, %35 : vector<8x256xf32>
    %37 = arith.mulf %34, %36 : vector<8x256xf32>
    %cst_20 = arith.constant dense<0.000000e+00> : vector<8xf32>
    %38 = vector.multi_reduction <add>, %37, %cst_20 [1] : vector<8x256xf32> to vector<8xf32>
    %39 = vector.shape_cast %38 : vector<8xf32> to vector<8x1xf32>
    %cst_21 = arith.constant 2.560000e+02 : f32
    %40 = vector.broadcast %cst_21 : f32 to vector<8x1xf32>
    %41 = arith.divf %39, %40 : vector<8x1xf32>
    %cst_22 = arith.constant 9.99999996E-13 : f32
    %42 = vector.broadcast %cst_22 : f32 to vector<8x1xf32>
    %43 = arith.addf %41, %42 : vector<8x1xf32>
    %44 = math.rsqrt %43 : vector<8x1xf32>
    %45 = vector.broadcast %32 : vector<8x1xf32> to vector<8x256xf32>
    %46 = arith.subf %26, %45 : vector<8x256xf32>
    %47 = vector.broadcast %44 : vector<8x1xf32> to vector<8x256xf32>
    %48 = arith.mulf %46, %47 : vector<8x256xf32>
    %49 = vector.broadcast %27 : vector<1x256xf32> to vector<8x256xf32>
    %50 = arith.mulf %48, %49 : vector<8x256xf32>
    %51 = vector.broadcast %28 : vector<1x256xf32> to vector<8x256xf32>
    %52 = arith.addf %50, %51 : vector<8x256xf32>
    %c0_23 = arith.constant 0 : index
    %c0_24 = arith.constant 0 : index
    %53 = vector.load %arg8[%c0_23, %c0_24] : memref<8x256xf32, #tpu.memory_space<vmem>>, vector<8x256xf32>
    tpu.vector_store %arg8[%c0_23, %c0_24], %52 {strides = array<i32>} : memref<8x256xf32, #tpu.memory_space<vmem>>, vector<8x256xf32>,
    return
  }
  func.func @transform_0(%arg0: i32) -> (i32, i32) {
    %c0_i32 = arith.constant 0 : i32
    %c0_i32_0 = arith.constant 0 : i32
    return %arg0, %c0_i32 : i32, i32
  }
  func.func @transform_1(%arg0: i32) -> (i32, i32) {
    %c0_i32 = arith.constant 0 : i32
    %c0_i32_0 = arith.constant 0 : i32
    %c0_i32_1 = arith.constant 0 : i32
    return %c0_i32, %c0_i32_0 : i32, i32
  }
  func.func @transform_2(%arg0: i32) -> (i32, i32) {
    %c0_i32 = arith.constant 0 : i32
    %c0_i32_0 = arith.constant 0 : i32
    %c0_i32_1 = arith.constant 0 : i32
    return %c0_i32, %c0_i32_0 : i32, i32
  }
  func.func @transform_3(%arg0: i32) -> (i32, i32) {
    %c0_i32 = arith.constant 0 : i32
    %c0_i32_0 = arith.constant 0 : i32
    %c0_i32_1 = arith.constant 0 : i32
    return %c0_i32, %c0_i32_0 : i32, i32
  }
  func.func @transform_4(%arg0: i32) -> (i32, i32) {
    %c0_i32 = arith.constant 0 : i32
    %c0_i32_0 = arith.constant 0 : i32
    %c0_i32_1 = arith.constant 0 : i32
    return %c0_i32, %c0_i32_0 : i32, i32
  }
  func.func @transform_5(%arg0: i32) -> (i32, i32) {
    %c0_i32 = arith.constant 0 : i32
    %c0_i32_0 = arith.constant 0 : i32
    %c0_i32_1 = arith.constant 0 : i32
    return %c0_i32, %c0_i32_0 : i32, i32
  }
  func.func @transform_6(%arg0: i32) -> (i32, i32) {
    %c0_i32 = arith.constant 0 : i32
    %c0_i32_0 = arith.constant 0 : i32
    %c0_i32_1 = arith.constant 0 : i32
    return %c0_i32, %c0_i32_0 : i32, i32
  }
  func.func @transform_7(%arg0: i32) -> (i32, i32) {
    %c0_i32 = arith.constant 0 : i32
    %c0_i32_0 = arith.constant 0 : i32
    return %arg0, %c0_i32 : i32, i32
  }
}

module attributes {stable_mosaic.version = 11 : i64} {
  func.func @_attn_block_kernel(%arg0: i32, %arg1: memref<8x256xf32, #tpu.memory_space<vmem>>, %arg2: memref<256x768xbf16, #tpu.memory_space<vmem>>, %arg3: memref<1x768xf32, #tpu.memory_space<vmem>>, %arg4: memref<256x256xbf16, #tpu.memory_space<vmem>>, %arg5: memref<1x256xf32, #tpu.memory_space<vmem>>, %arg6: memref<1x256xf32, #tpu.memory_space<vmem>>, %arg7: memref<1x256xf32, #tpu.memory_space<vmem>>, %arg8: memref<8x256xf32, #tpu.memory_space<vmem>>, %arg9: memref<8x768xf32, #tpu.memory_space<vmem>>, %arg10: memref<8x256xf32, #tpu.memory_space<vmem>>) attributes {dimension_semantics = [#tpu.dimension_semantics<parallel>], iteration_bounds = array<i64: 2>, scalar_prefetch = 0 : i64, scratch_operands = 2 : i64, tpu.core_type = #tpu.core_type<tc>, window_params = [{transform_indices = @transform_0, window_bounds = array<i64: 8, 256>}, {pipeline_mode = #tpu.pipeline_mode<synchronous>, transform_indices = @transform_1, window_bounds = array<i64: 256, 768>}, {pipeline_mode = #tpu.pipeline_mode<synchronous>, transform_indices = @transform_2, window_bounds = array<i64: 1, 768>}, {pipeline_mode = #tpu.pipeline_mode<synchronous>, transform_indices = @transform_3, window_bounds = array<i64: 256, 256>}, {pipeline_mode = #tpu.pipeline_mode<synchronous>, transform_indices = @transform_4, window_bounds = array<i64: 1, 256>}, {pipeline_mode = #tpu.pipeline_mode<synchronous>, transform_indices = @transform_5, window_bounds = array<i64: 1, 256>}, {pipeline_mode = #tpu.pipeline_mode<synchronous>, transform_indices = @transform_6, window_bounds = array<i64: 1, 256>}, {transform_indices = @transform_7, window_bounds = array<i64: 8, 256>}]} {
    %c0 = arith.constant 0 : index
    %c0_0 = arith.constant 0 : index
    %0 = vector.load %arg1[%c0, %c0_0] : memref<8x256xf32, #tpu.memory_space<vmem>>, vector<8x256xf32>
    %1 = arith.truncf %0 : vector<8x256xf32> to vector<8x256xbf16>
    %c0_1 = arith.constant 0 : index
    %c0_2 = arith.constant 0 : index
    %2 = vector.load %arg2[%c0_1, %c0_2] : memref<256x768xbf16, #tpu.memory_space<vmem>>, vector<256x768xbf16>
    %cst = arith.constant dense<0.000000e+00> : vector<8x768xf32>
    %3 = tpu.matmul %1, %2, %cst {dimension_numbers = #tpu.dot_dimension_numbers<[1], [0], [0], [1], [0, 0, 1, 1], [], []>} : vector<8x256xbf16>, vector<256x768xbf16>, vector<8x768xf32> -> vector<8x768xf32>
    %c0_3 = arith.constant 0 : index
    %c0_4 = arith.constant 0 : index
    %4 = vector.load %arg3[%c0_3, %c0_4] : memref<1x768xf32, #tpu.memory_space<vmem>>, vector<1x768xf32>
    %5 = vector.broadcast %4 : vector<1x768xf32> to vector<8x768xf32>
    %6 = arith.addf %3, %5 : vector<8x768xf32>
    %c0_5 = arith.constant 0 : index
    %c0_6 = arith.constant 0 : index
    %7 = vector.load %arg9[%c0_5, %c0_6] : memref<8x768xf32, #tpu.memory_space<vmem>>, vector<8x768xf32>
    tpu.vector_store %arg9[%c0_5, %c0_6], %6 {strides = array<i32>} : memref<8x768xf32, #tpu.memory_space<vmem>>, vector<8x768xf32>,
    %c0_i32 = arith.constant 0 : i32
    %c2_i32 = arith.constant 2 : i32
    %8 = arith.addi %c0_i32, %c2_i32 : i32
    %c1_i32 = arith.constant 1 : i32
    scf.for %arg11 = %c0_i32 to %8 step %c1_i32  : i32 {
      %c1_i32_26 = arith.constant 1 : i32
      %44 = arith.muli %arg11, %c1_i32_26 : i32
      %c0_i32_27 = arith.constant 0 : i32
      %45 = arith.addi %c0_i32_27, %44 : i32
      %c128_i32 = arith.constant 128 : i32
      %46 = arith.muli %45, %c128_i32 : i32
      %47 = tpu.assume_multiple %46, 128 : i32
      %c128_i32_28 = arith.constant 128 : i32
      %48 = arith.muli %45, %c128_i32_28 : i32
      %c256_i32 = arith.constant 256 : i32
      %49 = arith.addi %c256_i32, %48 : i32
      %50 = tpu.assume_multiple %49, 128 : i32
      %c128_i32_29 = arith.constant 128 : i32
      %51 = arith.muli %45, %c128_i32_29 : i32
      %c512_i32 = arith.constant 512 : i32
      %52 = arith.addi %c512_i32, %51 : i32
      %53 = tpu.assume_multiple %52, 128 : i32
      %c0_30 = arith.constant 0 : index
      %54 = arith.index_cast %47 : i32 to index
      %55 = vector.load %arg9[%c0_30, %54] : memref<8x768xf32, #tpu.memory_space<vmem>>, vector<8x128xf32>
      %cst_31 = arith.constant 0.0883883461 : f32
      %56 = vector.broadcast %cst_31 : f32 to vector<8x128xf32>
      %57 = arith.mulf %55, %56 : vector<8x128xf32>
      %c0_32 = arith.constant 0 : index
      %58 = arith.index_cast %50 : i32 to index
      %59 = vector.load %arg9[%c0_32, %58] : memref<8x768xf32, #tpu.memory_space<vmem>>, vector<8x128xf32>
      %c0_33 = arith.constant 0 : index
      %60 = arith.index_cast %53 : i32 to index
      %61 = vector.load %arg9[%c0_33, %60] : memref<8x768xf32, #tpu.memory_space<vmem>>, vector<8x128xf32>
      %62 = arith.truncf %57 : vector<8x128xf32> to vector<8x128xbf16>
      %63 = arith.truncf %59 : vector<8x128xf32> to vector<8x128xbf16>
      %cst_34 = arith.constant dense<0.000000e+00> : vector<8x8xf32>
      %64 = tpu.matmul %62, %63, %cst_34 {dimension_numbers = #tpu.dot_dimension_numbers<[1], [1], [0], [0], [0, 0, 1, 0], [], []>} : vector<8x128xbf16>, vector<8x128xbf16>, vector<8x8xf32> -> vector<8x8xf32>
      %cst_35 = arith.constant dense<0xFF800000> : vector<8xf32>
      %65 = vector.multi_reduction <maximumf>, %64, %cst_35 [1] : vector<8x8xf32> to vector<8xf32>
      %66 = vector.shape_cast %65 : vector<8xf32> to vector<8x1xf32>
      %67 = vector.broadcast %66 : vector<8x1xf32> to vector<8x8xf32>
      %68 = arith.subf %64, %67 : vector<8x8xf32>
      %69 = math.exp %68 : vector<8x8xf32>
      %cst_36 = arith.constant dense<0.000000e+00> : vector<8xf32>
      %70 = vector.multi_reduction <add>, %69, %cst_36 [1] : vector<8x8xf32> to vector<8xf32>
      %71 = vector.shape_cast %70 : vector<8xf32> to vector<8x1xf32>
      %72 = tpu.reciprocal %71 {approx = true} : vector<8x1xf32> -> vector<8x1xf32>
      %73 = arith.truncf %69 : vector<8x8xf32> to vector<8x8xbf16>
      %74 = arith.truncf %61 : vector<8x128xf32> to vector<8x128xbf16>
      %cst_37 = arith.constant dense<0.000000e+00> : vector<8x128xf32>
      %75 = tpu.matmul %73, %74, %cst_37 {dimension_numbers = #tpu.dot_dimension_numbers<[1], [0], [0], [1], [0, 0, 1, 1], [], []>} : vector<8x8xbf16>, vector<8x128xbf16>, vector<8x128xf32> -> vector<8x128xf32>
      %76 = vector.broadcast %72 : vector<8x1xf32> to vector<8x128xf32>
      %77 = arith.mulf %75, %76 : vector<8x128xf32>
      %c0_38 = arith.constant 0 : index
      %78 = arith.index_cast %47 : i32 to index
      %79 = vector.load %arg10[%c0_38, %78] : memref<8x256xf32, #tpu.memory_space<vmem>>, vector<8x128xf32>
      tpu.vector_store %arg10[%c0_38, %78], %77 {strides = array<i32>} : memref<8x256xf32, #tpu.memory_space<vmem>>, vector<8x128xf32>,
    }
    %c2_i32_7 = arith.constant 2 : i32
    %c0_8 = arith.constant 0 : index
    %c0_9 = arith.constant 0 : index
    %9 = vector.load %arg10[%c0_8, %c0_9] : memref<8x256xf32, #tpu.memory_space<vmem>>, vector<8x256xf32>
    %10 = arith.truncf %9 : vector<8x256xf32> to vector<8x256xbf16>
    %c0_10 = arith.constant 0 : index
    %c0_11 = arith.constant 0 : index
    %11 = vector.load %arg4[%c0_10, %c0_11] : memref<256x256xbf16, #tpu.memory_space<vmem>>, vector<256x256xbf16>
    %cst_12 = arith.constant dense<0.000000e+00> : vector<8x256xf32>
    %12 = tpu.matmul %10, %11, %cst_12 {dimension_numbers = #tpu.dot_dimension_numbers<[1], [0], [0], [1], [0, 0, 1, 1], [], []>} : vector<8x256xbf16>, vector<256x256xbf16>, vector<8x256xf32> -> vector<8x256xf32>
    %c0_13 = arith.constant 0 : index
    %c0_14 = arith.constant 0 : index
    %13 = vector.load %arg5[%c0_13, %c0_14] : memref<1x256xf32, #tpu.memory_space<vmem>>, vector<1x256xf32>
    %14 = vector.broadcast %13 : vector<1x256xf32> to vector<8x256xf32>
    %15 = arith.addf %12, %14 : vector<8x256xf32>
    %16 = arith.addf %15, %0 : vector<8x256xf32>
    %c0_15 = arith.constant 0 : index
    %c0_16 = arith.constant 0 : index
    %17 = vector.load %arg6[%c0_15, %c0_16] : memref<1x256xf32, #tpu.memory_space<vmem>>, vector<1x256xf32>
    %c0_17 = arith.constant 0 : index
    %c0_18 = arith.constant 0 : index
    %18 = vector.load %arg7[%c0_17, %c0_18] : memref<1x256xf32, #tpu.memory_space<vmem>>, vector<1x256xf32>
    %cst_19 = arith.constant dense<0.000000e+00> : vector<8xf32>
    %19 = vector.multi_reduction <add>, %16, %cst_19 [1] : vector<8x256xf32> to vector<8xf32>
    %20 = vector.shape_cast %19 : vector<8xf32> to vector<8x1xf32>
    %cst_20 = arith.constant 2.560000e+02 : f32
    %21 = vector.broadcast %cst_20 : f32 to vector<8x1xf32>
    %22 = arith.divf %20, %21 : vector<8x1xf32>
    %23 = vector.broadcast %22 : vector<8x1xf32> to vector<8x256xf32>
    %24 = arith.subf %16, %23 : vector<8x256xf32>
    %25 = vector.broadcast %22 : vector<8x1xf32> to vector<8x256xf32>
    %26 = arith.subf %16, %25 : vector<8x256xf32>
    %27 = arith.mulf %24, %26 : vector<8x256xf32>
    %cst_21 = arith.constant dense<0.000000e+00> : vector<8xf32>
    %28 = vector.multi_reduction <add>, %27, %cst_21 [1] : vector<8x256xf32> to vector<8xf32>
    %29 = vector.shape_cast %28 : vector<8xf32> to vector<8x1xf32>
    %cst_22 = arith.constant 2.560000e+02 : f32
    %30 = vector.broadcast %cst_22 : f32 to vector<8x1xf32>
    %31 = arith.divf %29, %30 : vector<8x1xf32>
    %cst_23 = arith.constant 9.99999996E-13 : f32
    %32 = vector.broadcast %cst_23 : f32 to vector<8x1xf32>
    %33 = arith.addf %31, %32 : vector<8x1xf32>
    %34 = math.rsqrt %33 : vector<8x1xf32>
    %35 = vector.broadcast %22 : vector<8x1xf32> to vector<8x256xf32>
    %36 = arith.subf %16, %35 : vector<8x256xf32>
    %37 = vector.broadcast %34 : vector<8x1xf32> to vector<8x256xf32>
    %38 = arith.mulf %36, %37 : vector<8x256xf32>
    %39 = vector.broadcast %17 : vector<1x256xf32> to vector<8x256xf32>
    %40 = arith.mulf %38, %39 : vector<8x256xf32>
    %41 = vector.broadcast %18 : vector<1x256xf32> to vector<8x256xf32>
    %42 = arith.addf %40, %41 : vector<8x256xf32>
    %c0_24 = arith.constant 0 : index
    %c0_25 = arith.constant 0 : index
    %43 = vector.load %arg8[%c0_24, %c0_25] : memref<8x256xf32, #tpu.memory_space<vmem>>, vector<8x256xf32>
    tpu.vector_store %arg8[%c0_24, %c0_25], %42 {strides = array<i32>} : memref<8x256xf32, #tpu.memory_space<vmem>>, vector<8x256xf32>,
    return
  }
  func.func @transform_0(%arg0: i32) -> (i32, i32) {
    %c0_i32 = arith.constant 0 : i32
    %c0_i32_0 = arith.constant 0 : i32
    return %arg0, %c0_i32 : i32, i32
  }
  func.func @transform_1(%arg0: i32) -> (i32, i32) {
    %c0_i32 = arith.constant 0 : i32
    %c0_i32_0 = arith.constant 0 : i32
    %c0_i32_1 = arith.constant 0 : i32
    return %c0_i32, %c0_i32_0 : i32, i32
  }
  func.func @transform_2(%arg0: i32) -> (i32, i32) {
    %c0_i32 = arith.constant 0 : i32
    %c0_i32_0 = arith.constant 0 : i32
    %c0_i32_1 = arith.constant 0 : i32
    return %c0_i32, %c0_i32_0 : i32, i32
  }
  func.func @transform_3(%arg0: i32) -> (i32, i32) {
    %c0_i32 = arith.constant 0 : i32
    %c0_i32_0 = arith.constant 0 : i32
    %c0_i32_1 = arith.constant 0 : i32
    return %c0_i32, %c0_i32_0 : i32, i32
  }
  func.func @transform_4(%arg0: i32) -> (i32, i32) {
    %c0_i32 = arith.constant 0 : i32
    %c0_i32_0 = arith.constant 0 : i32
    %c0_i32_1 = arith.constant 0 : i32
    return %c0_i32, %c0_i32_0 : i32, i32
  }
  func.func @transform_5(%arg0: i32) -> (i32, i32) {
    %c0_i32 = arith.constant 0 : i32
    %c0_i32_0 = arith.constant 0 : i32
    %c0_i32_1 = arith.constant 0 : i32
    return %c0_i32, %c0_i32_0 : i32, i32
  }
  func.func @transform_6(%arg0: i32) -> (i32, i32) {
    %c0_i32 = arith.constant 0 : i32
    %c0_i32_0 = arith.constant 0 : i32
    %c0_i32_1 = arith.constant 0 : i32
    return %c0_i32, %c0_i32_0 : i32, i32
  }
  func.func @transform_7(%arg0: i32) -> (i32, i32) {
    %c0_i32 = arith.constant 0 : i32
    %c0_i32_0 = arith.constant 0 : i32
    return %arg0, %c0_i32 : i32, i32
  }
}

module attributes {stable_mosaic.version = 11 : i64} {
  func.func @_attn_block_kernel(%arg0: i32, %arg1: memref<8x256xf32, #tpu.memory_space<vmem>>, %arg2: memref<256x768xbf16, #tpu.memory_space<vmem>>, %arg3: memref<1x768xf32, #tpu.memory_space<vmem>>, %arg4: memref<256x256xbf16, #tpu.memory_space<vmem>>, %arg5: memref<1x256xf32, #tpu.memory_space<vmem>>, %arg6: memref<1x256xf32, #tpu.memory_space<vmem>>, %arg7: memref<1x256xf32, #tpu.memory_space<vmem>>, %arg8: memref<8x256xf32, #tpu.memory_space<vmem>>, %arg9: memref<8x768xf32, #tpu.memory_space<vmem>>, %arg10: memref<8x256xf32, #tpu.memory_space<vmem>>) attributes {dimension_semantics = [#tpu.dimension_semantics<parallel>], iteration_bounds = array<i64: 2>, scalar_prefetch = 0 : i64, scratch_operands = 2 : i64, tpu.core_type = #tpu.core_type<tc>, window_params = [{transform_indices = @transform_0, window_bounds = array<i64: 8, 256>}, {pipeline_mode = #tpu.pipeline_mode<synchronous>, transform_indices = @transform_1, window_bounds = array<i64: 256, 768>}, {pipeline_mode = #tpu.pipeline_mode<synchronous>, transform_indices = @transform_2, window_bounds = array<i64: 1, 768>}, {pipeline_mode = #tpu.pipeline_mode<synchronous>, transform_indices = @transform_3, window_bounds = array<i64: 256, 256>}, {pipeline_mode = #tpu.pipeline_mode<synchronous>, transform_indices = @transform_4, window_bounds = array<i64: 1, 256>}, {pipeline_mode = #tpu.pipeline_mode<synchronous>, transform_indices = @transform_5, window_bounds = array<i64: 1, 256>}, {pipeline_mode = #tpu.pipeline_mode<synchronous>, transform_indices = @transform_6, window_bounds = array<i64: 1, 256>}, {transform_indices = @transform_7, window_bounds = array<i64: 8, 256>}]} {
    %c0 = arith.constant 0 : index
    %c0_0 = arith.constant 0 : index
    %0 = vector.load %arg1[%c0, %c0_0] : memref<8x256xf32, #tpu.memory_space<vmem>>, vector<8x256xf32>
    %1 = arith.truncf %0 : vector<8x256xf32> to vector<8x256xbf16>
    %c0_1 = arith.constant 0 : index
    %c0_2 = arith.constant 0 : index
    %2 = vector.load %arg2[%c0_1, %c0_2] : memref<256x768xbf16, #tpu.memory_space<vmem>>, vector<256x768xbf16>
    %cst = arith.constant dense<0.000000e+00> : vector<8x768xf32>
    %3 = tpu.matmul %1, %2, %cst {dimension_numbers = #tpu.dot_dimension_numbers<[1], [0], [0], [1], [0, 0, 1, 1], [], []>} : vector<8x256xbf16>, vector<256x768xbf16>, vector<8x768xf32> -> vector<8x768xf32>
    %c0_3 = arith.constant 0 : index
    %c0_4 = arith.constant 0 : index
    %4 = vector.load %arg3[%c0_3, %c0_4] : memref<1x768xf32, #tpu.memory_space<vmem>>, vector<1x768xf32>
    %5 = vector.broadcast %4 : vector<1x768xf32> to vector<8x768xf32>
    %6 = arith.addf %3, %5 : vector<8x768xf32>
    %c0_5 = arith.constant 0 : index
    %c0_6 = arith.constant 0 : index
    %7 = vector.load %arg9[%c0_5, %c0_6] : memref<8x768xf32, #tpu.memory_space<vmem>>, vector<8x768xf32>
    tpu.vector_store %arg9[%c0_5, %c0_6], %6 {strides = array<i32>} : memref<8x768xf32, #tpu.memory_space<vmem>>, vector<8x768xf32>,
    %c0_i32 = arith.constant 0 : i32
    %c2_i32 = arith.constant 2 : i32
    %8 = arith.addi %c0_i32, %c2_i32 : i32
    %c1_i32 = arith.constant 1 : i32
    scf.for %arg11 = %c0_i32 to %8 step %c1_i32  : i32 {
      %c1_i32_26 = arith.constant 1 : i32
      %44 = arith.muli %arg11, %c1_i32_26 : i32
      %c0_i32_27 = arith.constant 0 : i32
      %45 = arith.addi %c0_i32_27, %44 : i32
      %c128_i32 = arith.constant 128 : i32
      %46 = arith.muli %45, %c128_i32 : i32
      %47 = tpu.assume_multiple %46, 128 : i32
      %c128_i32_28 = arith.constant 128 : i32
      %48 = arith.muli %45, %c128_i32_28 : i32
      %c256_i32 = arith.constant 256 : i32
      %49 = arith.addi %c256_i32, %48 : i32
      %50 = tpu.assume_multiple %49, 128 : i32
      %c128_i32_29 = arith.constant 128 : i32
      %51 = arith.muli %45, %c128_i32_29 : i32
      %c512_i32 = arith.constant 512 : i32
      %52 = arith.addi %c512_i32, %51 : i32
      %53 = tpu.assume_multiple %52, 128 : i32
      %c0_30 = arith.constant 0 : index
      %54 = arith.index_cast %47 : i32 to index
      %55 = vector.load %arg9[%c0_30, %54] : memref<8x768xf32, #tpu.memory_space<vmem>>, vector<8x128xf32>
      %cst_31 = arith.constant 0.0883883461 : f32
      %56 = vector.broadcast %cst_31 : f32 to vector<8x128xf32>
      %57 = arith.mulf %55, %56 : vector<8x128xf32>
      %c0_32 = arith.constant 0 : index
      %58 = arith.index_cast %50 : i32 to index
      %59 = vector.load %arg9[%c0_32, %58] : memref<8x768xf32, #tpu.memory_space<vmem>>, vector<8x128xf32>
      %c0_33 = arith.constant 0 : index
      %60 = arith.index_cast %53 : i32 to index
      %61 = vector.load %arg9[%c0_33, %60] : memref<8x768xf32, #tpu.memory_space<vmem>>, vector<8x128xf32>
      %62 = arith.truncf %57 : vector<8x128xf32> to vector<8x128xbf16>
      %63 = arith.truncf %59 : vector<8x128xf32> to vector<8x128xbf16>
      %cst_34 = arith.constant dense<0.000000e+00> : vector<8x8xf32>
      %64 = tpu.matmul %62, %63, %cst_34 {dimension_numbers = #tpu.dot_dimension_numbers<[1], [1], [0], [0], [0, 0, 1, 0], [], []>} : vector<8x128xbf16>, vector<8x128xbf16>, vector<8x8xf32> -> vector<8x8xf32>
      %cst_35 = arith.constant dense<0xFF800000> : vector<8xf32>
      %65 = vector.multi_reduction <maximumf>, %64, %cst_35 [1] : vector<8x8xf32> to vector<8xf32>
      %66 = vector.shape_cast %65 : vector<8xf32> to vector<8x1xf32>
      %67 = vector.broadcast %66 : vector<8x1xf32> to vector<8x8xf32>
      %68 = arith.subf %64, %67 : vector<8x8xf32>
      %69 = math.exp %68 : vector<8x8xf32>
      %cst_36 = arith.constant dense<0.000000e+00> : vector<8xf32>
      %70 = vector.multi_reduction <add>, %69, %cst_36 [1] : vector<8x8xf32> to vector<8xf32>
      %71 = vector.shape_cast %70 : vector<8xf32> to vector<8x1xf32>
      %72 = tpu.reciprocal %71 {approx = true} : vector<8x1xf32> -> vector<8x1xf32>
      %73 = arith.truncf %69 : vector<8x8xf32> to vector<8x8xbf16>
      %74 = arith.truncf %61 : vector<8x128xf32> to vector<8x128xbf16>
      %cst_37 = arith.constant dense<0.000000e+00> : vector<8x128xf32>
      %75 = tpu.matmul %73, %74, %cst_37 {dimension_numbers = #tpu.dot_dimension_numbers<[1], [0], [0], [1], [0, 0, 1, 1], [], []>} : vector<8x8xbf16>, vector<8x128xbf16>, vector<8x128xf32> -> vector<8x128xf32>
      %76 = vector.broadcast %72 : vector<8x1xf32> to vector<8x128xf32>
      %77 = arith.mulf %75, %76 : vector<8x128xf32>
      %c0_38 = arith.constant 0 : index
      %78 = arith.index_cast %47 : i32 to index
      %79 = vector.load %arg10[%c0_38, %78] : memref<8x256xf32, #tpu.memory_space<vmem>>, vector<8x128xf32>
      tpu.vector_store %arg10[%c0_38, %78], %77 {strides = array<i32>} : memref<8x256xf32, #tpu.memory_space<vmem>>, vector<8x128xf32>,
    }
    %c2_i32_7 = arith.constant 2 : i32
    %c0_8 = arith.constant 0 : index
    %c0_9 = arith.constant 0 : index
    %9 = vector.load %arg10[%c0_8, %c0_9] : memref<8x256xf32, #tpu.memory_space<vmem>>, vector<8x256xf32>
    %10 = arith.truncf %9 : vector<8x256xf32> to vector<8x256xbf16>
    %c0_10 = arith.constant 0 : index
    %c0_11 = arith.constant 0 : index
    %11 = vector.load %arg4[%c0_10, %c0_11] : memref<256x256xbf16, #tpu.memory_space<vmem>>, vector<256x256xbf16>
    %cst_12 = arith.constant dense<0.000000e+00> : vector<8x256xf32>
    %12 = tpu.matmul %10, %11, %cst_12 {dimension_numbers = #tpu.dot_dimension_numbers<[1], [0], [0], [1], [0, 0, 1, 1], [], []>} : vector<8x256xbf16>, vector<256x256xbf16>, vector<8x256xf32> -> vector<8x256xf32>
    %c0_13 = arith.constant 0 : index
    %c0_14 = arith.constant 0 : index
    %13 = vector.load %arg5[%c0_13, %c0_14] : memref<1x256xf32, #tpu.memory_space<vmem>>, vector<1x256xf32>
    %14 = vector.broadcast %13 : vector<1x256xf32> to vector<8x256xf32>
    %15 = arith.addf %12, %14 : vector<8x256xf32>
    %16 = arith.addf %15, %0 : vector<8x256xf32>
    %c0_15 = arith.constant 0 : index
    %c0_16 = arith.constant 0 : index
    %17 = vector.load %arg6[%c0_15, %c0_16] : memref<1x256xf32, #tpu.memory_space<vmem>>, vector<1x256xf32>
    %c0_17 = arith.constant 0 : index
    %c0_18 = arith.constant 0 : index
    %18 = vector.load %arg7[%c0_17, %c0_18] : memref<1x256xf32, #tpu.memory_space<vmem>>, vector<1x256xf32>
    %cst_19 = arith.constant dense<0.000000e+00> : vector<8xf32>
    %19 = vector.multi_reduction <add>, %16, %cst_19 [1] : vector<8x256xf32> to vector<8xf32>
    %20 = vector.shape_cast %19 : vector<8xf32> to vector<8x1xf32>
    %cst_20 = arith.constant 2.560000e+02 : f32
    %21 = vector.broadcast %cst_20 : f32 to vector<8x1xf32>
    %22 = arith.divf %20, %21 : vector<8x1xf32>
    %23 = vector.broadcast %22 : vector<8x1xf32> to vector<8x256xf32>
    %24 = arith.subf %16, %23 : vector<8x256xf32>
    %25 = vector.broadcast %22 : vector<8x1xf32> to vector<8x256xf32>
    %26 = arith.subf %16, %25 : vector<8x256xf32>
    %27 = arith.mulf %24, %26 : vector<8x256xf32>
    %cst_21 = arith.constant dense<0.000000e+00> : vector<8xf32>
    %28 = vector.multi_reduction <add>, %27, %cst_21 [1] : vector<8x256xf32> to vector<8xf32>
    %29 = vector.shape_cast %28 : vector<8xf32> to vector<8x1xf32>
    %cst_22 = arith.constant 2.560000e+02 : f32
    %30 = vector.broadcast %cst_22 : f32 to vector<8x1xf32>
    %31 = arith.divf %29, %30 : vector<8x1xf32>
    %cst_23 = arith.constant 9.99999996E-13 : f32
    %32 = vector.broadcast %cst_23 : f32 to vector<8x1xf32>
    %33 = arith.addf %31, %32 : vector<8x1xf32>
    %34 = math.rsqrt %33 : vector<8x1xf32>
    %35 = vector.broadcast %22 : vector<8x1xf32> to vector<8x256xf32>
    %36 = arith.subf %16, %35 : vector<8x256xf32>
    %37 = vector.broadcast %34 : vector<8x1xf32> to vector<8x256xf32>
    %38 = arith.mulf %36, %37 : vector<8x256xf32>
    %39 = vector.broadcast %17 : vector<1x256xf32> to vector<8x256xf32>
    %40 = arith.mulf %38, %39 : vector<8x256xf32>
    %41 = vector.broadcast %18 : vector<1x256xf32> to vector<8x256xf32>
    %42 = arith.addf %40, %41 : vector<8x256xf32>
    %c0_24 = arith.constant 0 : index
    %c0_25 = arith.constant 0 : index
    %43 = vector.load %arg8[%c0_24, %c0_25] : memref<8x256xf32, #tpu.memory_space<vmem>>, vector<8x256xf32>
    tpu.vector_store %arg8[%c0_24, %c0_25], %42 {strides = array<i32>} : memref<8x256xf32, #tpu.memory_space<vmem>>, vector<8x256xf32>,
    return
  }
  func.func @transform_0(%arg0: i32) -> (i32, i32) {
    %c0_i32 = arith.constant 0 : i32
    %c0_i32_0 = arith.constant 0 : i32
    return %arg0, %c0_i32 : i32, i32
  }
  func.func @transform_1(%arg0: i32) -> (i32, i32) {
    %c0_i32 = arith.constant 0 : i32
    %c0_i32_0 = arith.constant 0 : i32
    %c0_i32_1 = arith.constant 0 : i32
    return %c0_i32, %c0_i32_0 : i32, i32
  }
  func.func @transform_2(%arg0: i32) -> (i32, i32) {
    %c0_i32 = arith.constant 0 : i32
    %c0_i32_0 = arith.constant 0 : i32
    %c0_i32_1 = arith.constant 0 : i32
    return %c0_i32, %c0_i32_0 : i32, i32
  }
  func.func @transform_3(%arg0: i32) -> (i32, i32) {
    %c0_i32 = arith.constant 0 : i32
    %c0_i32_0 = arith.constant 0 : i32
    %c0_i32_1 = arith.constant 0 : i32
    return %c0_i32, %c0_i32_0 : i32, i32
  }
  func.func @transform_4(%arg0: i32) -> (i32, i32) {
    %c0_i32 = arith.constant 0 : i32
    %c0_i32_0 = arith.constant 0 : i32
    %c0_i32_1 = arith.constant 0 : i32
    return %c0_i32, %c0_i32_0 : i32, i32
  }
  func.func @transform_5(%arg0: i32) -> (i32, i32) {
    %c0_i32 = arith.constant 0 : i32
    %c0_i32_0 = arith.constant 0 : i32
    %c0_i32_1 = arith.constant 0 : i32
    return %c0_i32, %c0_i32_0 : i32, i32
  }
  func.func @transform_6(%arg0: i32) -> (i32, i32) {
    %c0_i32 = arith.constant 0 : i32
    %c0_i32_0 = arith.constant 0 : i32
    %c0_i32_1 = arith.constant 0 : i32
    return %c0_i32, %c0_i32_0 : i32, i32
  }
  func.func @transform_7(%arg0: i32) -> (i32, i32) {
    %c0_i32 = arith.constant 0 : i32
    %c0_i32_0 = arith.constant 0 : i32
    return %arg0, %c0_i32 : i32, i32
  }
}

</mosaic_0001>

<llo_original>
// kernel: deep_flatten_forward.5
$region0: #{deep_flatten_forward.5}
  #allocation0 [shape = 'u32[]', space=smem, size = 0x4, offset = 0x4, fixed_abs, tag = 'smem constant byte address 0x4 - core index']
  #allocation1 [shape = 'u32[72,128]{1,0:T(1,128)}', space=vmem, size = 0x9000, scoped, tag = 'internal scratch']
  %s0 = inlined_call_operand.vmem [shape: f32[16,256], index: 0, kind: input, shape index: {}]
  %s1 = inlined_call_operand.vmem [shape: f32[1,256], index: 1, kind: input, shape index: {}]
  %s2 = inlined_call_operand.vmem [shape: f32[1,256], index: 2, kind: input, shape index: {}]
  %s3 = inlined_call_operand.vmem [shape: f32[16,256], index: 3, kind: output, shape index: {}]
  %s4 = sld [smem:[#allocation0]]
  $region45: #{deep_flatten_forward.5} parent=0
    _
  %s6 = ssub.s32 1, %s4
  %s7 = scalar_select 0, %s6, %s4
  loop: start=0, step=1, limit=4
  $region2: #{deep_flatten_forward.5} parent=0 // loop_pre_header
    _
  $region3: #{deep_flatten_forward.5} parent=0 // loop_header
    %s9 = sphi 0, %s13
    %p10 = scmp.ge.s32.totalorder %s9, 4
    %s19 = sphi 0, %s21
    %s22 = sphi 0, %s19
    %s23 = sphi 0, %s22
    %s39 = sphi 0, %s23
    %s43 = sphi 0, %s43
    %s45 = sphi 0, %s43
    %s46 = sphi 0, %s45
    %s60 = sphi 0, %s46
    %s64 = sphi 0, %s64
    %s66 = sphi 0, %s64
    %s67 = sphi 0, %s66
    %s81 = sphi 0, %s67
    %s87 = sphi 0, %s89
    %s90 = sphi 0, %s87
    %s91 = sphi 0, %s90
    %s107 = sphi 0, %s91
  $region4: #{deep_flatten_forward.5} parent=0 // loop_header_branch
    %12 = sbr.rel (%p10) target = $region8
  $region5: #{deep_flatten_forward.5} parent=0 // loop_body
    %s14 = ssub.s32 %s9, 1
    %s15 = ssub.s32 %s9, 2
    %s16 = sadd.s32 %s9, 1
    %s17 = ssub.s32 %s9, %s16
    %p18 = scmp.eq.s32.totalorder %s17, 0
    %s20 = sadd.s32 %s19, 1
    %s21 = scalar_select %p18, %s19, %s20
    %p24 = pneg %p18
    %p25 = scmp.eq.s32.totalorder %s9, 1
    %p26 = por %p24, %p25
    %p27 = scmp.ne.s32.totalorder %s19, %s22
    %p28 = scmp.eq.s32.totalorder %s9, 0
    %p29 = por %p27, %p28
    %p30 = scmp.ne.s32.totalorder %s19, %s22
    %p31 = scmp.eq.s32.totalorder %s14, 1
    %p32 = por %p30, %p31
    %p33 = scmp.ne.s32.totalorder %s22, %s23
    %p34 = scmp.eq.s32.totalorder %s14, 0
    %p35 = por %p33, %p34
    %p36 = scmp.ne.s32.totalorder %s22, %s23
    %p37 = scmp.eq.s32.totalorder %s15, 1
    %p38 = por %p36, %p37
    %p40 = scmp.ne.s32.totalorder %s23, %s39
    %p41 = scmp.eq.s32.totalorder %s15, 0
    %p42 = por %p40, %p41
    %s44 = sadd.s32 %s43, 1
    %p47 = scmp.eq.s32.totalorder %s9, 1
    %p48 = scmp.ne.s32.totalorder %s43, %s45
    %p49 = scmp.eq.s32.totalorder %s9, 0
    %p50 = por %p48, %p49
    %p51 = scmp.ne.s32.totalorder %s43, %s45
    %p52 = scmp.eq.s32.totalorder %s14, 1
    %p53 = por %p51, %p52
    %p54 = scmp.ne.s32.totalorder %s45, %s46
    %p55 = scmp.eq.s32.totalorder %s14, 0
    %p56 = por %p54, %p55
    %p57 = scmp.ne.s32.totalorder %s45, %s46
    %p58 = scmp.eq.s32.totalorder %s15, 1
    %p59 = por %p57, %p58
    %p61 = scmp.ne.s32.totalorder %s46, %s60
    %p62 = scmp.eq.s32.totalorder %s15, 0
    %p63 = por %p61, %p62
    %s65 = sadd.s32 %s64, 1
    %p68 = scmp.eq.s32.totalorder %s9, 1
    %p69 = scmp.ne.s32.totalorder %s64, %s66
    %p70 = scmp.eq.s32.totalorder %s9, 0
    %p71 = por %p69, %p70
    %p72 = scmp.ne.s32.totalorder %s64, %s66
    %p73 = scmp.eq.s32.totalorder %s14, 1
    %p74 = por %p72, %p73
    %p75 = scmp.ne.s32.totalorder %s66, %s67
    %p76 = scmp.eq.s32.totalorder %s14, 0
    %p77 = por %p75, %p76
    %p78 = scmp.ne.s32.totalorder %s66, %s67
    %p79 = scmp.eq.s32.totalorder %s15, 1
    %p80 = por %p78, %p79
    %p82 = scmp.ne.s32.totalorder %s67, %s81
    %p83 = scmp.eq.s32.totalorder %s15, 0
    %p84 = por %p82, %p83
    %s85 = ssub.s32 %s9, %s16
    %p86 = scmp.eq.s32.totalorder %s85, 0
    %s88 = sadd.s32 %s87, 1
    %s89 = scalar_select %p86, %s87, %s88
    %p92 = pneg %p86
    %p93 = scmp.eq.s32.totalorder %s9, 1
    %p94 = por %p92, %p93
    %p95 = scmp.ne.s32.totalorder %s87, %s90
    %p96 = scmp.eq.s32.totalorder %s9, 0
    %p97 = por %p95, %p96
    %p98 = scmp.ne.s32.totalorder %s87, %s90
    %p99 = scmp.eq.s32.totalorder %s14, 1
    %p100 = por %p98, %p99
    %p101 = scmp.ne.s32.totalorder %s90, %s91
    %p102 = scmp.eq.s32.totalorder %s14, 0
    %p103 = por %p101, %p102
    %p104 = scmp.ne.s32.totalorder %s90, %s91
    %p105 = scmp.eq.s32.totalorder %s15, 1
    %p106 = por %p104, %p105
    %p108 = scmp.ne.s32.totalorder %s91, %s107
    %p109 = scmp.eq.s32.totalorder %s15, 0
    %p110 = por %p108, %p109
    %p111 = scmp.le.s32.totalorder 1, %s9
    %p112 = scmp.lt.s32.totalorder %s9, 3
    %p113 = pnand %p111, %p112
    %p114 = pneg %p113
    // Predicated region
    $region9: #{deep_flatten_forward.5} parent=5 // pred_check
      _
    $region10: #{deep_flatten_forward.5} parent=5 // pred_check_branch
      %116 = sbr.rel (%p113) target = $region12
    $region11: #{deep_flatten_forward.5} parent=5 // pred_region
      %s117 = ssub.s32 %s9, 1
      // Predicated region
      $region13: #{deep_flatten_forward.5} parent=11 // pred_check
        %p118 = pneg %p56
      $region14: #{deep_flatten_forward.5} parent=11 // pred_check_branch
        %120 = sbr.rel (%p118) target = $region16
      $region15: #{deep_flatten_forward.5} parent=11 // pred_region
        _
      $region16: #{deep_flatten_forward.5} parent=11 // pred_fallthru
        _
      // Predicated region
      $region17: #{deep_flatten_forward.5} parent=11 // pred_check
        %p121 = pneg %p77
      $region18: #{deep_flatten_forward.5} parent=11 // pred_check_branch
        %123 = sbr.rel (%p121) target = $region20
      $region19: #{deep_flatten_forward.5} parent=11 // pred_region
        _
      $region20: #{deep_flatten_forward.5} parent=11 // pred_fallthru
        _
    $region12: #{deep_flatten_forward.5} parent=5 // pred_fallthru
      _
    %p124 = scmp.lt.s32.totalorder %s9, 2
    // Predicated region
    $region21: #{deep_flatten_forward.5} parent=5 // pred_check
      %p125 = pneg %p124
    $region22: #{deep_flatten_forward.5} parent=5 // pred_check_branch
      %127 = sbr.rel (%p125) target = $region24
    $region23: #{deep_flatten_forward.5} parent=5 // pred_region
      // Predicated region
      $region25: #{deep_flatten_forward.5} parent=23 // pred_check
        %p128 = pneg %p29
      $region26: #{deep_flatten_forward.5} parent=23 // pred_check_branch
        %130 = sbr.rel (%p128) target = $region28
      $region27: #{deep_flatten_forward.5} parent=23 // pred_region
        %p131 = scmp.lt.s32.totalorder %s9, 1
        %s132 = scalar_select %p131, %s9, 1
        %s133 = smul.addr %s132, 2
        %s134 = smul.addr %s133, 8
        %s135 = scalar_lea.vmem %s0, %s134
      $region28: #{deep_flatten_forward.5} parent=23 // pred_fallthru
        _
    $region24: #{deep_flatten_forward.5} parent=5 // pred_fallthru
      _
    %p136 = scmp.le.s32.totalorder 1, %s9
    %p137 = scmp.lt.s32.totalorder %s9, 3
    %p138 = pnand %p136, %p137
    %p139 = pneg %p138
    // Predicated region
    $region29: #{deep_flatten_forward.5} parent=5 // pred_check
      _
    $region30: #{deep_flatten_forward.5} parent=5 // pred_check_branch
      %141 = sbr.rel (%p138) target = $region32
    $region31: #{deep_flatten_forward.5} parent=5 // pred_region
      %s142 = ssub.s32 %s9, 1
      %p143 = scmp.lt.s32.totalorder %s14, 1
      %s144 = scalar_select %p143, %s14, 1
      %s145 = smul.addr %s144, 2
      %s146 = smul.addr %s145, 8
      %s147 = scalar_lea.vmem %s0, %s146
      %p148 = pneg %p35
      %p149 = pneg %p32
      %p150 = pneg %p56
      %p151 = pneg %p53
      %p152 = pneg %p77
      %p153 = pneg %p74
      %p154 = pneg %p103
      %p155 = pneg %p100
      %p156 = scmp.lt.s32.totalorder %s14, 1
      %s157 = scalar_select %p156, %s14, 1
      %s158 = smul.addr %s157, 2
      %s159 = smul.addr %s158, 8
      %s160 = scalar_lea.vmem %s3, %s159
      %p161 = scmp.lt.s32.totalorder %s14, 1
      %s162 = scalar_select %p161, %s14, 1
      %s163 = smul.addr %s162, 2
      %s164 = smul.addr %s163, 8
      %s165 = scalar_lea.vmem %s0, %s164
      %p166 = scmp.lt.s32.totalorder %s14, 1
      %s167 = scalar_select %p166, %s14, 1
      %s168 = smul.addr %s167, 2
      %s169 = smul.addr %s168, 8
      %s170 = scalar_lea.vmem %s3, %s169
      %v171 = vld [vmem:[%s165] sm:$0xff]
      %v172 = vld [vmem:[%s165 + $0x8] sm:$0xff]
      %v173 = vld [vmem:[%s1] sm:$0x3]
      %v174 = vld [vmem:[%s2] sm:$0x3]
      %v175 = vadd.f32 %v171, %v172
      %176 = vadd.xlane.f32.xlu0 %v175
      %v177 = vpop.xlane.xlu0 %176
      %v178 = vrcp.pop 256.0
      %v179 = vmul.f32 256.0, %v178
      %v180 = vsub.f32 1.0, %v179
      %v181 = vmul.f32 %v178, %v180
      %v182 = vadd.f32 %v178, %v181
      %vm183 = vweird.f32 %v178
      %v184 = vsel %vm183, %v178, %v182
      %v185 = vmul.f32 %v177, %v184
      %v186 = vsub.f32 %v171, %v185
      %v187 = vsub.f32 %v172, %v185
      %v188 = vmul.f32 %v186, %v186
      %v189 = vmul.f32 %v187, %v187
      %v190 = vadd.f32 %v188, %v189
      %191 = vadd.xlane.f32.xlu0 %v190
      %v192 = vpop.xlane.xlu0 %191
      %v193 = vmul.f32 %v192, %v184
      %v194 = vadd.f32 %v193, 1e-12
      %v195 = vrsqrt.pop %v194
      %v196 = vmul.f32 %v195, %v194
      %v197 = vmul.f32 %v196, %v195
      %v198 = vmul.f32 0.5, %v197
      %v199 = vsub.f32 1.5, %v198
      %v200 = vmul.f32 %v195, %v199
      %vm201 = vweird.f32 %v194
      %vm202 = vweird.f32 %v195
      %vm203 = vmor %vm201, %vm202
      %v204 = vsel %vm203, %v195, %v200
      %v205 = vmul.f32 %v186, %v204
      %v206 = vmul.f32 %v187, %v204
      %v208 = vperm.slane %v173, 0
      %v209 = vperm.slane %v173, 1
      %v212 = vmul.f32 %v205, %v208
      %v213 = vmul.f32 %v206, %v209
      %v215 = vperm.slane %v174, 0
      %v216 = vperm.slane %v174, 1
      %v219 = vadd.f32 %v212, %v215
      %v220 = vadd.f32 %v213, %v216
      %221 = vst [vmem:[%s170] sm:$0xff] %v219
      %222 = vst [vmem:[%s170 + $0x8] sm:$0xff] %v220
      %p223 = scmp.lt.s32.totalorder %s14, 1
      %s224 = scalar_select %p223, %s14, 1
      %s225 = smul.addr %s224, 2
      %s226 = smul.addr %s225, 8
      %s227 = scalar_lea.vmem %s3, %s226
      // Predicated region
      $region33: #{deep_flatten_forward.5} parent=31 // pred_check
        %p228 = pneg %p100
      $region34: #{deep_flatten_forward.5} parent=31 // pred_check_branch
        %230 = sbr.rel (%p228) target = $region36
      $region35: #{deep_flatten_forward.5} parent=31 // pred_region
        _
      $region36: #{deep_flatten_forward.5} parent=31 // pred_fallthru
        _
    $region32: #{deep_flatten_forward.5} parent=5 // pred_fallthru
      _
    %p231 = scmp.le.s32.totalorder 2, %s9
    // Predicated region
    $region37: #{deep_flatten_forward.5} parent=5 // pred_check
      %p232 = pneg %p231
    $region38: #{deep_flatten_forward.5} parent=5 // pred_check_branch
      %234 = sbr.rel (%p232) target = $region40
    $region39: #{deep_flatten_forward.5} parent=5 // pred_region
      %s235 = ssub.s32 %s9, 2
      // Predicated region
      $region41: #{deep_flatten_forward.5} parent=39 // pred_check
        %p236 = pneg %p106
      $region42: #{deep_flatten_forward.5} parent=39 // pred_check_branch
        %238 = sbr.rel (%p236) target = $region44
      $region43: #{deep_flatten_forward.5} parent=39 // pred_region
        %p239 = scmp.lt.s32.totalorder %s15, 1
        %s240 = scalar_select %p239, %s15, 1
        %s241 = smul.addr %s240, 2
        %s242 = smul.addr %s241, 8
        %s243 = scalar_lea.vmem %s3, %s242
      $region44: #{deep_flatten_forward.5} parent=39 // pred_fallthru
        _
    $region40: #{deep_flatten_forward.5} parent=5 // pred_fallthru
      _
  $region6: #{deep_flatten_forward.5} parent=0 // loop_footer
    %s13 = sadd.s32 1, %s9
  $region7: #{deep_flatten_forward.5} parent=0 // loop_footer_branch
    %8 = sbr.rel target = $region3
  $region8: #{deep_flatten_forward.5} parent=0 // loop_exit
    _

// kernel: deep_flatten_forward.7
$region0: #{deep_flatten_forward.7}
  #allocation0 [shape = 'u32[]', space=smem, size = 0x4, offset = 0x4, fixed_abs, tag = 'smem constant byte address 0x4 - core index']
  #allocation1 [shape = 'u32[72,128]{1,0:T(1,128)}', space=vmem, size = 0x9000, scoped, tag = 'internal scratch']
  %s0 = inlined_call_operand.vmem [shape: f32[16,256], index: 0, kind: input, shape index: {}]
  %s1 = inlined_call_operand.hbm [shape: bf16[256,1024], index: 1, kind: input, shape index: {}]
  %s2 = inlined_call_operand.vmem [shape: f32[1,1024], index: 2, kind: input, shape index: {}]
  %s3 = inlined_call_operand.hbm [shape: bf16[1024,256], index: 3, kind: input, shape index: {}]
  %s4 = inlined_call_operand.vmem [shape: f32[1,256], index: 4, kind: input, shape index: {}]
  %s5 = inlined_call_operand.vmem [shape: f32[1,256], index: 5, kind: input, shape index: {}]
  %s6 = inlined_call_operand.vmem [shape: f32[1,256], index: 6, kind: input, shape index: {}]
  %s7 = inlined_call_operand.vmem [shape: f32[16,256], index: 7, kind: output, shape index: {}]
  %s8 = sld [smem:[#allocation0]]
  $region69: #{deep_flatten_forward.7} parent=0
    _
  %s10 = ssub.s32 1, %s8
  %s11 = scalar_select 0, %s10, %s8
  $region1: #{deep_flatten_forward.7} parent=0
    #allocation2 [shape = 'u8[524288]{0}', space=vmem, size = 0x80000, scoped, tag = 'input window, operand 1, single buffered']
    #allocation3 [shape = 's32[2]{0}', space=sflag, size = 0x8, scoped, tag = 'scoped memory for deep_flatten_forward.7']
    #allocation4 [shape = 'u8[524288]{0}', space=vmem, size = 0x80000, scoped, tag = 'input window, operand 3, single buffered']
    #allocation5 [shape = 's32[1]{0}', space=sflag, size = 0x4, scoped, tag = 'scoped memory for deep_flatten_forward.7']
    %12 = vsyncpa [#allocation3], 0
    %13 = vsyncpa [#allocation5], 0
    loop: start=0, step=1, limit=4
    $region2: #{deep_flatten_forward.7} parent=1 // loop_pre_header
      _
    $region3: #{deep_flatten_forward.7} parent=1 // loop_header
      %s15 = sphi 0, %s19
      %p16 = scmp.ge.s32.totalorder %s15, 4
      %s25 = sphi 0, %s27
      %s28 = sphi 0, %s25
      %s29 = sphi 0, %s28
      %s45 = sphi 0, %s29
      %s49 = sphi 0, %s49
      %s51 = sphi 0, %s49
      %s52 = sphi 0, %s51
      %s66 = sphi 0, %s52
      %s70 = sphi 0, %s70
      %s72 = sphi 0, %s70
      %s73 = sphi 0, %s72
      %s87 = sphi 0, %s73
      %s91 = sphi 0, %s91
      %s93 = sphi 0, %s91
      %s94 = sphi 0, %s93
      %s108 = sphi 0, %s94
      %s112 = sphi 0, %s112
      %s114 = sphi 0, %s112
      %s115 = sphi 0, %s114
      %s129 = sphi 0, %s115
      %s133 = sphi 0, %s133
      %s135 = sphi 0, %s133
      %s136 = sphi 0, %s135
      %s150 = sphi 0, %s136
      %s154 = sphi 0, %s154
      %s156 = sphi 0, %s154
      %s157 = sphi 0, %s156
      %s171 = sphi 0, %s157
      %s177 = sphi 0, %s179
      %s180 = sphi 0, %s177
      %s181 = sphi 0, %s180
      %s197 = sphi 0, %s181
    $region4: #{deep_flatten_forward.7} parent=1 // loop_header_branch
      %18 = sbr.rel (%p16) target = $region8
    $region5: #{deep_flatten_forward.7} parent=1 // loop_body
      %s20 = ssub.s32 %s15, 1
      %s21 = ssub.s32 %s15, 2
      %s22 = sadd.s32 %s15, 1
      %s23 = ssub.s32 %s15, %s22
      %p24 = scmp.eq.s32.totalorder %s23, 0
      %s26 = sadd.s32 %s25, 1
      %s27 = scalar_select %p24, %s25, %s26
      %p30 = pneg %p24
      %p31 = scmp.eq.s32.totalorder %s15, 1
      %p32 = por %p30, %p31
      %p33 = scmp.ne.s32.totalorder %s25, %s28
      %p34 = scmp.eq.s32.totalorder %s15, 0
      %p35 = por %p33, %p34
      %p36 = scmp.ne.s32.totalorder %s25, %s28
      %p37 = scmp.eq.s32.totalorder %s20, 1
      %p38 = por %p36, %p37
      %p39 = scmp.ne.s32.totalorder %s28, %s29
      %p40 = scmp.eq.s32.totalorder %s20, 0
      %p41 = por %p39, %p40
      %p42 = scmp.ne.s32.totalorder %s28, %s29
      %p43 = scmp.eq.s32.totalorder %s21, 1
      %p44 = por %p42, %p43
      %p46 = scmp.ne.s32.totalorder %s29, %s45
      %p47 = scmp.eq.s32.totalorder %s21, 0
      %p48 = por %p46, %p47
      %s50 = sadd.s32 %s49, 1
      %p53 = scmp.eq.s32.totalorder %s15, 1
      %p54 = scmp.ne.s32.totalorder %s49, %s51
      %p55 = scmp.eq.s32.totalorder %s15, 0
      %p56 = por %p54, %p55
      %p57 = scmp.ne.s32.totalorder %s49, %s51
      %p58 = scmp.eq.s32.totalorder %s20, 1
      %p59 = por %p57, %p58
      %p60 = scmp.ne.s32.totalorder %s51, %s52
      %p61 = scmp.eq.s32.totalorder %s20, 0
      %p62 = por %p60, %p61
      %p63 = scmp.ne.s32.totalorder %s51, %s52
      %p64 = scmp.eq.s32.totalorder %s21, 1
      %p65 = por %p63, %p64
      %p67 = scmp.ne.s32.totalorder %s52, %s66
      %p68 = scmp.eq.s32.totalorder %s21, 0
      %p69 = por %p67, %p68
      %s71 = sadd.s32 %s70, 1
      %p74 = scmp.eq.s32.totalorder %s15, 1
      %p75 = scmp.ne.s32.totalorder %s70, %s72
      %p76 = scmp.eq.s32.totalorder %s15, 0
      %p77 = por %p75, %p76
      %p78 = scmp.ne.s32.totalorder %s70, %s72
      %p79 = scmp.eq.s32.totalorder %s20, 1
      %p80 = por %p78, %p79
      %p81 = scmp.ne.s32.totalorder %s72, %s73
      %p82 = scmp.eq.s32.totalorder %s20, 0
      %p83 = por %p81, %p82
      %p84 = scmp.ne.s32.totalorder %s72, %s73
      %p85 = scmp.eq.s32.totalorder %s21, 1
      %p86 = por %p84, %p85
      %p88 = scmp.ne.s32.totalorder %s73, %s87
      %p89 = scmp.eq.s32.totalorder %s21, 0
      %p90 = por %p88, %p89
      %s92 = sadd.s32 %s91, 1
      %p95 = scmp.eq.s32.totalorder %s15, 1
      %p96 = scmp.ne.s32.totalorder %s91, %s93
      %p97 = scmp.eq.s32.totalorder %s15, 0
      %p98 = por %p96, %p97
      %p99 = scmp.ne.s32.totalorder %s91, %s93
      %p100 = scmp.eq.s32.totalorder %s20, 1
      %p101 = por %p99, %p100
      %p102 = scmp.ne.s32.totalorder %s93, %s94
      %p103 = scmp.eq.s32.totalorder %s20, 0
      %p104 = por %p102, %p103
      %p105 = scmp.ne.s32.totalorder %s93, %s94
      %p106 = scmp.eq.s32.totalorder %s21, 1
      %p107 = por %p105, %p106
      %p109 = scmp.ne.s32.totalorder %s94, %s108
      %p110 = scmp.eq.s32.totalorder %s21, 0
      %p111 = por %p109, %p110
      %s113 = sadd.s32 %s112, 1
      %p116 = scmp.eq.s32.totalorder %s15, 1
      %p117 = scmp.ne.s32.totalorder %s112, %s114
      %p118 = scmp.eq.s32.totalorder %s15, 0
      %p119 = por %p117, %p118
      %p120 = scmp.ne.s32.totalorder %s112, %s114
      %p121 = scmp.eq.s32.totalorder %s20, 1
      %p122 = por %p120, %p121
      %p123 = scmp.ne.s32.totalorder %s114, %s115
      %p124 = scmp.eq.s32.totalorder %s20, 0
      %p125 = por %p123, %p124
      %p126 = scmp.ne.s32.totalorder %s114, %s115
      %p127 = scmp.eq.s32.totalorder %s21, 1
      %p128 = por %p126, %p127
      %p130 = scmp.ne.s32.totalorder %s115, %s129
      %p131 = scmp.eq.s32.totalorder %s21, 0
      %p132 = por %p130, %p131
      %s134 = sadd.s32 %s133, 1
      %p137 = scmp.eq.s32.totalorder %s15, 1
      %p138 = scmp.ne.s32.totalorder %s133, %s135
      %p139 = scmp.eq.s32.totalorder %s15, 0
      %p140 = por %p138, %p139
      %p141 = scmp.ne.s32.totalorder %s133, %s135
      %p142 = scmp.eq.s32.totalorder %s20, 1
      %p143 = por %p141, %p142
      %p144 = scmp.ne.s32.totalorder %s135, %s136
      %p145 = scmp.eq.s32.totalorder %s20, 0
      %p146 = por %p144, %p145
      %p147 = scmp.ne.s32.totalorder %s135, %s136
      %p148 = scmp.eq.s32.totalorder %s21, 1
      %p149 = por %p147, %p148
      %p151 = scmp.ne.s32.totalorder %s136, %s150
      %p152 = scmp.eq.s32.totalorder %s21, 0
      %p153 = por %p151, %p152
      %s155 = sadd.s32 %s154, 1
      %p158 = scmp.eq.s32.totalorder %s15, 1
      %p159 = scmp.ne.s32.totalorder %s154, %s156
      %p160 = scmp.eq.s32.totalorder %s15, 0
      %p161 = por %p159, %p160
      %p162 = scmp.ne.s32.totalorder %s154, %s156
      %p163 = scmp.eq.s32.totalorder %s20, 1
      %p164 = por %p162, %p163
      %p165 = scmp.ne.s32.totalorder %s156, %s157
      %p166 = scmp.eq.s32.totalorder %s20, 0
      %p167 = por %p165, %p166
      %p168 = scmp.ne.s32.totalorder %s156, %s157
      %p169 = scmp.eq.s32.totalorder %s21, 1
      %p170 = por %p168, %p169
      %p172 = scmp.ne.s32.totalorder %s157, %s171
      %p173 = scmp.eq.s32.totalorder %s21, 0
      %p174 = por %p172, %p173
      %s175 = ssub.s32 %s15, %s22
      %p176 = scmp.eq.s32.totalorder %s175, 0
      %s178 = sadd.s32 %s177, 1
      %s179 = scalar_select %p176, %s177, %s178
      %p182 = pneg %p176
      %p183 = scmp.eq.s32.totalorder %s15, 1
      %p184 = por %p182, %p183
      %p185 = scmp.ne.s32.totalorder %s177, %s180
      %p186 = scmp.eq.s32.totalorder %s15, 0
      %p187 = por %p185, %p186
      %p188 = scmp.ne.s32.totalorder %s177, %s180
      %p189 = scmp.eq.s32.totalorder %s20, 1
      %p190 = por %p188, %p189
      %p191 = scmp.ne.s32.totalorder %s180, %s181
      %p192 = scmp.eq.s32.totalorder %s20, 0
      %p193 = por %p191, %p192
      %p194 = scmp.ne.s32.totalorder %s180, %s181
      %p195 = scmp.eq.s32.totalorder %s21, 1
      %p196 = por %p194, %p195
      %p198 = scmp.ne.s32.totalorder %s181, %s197
      %p199 = scmp.eq.s32.totalorder %s21, 0
      %p200 = por %p198, %p199
      %p201 = scmp.le.s32.totalorder 1, %s15
      %p202 = scmp.lt.s32.totalorder %s15, 3
      %p203 = pnand %p201, %p202
      %p204 = pneg %p203
      // Predicated region
      $region9: #{deep_flatten_forward.7} parent=5 // pred_check
        _
      $region10: #{deep_flatten_forward.7} parent=5 // pred_check_branch
        %206 = sbr.rel (%p203) target = $region12
      $region11: #{deep_flatten_forward.7} parent=5 // pred_region
        %s207 = ssub.s32 %s15, 1
        // Predicated region
        $region13: #{deep_flatten_forward.7} parent=11 // pred_check
          %p208 = pneg %p62
        $region14: #{deep_flatten_forward.7} parent=11 // pred_check_branch
          %210 = sbr.rel (%p208) target = $region16
        $region15: #{deep_flatten_forward.7} parent=11 // pred_region
          %212 = vsyncadd [#allocation3], 0
          %s213 = sshll.u32 %s1, 4
          %s214 = int_to_ptr.hbm [resolvable:$true] %s213
          %s215 = sshll.u32 [#allocation2], 4
          %s216 = int_to_ptr.vmem [resolvable:$true] %s215
          %221 = dma.hbm_to_vmem [thread:$0]  %s214, 16384, %s216, [#allocation3], 512, 512, 32
        $region16: #{deep_flatten_forward.7} parent=11 // pred_fallthru
          _
        // Predicated region
        $region17: #{deep_flatten_forward.7} parent=11 // pred_check
          %p222 = pneg %p83
        $region18: #{deep_flatten_forward.7} parent=11 // pred_check_branch
          %224 = sbr.rel (%p222) target = $region20
        $region19: #{deep_flatten_forward.7} parent=11 // pred_region
          _
        $region20: #{deep_flatten_forward.7} parent=11 // pred_fallthru
          _
        // Predicated region
        $region21: #{deep_flatten_forward.7} parent=11 // pred_check
          %p225 = pneg %p104
        $region22: #{deep_flatten_forward.7} parent=11 // pred_check_branch
          %227 = sbr.rel (%p225) target = $region24
        $region23: #{deep_flatten_forward.7} parent=11 // pred_region
          %229 = vsyncadd [#allocation5], 0
          %s230 = sshll.u32 %s3, 4
          %s231 = int_to_ptr.hbm [resolvable:$true] %s230
          %s232 = sshll.u32 [#allocation4], 4
          %s233 = int_to_ptr.vmem [resolvable:$true] %s232
          %238 = dma.hbm_to_vmem [thread:$0]  %s231, 16384, %s233, [#allocation5], 128, 128, 8
        $region24: #{deep_flatten_forward.7} parent=11 // pred_fallthru
          _
        // Predicated region
        $region25: #{deep_flatten_forward.7} parent=11 // pred_check
          %p239 = pneg %p125
        $region26: #{deep_flatten_forward.7} parent=11 // pred_check_branch
          %241 = sbr.rel (%p239) target = $region28
        $region27: #{deep_flatten_forward.7} parent=11 // pred_region
          _
        $region28: #{deep_flatten_forward.7} parent=11 // pred_fallthru
          _
        // Predicated region
        $region29: #{deep_flatten_forward.7} parent=11 // pred_check
          %p242 = pneg %p146
        $region30: #{deep_flatten_forward.7} parent=11 // pred_check_branch
          %244 = sbr.rel (%p242) target = $region32
        $region31: #{deep_flatten_forward.7} parent=11 // pred_region
          _
        $region32: #{deep_flatten_forward.7} parent=11 // pred_fallthru
          _
        // Predicated region
        $region33: #{deep_flatten_forward.7} parent=11 // pred_check
          %p245 = pneg %p167
        $region34: #{deep_flatten_forward.7} parent=11 // pred_check_branch
          %247 = sbr.rel (%p245) target = $region36
        $region35: #{deep_flatten_forward.7} parent=11 // pred_region
          _
        $region36: #{deep_flatten_forward.7} parent=11 // pred_fallthru
          _
      $region12: #{deep_flatten_forward.7} parent=5 // pred_fallthru
        _
      %p248 = scmp.lt.s32.totalorder %s15, 2
      // Predicated region
      $region37: #{deep_flatten_forward.7} parent=5 // pred_check
        %p249 = pneg %p248
      $region38: #{deep_flatten_forward.7} parent=5 // pred_check_branch
        %251 = sbr.rel (%p249) target = $region40
      $region39: #{deep_flatten_forward.7} parent=5 // pred_region
        // Predicated region
        $region41: #{deep_flatten_forward.7} parent=39 // pred_check
          %p252 = pneg %p35
        $region42: #{deep_flatten_forward.7} parent=39 // pred_check_branch
          %254 = sbr.rel (%p252) target = $region44
        $region43: #{deep_flatten_forward.7} parent=39 // pred_region
          %p255 = scmp.lt.s32.totalorder %s15, 1
          %s256 = scalar_select %p255, %s15, 1
          %s257 = smul.addr %s256, 2
          %s258 = smul.addr %s257, 8
          %s259 = scalar_lea.vmem %s0, %s258
        $region44: #{deep_flatten_forward.7} parent=39 // pred_fallthru
          _
      $region40: #{deep_flatten_forward.7} parent=5 // pred_fallthru
        _
      %p260 = scmp.le.s32.totalorder 1, %s15
      %p261 = scmp.lt.s32.totalorder %s15, 3
      %p262 = pnand %p260, %p261
      %p263 = pneg %p262
      // Predicated region
      $region45: #{deep_flatten_forward.7} parent=5 // pred_check
        _
      $region46: #{deep_flatten_forward.7} parent=5 // pred_check_branch
        %265 = sbr.rel (%p262) target = $region48
      $region47: #{deep_flatten_forward.7} parent=5 // pred_region
        %s266 = ssub.s32 %s15, 1
        // Predicated region
        $region49: #{deep_flatten_forward.7} parent=47 // pred_check
          %p267 = pneg %p62
        $region50: #{deep_flatten_forward.7} parent=47 // pred_check_branch
          %269 = sbr.rel (%p267) target = $region52
        $region51: #{deep_flatten_forward.7} parent=47 // pred_region
          %271 = dma.done [#allocation3], 16384
        $region52: #{deep_flatten_forward.7} parent=47 // pred_fallthru
          _
        // Predicated region
        $region53: #{deep_flatten_forward.7} parent=47 // pred_check
          %p272 = pneg %p104
        $region54: #{deep_flatten_forward.7} parent=47 // pred_check_branch
          %274 = sbr.rel (%p272) target = $region56
        $region55: #{deep_flatten_forward.7} parent=47 // pred_region
          %276 = dma.done [#allocation5], 16384
        $region56: #{deep_flatten_forward.7} parent=47 // pred_fallthru
          _
        %p277 = scmp.lt.s32.totalorder %s20, 1
        %s278 = scalar_select %p277, %s20, 1
        %s279 = smul.addr %s278, 2
        %s280 = smul.addr %s279, 8
        %s281 = scalar_lea.vmem %s0, %s280
        %p282 = pneg %p41
        %p283 = pneg %p38
        %p284 = pneg %p62
        %p285 = pneg %p59
        %p286 = pneg %p83
        %p287 = pneg %p80
        %p288 = pneg %p104
        %p289 = pneg %p101
        %p290 = pneg %p125
        %p291 = pneg %p122
        %p292 = pneg %p146
        %p293 = pneg %p143
        %p294 = pneg %p167
        %p295 = pneg %p164
        %p296 = pneg %p193
        %p297 = pneg %p190
        %p298 = scmp.lt.s32.totalorder %s20, 1
        %s299 = scalar_select %p298, %s20, 1
        %s300 = smul.addr %s299, 2
        %s301 = smul.addr %s300, 8
        %s302 = scalar_lea.vmem %s7, %s301
        %p303 = scmp.lt.s32.totalorder %s20, 1
        %s304 = scalar_select %p303, %s20, 1
        %s305 = smul.addr %s304, 2
        %s306 = smul.addr %s305, 8
        %s307 = scalar_lea.vmem %s0, %s306
        %p308 = scmp.lt.s32.totalorder %s20, 1
        %s309 = scalar_select %p308, %s20, 1
        %s310 = smul.addr %s309, 2
        %s311 = smul.addr %s310, 8
        %s312 = scalar_lea.vmem %s7, %s311
        %v313 = vld [vmem:[%s307] sm:$0xff]
        %v314 = vld [vmem:[%s307 + $0x8] sm:$0xff]
        %v315 = vpack.c.bf16 %v313, %v313
        %v316 = vpack.c.bf16 %v314, %v314
        %v317 = vld [vmem:[#allocation2] sm:$0xff]
        %v318 = vld [vmem:[#allocation2 + $0x8] sm:$0xff]
        %v319 = vld [vmem:[#allocation2 + $0x10] sm:$0xff]
        %v320 = vld [vmem:[#allocation2 + $0x18] sm:$0xff]
        %v321 = vld [vmem:[#allocation2 + $0x20] sm:$0xff]
        %v322 = vld [vmem:[#allocation2 + $0x28] sm:$0xff]
        %v323 = vld [vmem:[#allocation2 + $0x30] sm:$0xff]
        %v324 = vld [vmem:[#allocation2 + $0x38] sm:$0xff]
        %v325 = vld [vmem:[#allocation2 + $0x40] sm:$0xff]
        %v326 = vld [vmem:[#allocation2 + $0x48] sm:$0xff]
        %v327 = vld [vmem:[#allocation2 + $0x50] sm:$0xff]
        %v328 = vld [vmem:[#allocation2 + $0x58] sm:$0xff]
        %v329 = vld [vmem:[#allocation2 + $0x60] sm:$0xff]
        %v330 = vld [vmem:[#allocation2 + $0x68] sm:$0xff]
        %v331 = vld [vmem:[#allocation2 + $0x70] sm:$0xff]
        %v332 = vld [vmem:[#allocation2 + $0x78] sm:$0xff]
        %v333 = vld [vmem:[#allocation2 + $0x80] sm:$0xff]
        %v334 = vld [vmem:[#allocation2 + $0x88] sm:$0xff]
        %v335 = vld [vmem:[#allocation2 + $0x90] sm:$0xff]
        %v336 = vld [vmem:[#allocation2 + $0x98] sm:$0xff]
        %v337 = vld [vmem:[#allocation2 + $0xa0] sm:$0xff]
        %v338 = vld [vmem:[#allocation2 + $0xa8] sm:$0xff]
        %v339 = vld [vmem:[#allocation2 + $0xb0] sm:$0xff]
        %v340 = vld [vmem:[#allocation2 + $0xb8] sm:$0xff]
        %v341 = vld [vmem:[#allocation2 + $0xc0] sm:$0xff]
        %v342 = vld [vmem:[#allocation2 + $0xc8] sm:$0xff]
        %v343 = vld [vmem:[#allocation2 + $0xd0] sm:$0xff]
        %v344 = vld [vmem:[#allocation2 + $0xd8] sm:$0xff]
        %v345 = vld [vmem:[#allocation2 + $0xe0] sm:$0xff]
        %v346 = vld [vmem:[#allocation2 + $0xe8] sm:$0xff]
        %v347 = vld [vmem:[#allocation2 + $0xf0] sm:$0xff]
        %v348 = vld [vmem:[#allocation2 + $0xf8] sm:$0xff]
        %v349 = vld [vmem:[#allocation2 + $0x100] sm:$0xff]
        %v350 = vld [vmem:[#allocation2 + $0x108] sm:$0xff]
        %v351 = vld [vmem:[#allocation2 + $0x110] sm:$0xff]
        %v352 = vld [vmem:[#allocation2 + $0x118] sm:$0xff]
        %v353 = vld [vmem:[#allocation2 + $0x120] sm:$0xff]
        %v354 = vld [vmem:[#allocation2 + $0x128] sm:$0xff]
        %v355 = vld [vmem:[#allocation2 + $0x130] sm:$0xff]
        %v356 = vld [vmem:[#allocation2 + $0x138] sm:$0xff]
        %v357 = vld [vmem:[#allocation2 + $0x140] sm:$0xff]
        %v358 = vld [vmem:[#allocation2 + $0x148] sm:$0xff]
        %v359 = vld [vmem:[#allocation2 + $0x150] sm:$0xff]
        %v360 = vld [vmem:[#allocation2 + $0x158] sm:$0xff]
        %v361 = vld [vmem:[#allocation2 + $0x160] sm:$0xff]
        %v362 = vld [vmem:[#allocation2 + $0x168] sm:$0xff]
        %v363 = vld [vmem:[#allocation2 + $0x170] sm:$0xff]
        %v364 = vld [vmem:[#allocation2 + $0x178] sm:$0xff]
        %v365 = vld [vmem:[#allocation2 + $0x180] sm:$0xff]
        %v366 = vld [vmem:[#allocation2 + $0x188] sm:$0xff]
        %v367 = vld [vmem:[#allocation2 + $0x190] sm:$0xff]
        %v368 = vld [vmem:[#allocation2 + $0x198] sm:$0xff]
        %v369 = vld [vmem:[#allocation2 + $0x1a0] sm:$0xff]
        %v370 = vld [vmem:[#allocation2 + $0x1a8] sm:$0xff]
        %v371 = vld [vmem:[#allocation2 + $0x1b0] sm:$0xff]
        %v372 = vld [vmem:[#allocation2 + $0x1b8] sm:$0xff]
        %v373 = vld [vmem:[#allocation2 + $0x1c0] sm:$0xff]
        %v374 = vld [vmem:[#allocation2 + $0x1c8] sm:$0xff]
        %v375 = vld [vmem:[#allocation2 + $0x1d0] sm:$0xff]
        %v376 = vld [vmem:[#allocation2 + $0x1d8] sm:$0xff]
        %v377 = vld [vmem:[#allocation2 + $0x1e0] sm:$0xff]
        %v378 = vld [vmem:[#allocation2 + $0x1e8] sm:$0xff]
        %v379 = vld [vmem:[#allocation2 + $0x1f0] sm:$0xff]
        %v380 = vld [vmem:[#allocation2 + $0x1f8] sm:$0xff]
        %v381 = vld [vmem:[#allocation2 + $0x200] sm:$0xff]
        %v382 = vld [vmem:[#allocation2 + $0x208] sm:$0xff]
        %v383 = vld [vmem:[#allocation2 + $0x210] sm:$0xff]
        %v384 = vld [vmem:[#allocation2 + $0x218] sm:$0xff]
        %v385 = vld [vmem:[#allocation2 + $0x220] sm:$0xff]
        %v386 = vld [vmem:[#allocation2 + $0x228] sm:$0xff]
        %v387 = vld [vmem:[#allocation2 + $0x230] sm:$0xff]
        %v388 = vld [vmem:[#allocation2 + $0x238] sm:$0xff]
        %v389 = vld [vmem:[#allocation2 + $0x240] sm:$0xff]
        %v390 = vld [vmem:[#allocation2 + $0x248] sm:$0xff]
        %v391 = vld [vmem:[#allocation2 + $0x250] sm:$0xff]
        %v392 = vld [vmem:[#allocation2 + $0x258] sm:$0xff]
        %v393 = vld [vmem:[#allocation2 + $0x260] sm:$0xff]
        %v394 = vld [vmem:[#allocation2 + $0x268] sm:$0xff]
        %v395 = vld [vmem:[#allocation2 + $0x270] sm:$0xff]
        %v396 = vld [vmem:[#allocation2 + $0x278] sm:$0xff]
        %v397 = vld [vmem:[#allocation2 + $0x280] sm:$0xff]
        %v398 = vld [vmem:[#allocation2 + $0x288] sm:$0xff]
        %v399 = vld [vmem:[#allocation2 + $0x290] sm:$0xff]
        %v400 = vld [vmem:[#allocation2 + $0x298] sm:$0xff]
        %v401 = vld [vmem:[#allocation2 + $0x2a0] sm:$0xff]
        %v402 = vld [vmem:[#allocation2 + $0x2a8] sm:$0xff]
        %v403 = vld [vmem:[#allocation2 + $0x2b0] sm:$0xff]
        %v404 = vld [vmem:[#allocation2 + $0x2b8] sm:$0xff]
        %v405 = vld [vmem:[#allocation2 + $0x2c0] sm:$0xff]
        %v406 = vld [vmem:[#allocation2 + $0x2c8] sm:$0xff]
        %v407 = vld [vmem:[#allocation2 + $0x2d0] sm:$0xff]
        %v408 = vld [vmem:[#allocation2 + $0x2d8] sm:$0xff]
        %v409 = vld [vmem:[#allocation2 + $0x2e0] sm:$0xff]
        %v410 = vld [vmem:[#allocation2 + $0x2e8] sm:$0xff]
        %v411 = vld [vmem:[#allocation2 + $0x2f0] sm:$0xff]
        %v412 = vld [vmem:[#allocation2 + $0x2f8] sm:$0xff]
        %v413 = vld [vmem:[#allocation2 + $0x300] sm:$0xff]
        %v414 = vld [vmem:[#allocation2 + $0x308] sm:$0xff]
        %v415 = vld [vmem:[#allocation2 + $0x310] sm:$0xff]
        %v416 = vld [vmem:[#allocation2 + $0x318] sm:$0xff]
        %v417 = vld [vmem:[#allocation2 + $0x320] sm:$0xff]
        %v418 = vld [vmem:[#allocation2 + $0x328] sm:$0xff]
        %v419 = vld [vmem:[#allocation2 + $0x330] sm:$0xff]
        %v420 = vld [vmem:[#allocation2 + $0x338] sm:$0xff]
        %v421 = vld [vmem:[#allocation2 + $0x340] sm:$0xff]
        %v422 = vld [vmem:[#allocation2 + $0x348] sm:$0xff]
        %v423 = vld [vmem:[#allocation2 + $0x350] sm:$0xff]
        %v424 = vld [vmem:[#allocation2 + $0x358] sm:$0xff]
        %v425 = vld [vmem:[#allocation2 + $0x360] sm:$0xff]
        %v426 = vld [vmem:[#allocation2 + $0x368] sm:$0xff]
        %v427 = vld [vmem:[#allocation2 + $0x370] sm:$0xff]
        %v428 = vld [vmem:[#allocation2 + $0x378] sm:$0xff]
        %v429 = vld [vmem:[#allocation2 + $0x380] sm:$0xff]
        %v430 = vld [vmem:[#allocation2 + $0x388] sm:$0xff]
        %v431 = vld [vmem:[#allocation2 + $0x390] sm:$0xff]
        %v432 = vld [vmem:[#allocation2 + $0x398] sm:$0xff]
        %v433 = vld [vmem:[#allocation2 + $0x3a0] sm:$0xff]
        %v434 = vld [vmem:[#allocation2 + $0x3a8] sm:$0xff]
        %v435 = vld [vmem:[#allocation2 + $0x3b0] sm:$0xff]
        %v436 = vld [vmem:[#allocation2 + $0x3b8] sm:$0xff]
        %v437 = vld [vmem:[#allocation2 + $0x3c0] sm:$0xff]
        %v438 = vld [vmem:[#allocation2 + $0x3c8] sm:$0xff]
        %v439 = vld [vmem:[#allocation2 + $0x3d0] sm:$0xff]
        %v440 = vld [vmem:[#allocation2 + $0x3d8] sm:$0xff]
        %v441 = vld [vmem:[#allocation2 + $0x3e0] sm:$0xff]
        %v442 = vld [vmem:[#allocation2 + $0x3e8] sm:$0xff]
        %v443 = vld [vmem:[#allocation2 + $0x3f0] sm:$0xff]
        %v444 = vld [vmem:[#allocation2 + $0x3f8] sm:$0xff]
        %v445 = vld [vmem:[%s2] sm:$0xff]
        %v447 = vperm.slane %v445, 0
        %v448 = vperm.slane %v445, 1
        %v449 = vperm.slane %v445, 2
        %v450 = vperm.slane %v445, 3
        %v451 = vperm.slane %v445, 4
        %v452 = vperm.slane %v445, 5
        %v453 = vperm.slane %v445, 6
        %v454 = vperm.slane %v445, 7
        %v591 = vunpack.c.l.b16 %v317
        %v592 = vunpack.c.h.b16 %v317
        %v593 = vunpack.c.l.b16 %v318
        %v594 = vunpack.c.h.b16 %v318
        %v595 = vunpack.c.l.b16 %v319
        %v596 = vunpack.c.h.b16 %v319
        %v597 = vunpack.c.l.b16 %v320
        %v598 = vunpack.c.h.b16 %v320
        %v599 = vunpack.c.l.b16 %v321
        %v600 = vunpack.c.h.b16 %v321
        %v601 = vunpack.c.l.b16 %v322
        %v602 = vunpack.c.h.b16 %v322
        %v603 = vunpack.c.l.b16 %v323
        %v604 = vunpack.c.h.b16 %v323
        %v605 = vunpack.c.l.b16 %v324
        %v606 = vunpack.c.h.b16 %v324
        %v607 = vunpack.c.l.b16 %v325
        %v608 = vunpack.c.h.b16 %v325
        %v609 = vunpack.c.l.b16 %v326
        %v610 = vunpack.c.h.b16 %v326
        %v611 = vunpack.c.l.b16 %v327
        %v612 = vunpack.c.h.b16 %v327
        %v613 = vunpack.c.l.b16 %v328
        %v614 = vunpack.c.h.b16 %v328
        %v615 = vunpack.c.l.b16 %v329
        %v616 = vunpack.c.h.b16 %v329
        %v617 = vunpack.c.l.b16 %v330
        %v618 = vunpack.c.h.b16 %v330
        %v619 = vunpack.c.l.b16 %v331
        %v620 = vunpack.c.h.b16 %v331
        %v621 = vunpack.c.l.b16 %v332
        %v622 = vunpack.c.h.b16 %v332
        %v623 = vunpack.c.l.b16 %v333
        %v624 = vunpack.c.h.b16 %v333
        %v625 = vunpack.c.l.b16 %v334
        %v626 = vunpack.c.h.b16 %v334
        %v627 = vunpack.c.l.b16 %v335
        %v628 = vunpack.c.h.b16 %v335
        %v629 = vunpack.c.l.b16 %v336
        %v630 = vunpack.c.h.b16 %v336
        %v631 = vunpack.c.l.b16 %v337
        %v632 = vunpack.c.h.b16 %v337
        %v633 = vunpack.c.l.b16 %v338
        %v634 = vunpack.c.h.b16 %v338
        %v635 = vunpack.c.l.b16 %v339
        %v636 = vunpack.c.h.b16 %v339
        %v637 = vunpack.c.l.b16 %v340
        %v638 = vunpack.c.h.b16 %v340
        %v639 = vunpack.c.l.b16 %v341
        %v640 = vunpack.c.h.b16 %v341
        %v641 = vunpack.c.l.b16 %v342
        %v642 = vunpack.c.h.b16 %v342
        %v643 = vunpack.c.l.b16 %v343
        %v644 = vunpack.c.h.b16 %v343
        %v645 = vunpack.c.l.b16 %v344
        %v646 = vunpack.c.h.b16 %v344
        %v647 = vunpack.c.l.b16 %v345
        %v648 = vunpack.c.h.b16 %v345
        %v649 = vunpack.c.l.b16 %v346
        %v650 = vunpack.c.h.b16 %v346
        %v651 = vunpack.c.l.b16 %v347
        %v652 = vunpack.c.h.b16 %v347
        %v653 = vunpack.c.l.b16 %v348
        %v654 = vunpack.c.h.b16 %v348
        %v655 = vunpack.c.l.b16 %v349
        %v656 = vunpack.c.h.b16 %v349
        %v657 = vunpack.c.l.b16 %v350
        %v658 = vunpack.c.h.b16 %v350
        %v659 = vunpack.c.l.b16 %v351
        %v660 = vunpack.c.h.b16 %v351
        %v661 = vunpack.c.l.b16 %v352
        %v662 = vunpack.c.h.b16 %v352
        %v663 = vunpack.c.l.b16 %v353
        %v664 = vunpack.c.h.b16 %v353
        %v665 = vunpack.c.l.b16 %v354
        %v666 = vunpack.c.h.b16 %v354
        %v667 = vunpack.c.l.b16 %v355
        %v668 = vunpack.c.h.b16 %v355
        %v669 = vunpack.c.l.b16 %v356
        %v670 = vunpack.c.h.b16 %v356
        %v671 = vunpack.c.l.b16 %v357
        %v672 = vunpack.c.h.b16 %v357
        %v673 = vunpack.c.l.b16 %v358
        %v674 = vunpack.c.h.b16 %v358
        %v675 = vunpack.c.l.b16 %v359
        %v676 = vunpack.c.h.b16 %v359
        %v677 = vunpack.c.l.b16 %v360
        %v678 = vunpack.c.h.b16 %v360
        %v679 = vunpack.c.l.b16 %v361
        %v680 = vunpack.c.h.b16 %v361
        %v681 = vunpack.c.l.b16 %v362
        %v682 = vunpack.c.h.b16 %v362
        %v683 = vunpack.c.l.b16 %v363
        %v684 = vunpack.c.h.b16 %v363
        %v685 = vunpack.c.l.b16 %v364
        %v686 = vunpack.c.h.b16 %v364
        %v687 = vunpack.c.l.b16 %v365
        %v688 = vunpack.c.h.b16 %v365
        %v689 = vunpack.c.l.b16 %v366
        %v690 = vunpack.c.h.b16 %v366
        %v691 = vunpack.c.l.b16 %v367
        %v692 = vunpack.c.h.b16 %v367
        %v693 = vunpack.c.l.b16 %v368
        %v694 = vunpack.c.h.b16 %v368
        %v695 = vunpack.c.l.b16 %v369
        %v696 = vunpack.c.h.b16 %v369
        %v697 = vunpack.c.l.b16 %v370
        %v698 = vunpack.c.h.b16 %v370
        %v699 = vunpack.c.l.b16 %v371
        %v700 = vunpack.c.h.b16 %v371
        %v701 = vunpack.c.l.b16 %v372
        %v702 = vunpack.c.h.b16 %v372
        %v703 = vunpack.c.l.b16 %v373
        %v704 = vunpack.c.h.b16 %v373
        %v705 = vunpack.c.l.b16 %v374
        %v706 = vunpack.c.h.b16 %v374
        %v707 = vunpack.c.l.b16 %v375
        %v708 = vunpack.c.h.b16 %v375
        %v709 = vunpack.c.l.b16 %v376
        %v710 = vunpack.c.h.b16 %v376
        %v711 = vunpack.c.l.b16 %v377
        %v712 = vunpack.c.h.b16 %v377
        %v713 = vunpack.c.l.b16 %v378
        %v714 = vunpack.c.h.b16 %v378
        %v715 = vunpack.c.l.b16 %v379
        %v716 = vunpack.c.h.b16 %v379
        %v717 = vunpack.c.l.b16 %v380
        %v718 = vunpack.c.h.b16 %v380
        %v719 = vunpack.c.l.b16 %v381
        %v720 = vunpack.c.h.b16 %v381
        %v721 = vunpack.c.l.b16 %v382
        %v722 = vunpack.c.h.b16 %v382
        %v723 = vunpack.c.l.b16 %v383
        %v724 = vunpack.c.h.b16 %v383
        %v725 = vunpack.c.l.b16 %v384
        %v726 = vunpack.c.h.b16 %v384
        %v727 = vunpack.c.l.b16 %v385
        %v728 = vunpack.c.h.b16 %v385
        %v729 = vunpack.c.l.b16 %v386
        %v730 = vunpack.c.h.b16 %v386
        %v731 = vunpack.c.l.b16 %v387
        %v732 = vunpack.c.h.b16 %v387
        %v733 = vunpack.c.l.b16 %v388
        %v734 = vunpack.c.h.b16 %v388
        %v735 = vunpack.c.l.b16 %v389
        %v736 = vunpack.c.h.b16 %v389
        %v737 = vunpack.c.l.b16 %v390
        %v738 = vunpack.c.h.b16 %v390
        %v739 = vunpack.c.l.b16 %v391
        %v740 = vunpack.c.h.b16 %v391
        %v741 = vunpack.c.l.b16 %v392
        %v742 = vunpack.c.h.b16 %v392
        %v743 = vunpack.c.l.b16 %v393
        %v744 = vunpack.c.h.b16 %v393
        %v745 = vunpack.c.l.b16 %v394
        %v746 = vunpack.c.h.b16 %v394
        %v747 = vunpack.c.l.b16 %v395
        %v748 = vunpack.c.h.b16 %v395
        %v749 = vunpack.c.l.b16 %v396
        %v750 = vunpack.c.h.b16 %v396
        %v751 = vunpack.c.l.b16 %v397
        %v752 = vunpack.c.h.b16 %v397
        %v753 = vunpack.c.l.b16 %v398
        %v754 = vunpack.c.h.b16 %v398
        %v755 = vunpack.c.l.b16 %v399
        %v756 = vunpack.c.h.b16 %v399
        %v757 = vunpack.c.l.b16 %v400
        %v758 = vunpack.c.h.b16 %v400
        %v759 = vunpack.c.l.b16 %v401
        %v760 = vunpack.c.h.b16 %v401
        %v761 = vunpack.c.l.b16 %v402
        %v762 = vunpack.c.h.b16 %v402
        %v763 = vunpack.c.l.b16 %v403
        %v764 = vunpack.c.h.b16 %v403
        %v765 = vunpack.c.l.b16 %v404
        %v766 = vunpack.c.h.b16 %v404
        %v767 = vunpack.c.l.b16 %v405
        %v768 = vunpack.c.h.b16 %v405
        %v769 = vunpack.c.l.b16 %v406
        %v770 = vunpack.c.h.b16 %v406
        %v771 = vunpack.c.l.b16 %v407
        %v772 = vunpack.c.h.b16 %v407
        %v773 = vunpack.c.l.b16 %v408
        %v774 = vunpack.c.h.b16 %v408
        %v775 = vunpack.c.l.b16 %v409
        %v776 = vunpack.c.h.b16 %v409
        %v777 = vunpack.c.l.b16 %v410
        %v778 = vunpack.c.h.b16 %v410
        %v779 = vunpack.c.l.b16 %v411
        %v780 = vunpack.c.h.b16 %v411
        %v781 = vunpack.c.l.b16 %v412
        %v782 = vunpack.c.h.b16 %v412
        %v783 = vunpack.c.l.b16 %v413
        %v784 = vunpack.c.h.b16 %v413
        %v785 = vunpack.c.l.b16 %v414
        %v786 = vunpack.c.h.b16 %v414
        %v787 = vunpack.c.l.b16 %v415
        %v788 = vunpack.c.h.b16 %v415
        %v789 = vunpack.c.l.b16 %v416
        %v790 = vunpack.c.h.b16 %v416
        %v791 = vunpack.c.l.b16 %v417
        %v792 = vunpack.c.h.b16 %v417
        %v793 = vunpack.c.l.b16 %v418
        %v794 = vunpack.c.h.b16 %v418
        %v795 = vunpack.c.l.b16 %v419
        %v796 = vunpack.c.h.b16 %v419
        %v797 = vunpack.c.l.b16 %v420
        %v798 = vunpack.c.h.b16 %v420
        %v799 = vunpack.c.l.b16 %v421
        %v800 = vunpack.c.h.b16 %v421
        %v801 = vunpack.c.l.b16 %v422
        %v802 = vunpack.c.h.b16 %v422
        %v803 = vunpack.c.l.b16 %v423
        %v804 = vunpack.c.h.b16 %v423
        %v805 = vunpack.c.l.b16 %v424
        %v806 = vunpack.c.h.b16 %v424
        %v807 = vunpack.c.l.b16 %v425
        %v808 = vunpack.c.h.b16 %v425
        %v809 = vunpack.c.l.b16 %v426
        %v810 = vunpack.c.h.b16 %v426
        %v811 = vunpack.c.l.b16 %v427
        %v812 = vunpack.c.h.b16 %v427
        %v813 = vunpack.c.l.b16 %v428
        %v814 = vunpack.c.h.b16 %v428
        %v815 = vunpack.c.l.b16 %v429
        %v816 = vunpack.c.h.b16 %v429
        %v817 = vunpack.c.l.b16 %v430
        %v818 = vunpack.c.h.b16 %v430
        %v819 = vunpack.c.l.b16 %v431
        %v820 = vunpack.c.h.b16 %v431
        %v821 = vunpack.c.l.b16 %v432
        %v822 = vunpack.c.h.b16 %v432
        %v823 = vunpack.c.l.b16 %v433
        %v824 = vunpack.c.h.b16 %v433
        %v825 = vunpack.c.l.b16 %v434
        %v826 = vunpack.c.h.b16 %v434
        %v827 = vunpack.c.l.b16 %v435
        %v828 = vunpack.c.h.b16 %v435
        %v829 = vunpack.c.l.b16 %v436
        %v830 = vunpack.c.h.b16 %v436
        %v831 = vunpack.c.l.b16 %v437
        %v832 = vunpack.c.h.b16 %v437
        %v833 = vunpack.c.l.b16 %v438
        %v834 = vunpack.c.h.b16 %v438
        %v835 = vunpack.c.l.b16 %v439
        %v836 = vunpack.c.h.b16 %v439
        %v837 = vunpack.c.l.b16 %v440
        %v838 = vunpack.c.h.b16 %v440
        %v839 = vunpack.c.l.b16 %v441
        %v840 = vunpack.c.h.b16 %v441
        %v841 = vunpack.c.l.b16 %v442
        %v842 = vunpack.c.h.b16 %v442
        %v843 = vunpack.c.l.b16 %v443
        %v844 = vunpack.c.h.b16 %v443
        %v845 = vunpack.c.l.b16 %v444
        %v846 = vunpack.c.h.b16 %v444
        %v847 = vpack.c.b16 %v599, %v591
        %v848 = vpack.c.b16 %v600, %v592
        %v849 = vpack.c.b16 %v601, %v593
        %v850 = vpack.c.b16 %v602, %v594
        %v851 = vpack.c.b16 %v603, %v595
        %v852 = vpack.c.b16 %v604, %v596
        %v853 = vpack.c.b16 %v605, %v597
        %v854 = vpack.c.b16 %v606, %v598
        %v855 = vpack.c.b16 %v615, %v607
        %v856 = vpack.c.b16 %v616, %v608
        %v857 = vpack.c.b16 %v617, %v609
        %v858 = vpack.c.b16 %v618, %v610
        %v859 = vpack.c.b16 %v619, %v611
        %v860 = vpack.c.b16 %v620, %v612
        %v861 = vpack.c.b16 %v621, %v613
        %v862 = vpack.c.b16 %v622, %v614
        %v863 = vpack.c.b16 %v631, %v623
        %v864 = vpack.c.b16 %v632, %v624
        %v865 = vpack.c.b16 %v633, %v625
        %v866 = vpack.c.b16 %v634, %v626
        %v867 = vpack.c.b16 %v635, %v627
        %v868 = vpack.c.b16 %v636, %v628
        %v869 = vpack.c.b16 %v637, %v629
        %v870 = vpack.c.b16 %v638, %v630
        %v871 = vpack.c.b16 %v647, %v639
        %v872 = vpack.c.b16 %v648, %v640
        %v873 = vpack.c.b16 %v649, %v641
        %v874 = vpack.c.b16 %v650, %v642
        %v875 = vpack.c.b16 %v651, %v643
        %v876 = vpack.c.b16 %v652, %v644
        %v877 = vpack.c.b16 %v653, %v645
        %v878 = vpack.c.b16 %v654, %v646
        %v879 = vpack.c.b16 %v663, %v655
        %v880 = vpack.c.b16 %v664, %v656
        %v881 = vpack.c.b16 %v665, %v657
        %v882 = vpack.c.b16 %v666, %v658
        %v883 = vpack.c.b16 %v667, %v659
        %v884 = vpack.c.b16 %v668, %v660
        %v885 = vpack.c.b16 %v669, %v661
        %v886 = vpack.c.b16 %v670, %v662
        %v887 = vpack.c.b16 %v679, %v671
        %v888 = vpack.c.b16 %v680, %v672
        %v889 = vpack.c.b16 %v681, %v673
        %v890 = vpack.c.b16 %v682, %v674
        %v891 = vpack.c.b16 %v683, %v675
        %v892 = vpack.c.b16 %v684, %v676
        %v893 = vpack.c.b16 %v685, %v677
        %v894 = vpack.c.b16 %v686, %v678
        %v895 = vpack.c.b16 %v695, %v687
        %v896 = vpack.c.b16 %v696, %v688
        %v897 = vpack.c.b16 %v697, %v689
        %v898 = vpack.c.b16 %v698, %v690
        %v899 = vpack.c.b16 %v699, %v691
        %v900 = vpack.c.b16 %v700, %v692
        %v901 = vpack.c.b16 %v701, %v693
        %v902 = vpack.c.b16 %v702, %v694
        %v903 = vpack.c.b16 %v711, %v703
        %v904 = vpack.c.b16 %v712, %v704
        %v905 = vpack.c.b16 %v713, %v705
        %v906 = vpack.c.b16 %v714, %v706
        %v907 = vpack.c.b16 %v715, %v707
        %v908 = vpack.c.b16 %v716, %v708
        %v909 = vpack.c.b16 %v717, %v709
        %v910 = vpack.c.b16 %v718, %v710
        %v911 = vpack.c.b16 %v727, %v719
        %v912 = vpack.c.b16 %v728, %v720
        %v913 = vpack.c.b16 %v729, %v721
        %v914 = vpack.c.b16 %v730, %v722
        %v915 = vpack.c.b16 %v731, %v723
        %v916 = vpack.c.b16 %v732, %v724
        %v917 = vpack.c.b16 %v733, %v725
        %v918 = vpack.c.b16 %v734, %v726
        %v919 = vpack.c.b16 %v743, %v735
        %v920 = vpack.c.b16 %v744, %v736
        %v921 = vpack.c.b16 %v745, %v737
        %v922 = vpack.c.b16 %v746, %v738
        %v923 = vpack.c.b16 %v747, %v739
        %v924 = vpack.c.b16 %v748, %v740
        %v925 = vpack.c.b16 %v749, %v741
        %v926 = vpack.c.b16 %v750, %v742
        %v927 = vpack.c.b16 %v759, %v751
        %v928 = vpack.c.b16 %v760, %v752
        %v929 = vpack.c.b16 %v761, %v753
        %v930 = vpack.c.b16 %v762, %v754
        %v931 = vpack.c.b16 %v763, %v755
        %v932 = vpack.c.b16 %v764, %v756
        %v933 = vpack.c.b16 %v765, %v757
        %v934 = vpack.c.b16 %v766, %v758
        %v935 = vpack.c.b16 %v775, %v767
        %v936 = vpack.c.b16 %v776, %v768
        %v937 = vpack.c.b16 %v777, %v769
        %v938 = vpack.c.b16 %v778, %v770
        %v939 = vpack.c.b16 %v779, %v771
        %v940 = vpack.c.b16 %v780, %v772
        %v941 = vpack.c.b16 %v781, %v773
        %v942 = vpack.c.b16 %v782, %v774
        %v943 = vpack.c.b16 %v791, %v783
        %v944 = vpack.c.b16 %v792, %v784
        %v945 = vpack.c.b16 %v793, %v785
        %v946 = vpack.c.b16 %v794, %v786
        %v947 = vpack.c.b16 %v795, %v787
        %v948 = vpack.c.b16 %v796, %v788
        %v949 = vpack.c.b16 %v797, %v789
        %v950 = vpack.c.b16 %v798, %v790
        %v951 = vpack.c.b16 %v807, %v799
        %v952 = vpack.c.b16 %v808, %v800
        %v953 = vpack.c.b16 %v809, %v801
        %v954 = vpack.c.b16 %v810, %v802
        %v955 = vpack.c.b16 %v811, %v803
        %v956 = vpack.c.b16 %v812, %v804
        %v957 = vpack.c.b16 %v813, %v805
        %v958 = vpack.c.b16 %v814, %v806
        %v959 = vpack.c.b16 %v823, %v815
        %v960 = vpack.c.b16 %v824, %v816
        %v961 = vpack.c.b16 %v825, %v817
        %v962 = vpack.c.b16 %v826, %v818
        %v963 = vpack.c.b16 %v827, %v819
        %v964 = vpack.c.b16 %v828, %v820
        %v965 = vpack.c.b16 %v829, %v821
        %v966 = vpack.c.b16 %v830, %v822
        %v967 = vpack.c.b16 %v839, %v831
        %v968 = vpack.c.b16 %v840, %v832
        %v969 = vpack.c.b16 %v841, %v833
        %v970 = vpack.c.b16 %v842, %v834
        %v971 = vpack.c.b16 %v843, %v835
        %v972 = vpack.c.b16 %v844, %v836
        %v973 = vpack.c.b16 %v845, %v837
        %v974 = vpack.c.b16 %v846, %v838
        %1103 = vmatpush.bf16.msra.mxu0 %v903
        %1104 = vmatpush.bf16.msra.mxu0 %v895
        %1105 = vmatpush.bf16.msra.mxu0 %v887
        %1106 = vmatpush.bf16.msra.mxu0 %v879
        %1107 = vmatpush.bf16.msra.mxu0 %v871
        %1108 = vmatpush.bf16.msra.mxu0 %v863
        %1109 = vmatpush.bf16.msra.mxu0 %v855
        %1110 = vmatpush.bf16.msra.mxu0 %v847
        %1111 = vmatmul.bf16.gmra.mxu0 %v315
        %v1112 = vpop.f32.mrf.mxu0
        %v1113 = vadd.f32 %v447, %v1112
        %v1114 = vpop.f32.mrf.mxu0
        %1115 = vdwg.mxu0
        %1116 = vmatpush.bf16.msra.mxu0 %v967
        %1117 = vmatpush.bf16.msra.mxu0 %v959
        %1118 = vmatpush.bf16.msra.mxu0 %v951
        %1119 = vmatpush.bf16.msra.mxu0 %v943
        %1120 = vmatpush.bf16.msra.mxu0 %v935
        %1121 = vmatpush.bf16.msra.mxu0 %v927
        %1122 = vmatpush.bf16.msra.mxu0 %v919
        %1123 = vmatpush.bf16.msra.mxu0 %v911
        %1124 = vmatmul.bf16.gmra.mxu0 %v316
        %v1125 = vpop.f32.mrf.mxu0
        %v1126 = vadd.f32 %v1113, %v1125
        %v1127 = vpop.f32.mrf.mxu0
        %1128 = vdwg.mxu0
        %1129 = vmatpush.bf16.msra.mxu0 %v904
        %1130 = vmatpush.bf16.msra.mxu0 %v896
        %1131 = vmatpush.bf16.msra.mxu0 %v888
        %1132 = vmatpush.bf16.msra.mxu0 %v880
        %1133 = vmatpush.bf16.msra.mxu0 %v872
        %1134 = vmatpush.bf16.msra.mxu0 %v864
        %1135 = vmatpush.bf16.msra.mxu0 %v856
        %1136 = vmatpush.bf16.msra.mxu0 %v848
        %1137 = vmatmul.bf16.gmra.mxu0 %v315
        %v1138 = vpop.f32.mrf.mxu0
        %v1139 = vadd.f32 %v448, %v1138
        %v1140 = vpop.f32.mrf.mxu0
        %1141 = vdwg.mxu0
        %1142 = vmatpush.bf16.msra.mxu0 %v968
        %1143 = vmatpush.bf16.msra.mxu0 %v960
        %1144 = vmatpush.bf16.msra.mxu0 %v952
        %1145 = vmatpush.bf16.msra.mxu0 %v944
        %1146 = vmatpush.bf16.msra.mxu0 %v936
        %1147 = vmatpush.bf16.msra.mxu0 %v928
        %1148 = vmatpush.bf16.msra.mxu0 %v920
        %1149 = vmatpush.bf16.msra.mxu0 %v912
        %1150 = vmatmul.bf16.gmra.mxu0 %v316
        %v1151 = vpop.f32.mrf.mxu0
        %v1152 = vadd.f32 %v1139, %v1151
        %v1153 = vpop.f32.mrf.mxu0
        %1154 = vdwg.mxu0
        %1155 = vmatpush.bf16.msra.mxu0 %v905
        %1156 = vmatpush.bf16.msra.mxu0 %v897
        %1157 = vmatpush.bf16.msra.mxu0 %v889
        %1158 = vmatpush.bf16.msra.mxu0 %v881
        %1159 = vmatpush.bf16.msra.mxu0 %v873
        %1160 = vmatpush.bf16.msra.mxu0 %v865
        %1161 = vmatpush.bf16.msra.mxu0 %v857
        %1162 = vmatpush.bf16.msra.mxu0 %v849
        %1163 = vmatmul.bf16.gmra.mxu0 %v315
        %v1164 = vpop.f32.mrf.mxu0
        %v1165 = vadd.f32 %v449, %v1164
        %v1166 = vpop.f32.mrf.mxu0
        %1167 = vdwg.mxu0
        %1168 = vmatpush.bf16.msra.mxu0 %v969
        %1169 = vmatpush.bf16.msra.mxu0 %v961
        %1170 = vmatpush.bf16.msra.mxu0 %v953
        %1171 = vmatpush.bf16.msra.mxu0 %v945
        %1172 = vmatpush.bf16.msra.mxu0 %v937
        %1173 = vmatpush.bf16.msra.mxu0 %v929
        %1174 = vmatpush.bf16.msra.mxu0 %v921
        %1175 = vmatpush.bf16.msra.mxu0 %v913
        %1176 = vmatmul.bf16.gmra.mxu0 %v316
        %v1177 = vpop.f32.mrf.mxu0
        %v1178 = vadd.f32 %v1165, %v1177
        %v1179 = vpop.f32.mrf.mxu0
        %1180 = vdwg.mxu0
        %1181 = vmatpush.bf16.msra.mxu0 %v906
        %1182 = vmatpush.bf16.msra.mxu0 %v898
        %1183 = vmatpush.bf16.msra.mxu0 %v890
        %1184 = vmatpush.bf16.msra.mxu0 %v882
        %1185 = vmatpush.bf16.msra.mxu0 %v874
        %1186 = vmatpush.bf16.msra.mxu0 %v866
        %1187 = vmatpush.bf16.msra.mxu0 %v858
        %1188 = vmatpush.bf16.msra.mxu0 %v850
        %1189 = vmatmul.bf16.gmra.mxu0 %v315
        %v1190 = vpop.f32.mrf.mxu0
        %v1191 = vadd.f32 %v450, %v1190
        %v1192 = vpop.f32.mrf.mxu0
        %1193 = vdwg.mxu0
        %1194 = vmatpush.bf16.msra.mxu0 %v970
        %1195 = vmatpush.bf16.msra.mxu0 %v962
        %1196 = vmatpush.bf16.msra.mxu0 %v954
        %1197 = vmatpush.bf16.msra.mxu0 %v946
        %1198 = vmatpush.bf16.msra.mxu0 %v938
        %1199 = vmatpush.bf16.msra.mxu0 %v930
        %1200 = vmatpush.bf16.msra.mxu0 %v922
        %1201 = vmatpush.bf16.msra.mxu0 %v914
        %1202 = vmatmul.bf16.gmra.mxu0 %v316
        %v1203 = vpop.f32.mrf.mxu0
        %v1204 = vadd.f32 %v1191, %v1203
        %v1205 = vpop.f32.mrf.mxu0
        %1206 = vdwg.mxu0
        %1207 = vmatpush.bf16.msra.mxu0 %v907
        %1208 = vmatpush.bf16.msra.mxu0 %v899
        %1209 = vmatpush.bf16.msra.mxu0 %v891
        %1210 = vmatpush.bf16.msra.mxu0 %v883
        %1211 = vmatpush.bf16.msra.mxu0 %v875
        %1212 = vmatpush.bf16.msra.mxu0 %v867
        %1213 = vmatpush.bf16.msra.mxu0 %v859
        %1214 = vmatpush.bf16.msra.mxu0 %v851
        %1215 = vmatmul.bf16.gmra.mxu0 %v315
        %v1216 = vpop.f32.mrf.mxu0
        %v1217 = vadd.f32 %v451, %v1216
        %v1218 = vpop.f32.mrf.mxu0
        %1219 = vdwg.mxu0
        %1220 = vmatpush.bf16.msra.mxu0 %v971
        %1221 = vmatpush.bf16.msra.mxu0 %v963
        %1222 = vmatpush.bf16.msra.mxu0 %v955
        %1223 = vmatpush.bf16.msra.mxu0 %v947
        %1224 = vmatpush.bf16.msra.mxu0 %v939
        %1225 = vmatpush.bf16.msra.mxu0 %v931
        %1226 = vmatpush.bf16.msra.mxu0 %v923
        %1227 = vmatpush.bf16.msra.mxu0 %v915
        %1228 = vmatmul.bf16.gmra.mxu0 %v316
        %v1229 = vpop.f32.mrf.mxu0
        %v1230 = vadd.f32 %v1217, %v1229
        %v1231 = vpop.f32.mrf.mxu0
        %1232 = vdwg.mxu0
        %1233 = vmatpush.bf16.msra.mxu0 %v908
        %1234 = vmatpush.bf16.msra.mxu0 %v900
        %1235 = vmatpush.bf16.msra.mxu0 %v892
        %1236 = vmatpush.bf16.msra.mxu0 %v884
        %1237 = vmatpush.bf16.msra.mxu0 %v876
        %1238 = vmatpush.bf16.msra.mxu0 %v868
        %1239 = vmatpush.bf16.msra.mxu0 %v860
        %1240 = vmatpush.bf16.msra.mxu0 %v852
        %1241 = vmatmul.bf16.gmra.mxu0 %v315
        %v1242 = vpop.f32.mrf.mxu0
        %v1243 = vadd.f32 %v452, %v1242
        %v1244 = vpop.f32.mrf.mxu0
        %1245 = vdwg.mxu0
        %1246 = vmatpush.bf16.msra.mxu0 %v972
        %1247 = vmatpush.bf16.msra.mxu0 %v964
        %1248 = vmatpush.bf16.msra.mxu0 %v956
        %1249 = vmatpush.bf16.msra.mxu0 %v948
        %1250 = vmatpush.bf16.msra.mxu0 %v940
        %1251 = vmatpush.bf16.msra.mxu0 %v932
        %1252 = vmatpush.bf16.msra.mxu0 %v924
        %1253 = vmatpush.bf16.msra.mxu0 %v916
        %1254 = vmatmul.bf16.gmra.mxu0 %v316
        %v1255 = vpop.f32.mrf.mxu0
        %v1256 = vadd.f32 %v1243, %v1255
        %v1257 = vpop.f32.mrf.mxu0
        %1258 = vdwg.mxu0
        %1259 = vmatpush.bf16.msra.mxu0 %v909
        %1260 = vmatpush.bf16.msra.mxu0 %v901
        %1261 = vmatpush.bf16.msra.mxu0 %v893
        %1262 = vmatpush.bf16.msra.mxu0 %v885
        %1263 = vmatpush.bf16.msra.mxu0 %v877
        %1264 = vmatpush.bf16.msra.mxu0 %v869
        %1265 = vmatpush.bf16.msra.mxu0 %v861
        %1266 = vmatpush.bf16.msra.mxu0 %v853
        %1267 = vmatmul.bf16.gmra.mxu0 %v315
        %v1268 = vpop.f32.mrf.mxu0
        %v1269 = vadd.f32 %v453, %v1268
        %v1270 = vpop.f32.mrf.mxu0
        %1271 = vdwg.mxu0
        %1272 = vmatpush.bf16.msra.mxu0 %v973
        %1273 = vmatpush.bf16.msra.mxu0 %v965
        %1274 = vmatpush.bf16.msra.mxu0 %v957
        %1275 = vmatpush.bf16.msra.mxu0 %v949
        %1276 = vmatpush.bf16.msra.mxu0 %v941
        %1277 = vmatpush.bf16.msra.mxu0 %v933
        %1278 = vmatpush.bf16.msra.mxu0 %v925
        %1279 = vmatpush.bf16.msra.mxu0 %v917
        %1280 = vmatmul.bf16.gmra.mxu0 %v316
        %v1281 = vpop.f32.mrf.mxu0
        %v1282 = vadd.f32 %v1269, %v1281
        %v1283 = vpop.f32.mrf.mxu0
        %1284 = vdwg.mxu0
        %1285 = vmatpush.bf16.msra.mxu0 %v910
        %1286 = vmatpush.bf16.msra.mxu0 %v902
        %1287 = vmatpush.bf16.msra.mxu0 %v894
        %1288 = vmatpush.bf16.msra.mxu0 %v886
        %1289 = vmatpush.bf16.msra.mxu0 %v878
        %1290 = vmatpush.bf16.msra.mxu0 %v870
        %1291 = vmatpush.bf16.msra.mxu0 %v862
        %1292 = vmatpush.bf16.msra.mxu0 %v854
        %1293 = vmatmul.bf16.gmra.mxu0 %v315
        %v1294 = vpop.f32.mrf.mxu0
        %v1295 = vadd.f32 %v454, %v1294
        %v1296 = vpop.f32.mrf.mxu0
        %1297 = vdwg.mxu0
        %1298 = vmatpush.bf16.msra.mxu0 %v974
        %1299 = vmatpush.bf16.msra.mxu0 %v966
        %1300 = vmatpush.bf16.msra.mxu0 %v958
        %1301 = vmatpush.bf16.msra.mxu0 %v950
        %1302 = vmatpush.bf16.msra.mxu0 %v942
        %1303 = vmatpush.bf16.msra.mxu0 %v934
        %1304 = vmatpush.bf16.msra.mxu0 %v926
        %1305 = vmatpush.bf16.msra.mxu0 %v918
        %1306 = vmatmul.bf16.gmra.mxu0 %v316
        %v1307 = vpop.f32.mrf.mxu0
        %v1308 = vadd.f32 %v1295, %v1307
        %v1309 = vpop.f32.mrf.mxu0
        %1310 = vdwg.mxu0
        %v1311 = vmul.f32 %v1126, %v1126
        %v1312 = vmul.f32 %v1152, %v1152
        %v1313 = vmul.f32 %v1178, %v1178
        %v1314 = vmul.f32 %v1204, %v1204
        %v1315 = vmul.f32 %v1230, %v1230
        %v1316 = vmul.f32 %v1256, %v1256
        %v1317 = vmul.f32 %v1282, %v1282
        %v1318 = vmul.f32 %v1308, %v1308
        %v1319 = vmul.f32 %v1126, %v1311
        %v1320 = vmul.f32 %v1152, %v1312
        %v1321 = vmul.f32 %v1178, %v1313
        %v1322 = vmul.f32 %v1204, %v1314
        %v1323 = vmul.f32 %v1230, %v1315
        %v1324 = vmul.f32 %v1256, %v1316
        %v1325 = vmul.f32 %v1282, %v1317
        %v1326 = vmul.f32 %v1308, %v1318
        %v1327 = vmul.f32 %v1319, 0.044715
        %v1328 = vmul.f32 %v1320, 0.044715
        %v1329 = vmul.f32 %v1321, 0.044715
        %v1330 = vmul.f32 %v1322, 0.044715
        %v1331 = vmul.f32 %v1323, 0.044715
        %v1332 = vmul.f32 %v1324, 0.044715
        %v1333 = vmul.f32 %v1325, 0.044715
        %v1334 = vmul.f32 %v1326, 0.044715
        %v1335 = vadd.f32 %v1126, %v1327
        %v1336 = vadd.f32 %v1152, %v1328
        %v1337 = vadd.f32 %v1178, %v1329
        %v1338 = vadd.f32 %v1204, %v1330
        %v1339 = vadd.f32 %v1230, %v1331
        %v1340 = vadd.f32 %v1256, %v1332
        %v1341 = vadd.f32 %v1282, %v1333
        %v1342 = vadd.f32 %v1308, %v1334
        %v1343 = vmul.f32 %v1335, 0.7978846
        %v1344 = vmul.f32 %v1336, 0.7978846
        %v1345 = vmul.f32 %v1337, 0.7978846
        %v1346 = vmul.f32 %v1338, 0.7978846
        %v1347 = vmul.f32 %v1339, 0.7978846
        %v1348 = vmul.f32 %v1340, 0.7978846
        %v1349 = vmul.f32 %v1341, 0.7978846
        %v1350 = vmul.f32 %v1342, 0.7978846
        %v1351 = vtanh.pop %v1343
        %v1352 = vtanh.pop %v1344
        %v1353 = vtanh.pop %v1345
        %v1354 = vtanh.pop %v1346
        %v1355 = vtanh.pop %v1347
        %v1356 = vtanh.pop %v1348
        %v1357 = vtanh.pop %v1349
        %v1358 = vtanh.pop %v1350
        %v1359 = vadd.f32 %v1351, 1.0
        %v1360 = vadd.f32 %v1352, 1.0
        %v1361 = vadd.f32 %v1353, 1.0
        %v1362 = vadd.f32 %v1354, 1.0
        %v1363 = vadd.f32 %v1355, 1.0
        %v1364 = vadd.f32 %v1356, 1.0
        %v1365 = vadd.f32 %v1357, 1.0
        %v1366 = vadd.f32 %v1358, 1.0
        %v1367 = vmul.f32 %v1359, 0.5
        %v1368 = vmul.f32 %v1360, 0.5
        %v1369 = vmul.f32 %v1361, 0.5
        %v1370 = vmul.f32 %v1362, 0.5
        %v1371 = vmul.f32 %v1363, 0.5
        %v1372 = vmul.f32 %v1364, 0.5
        %v1373 = vmul.f32 %v1365, 0.5
        %v1374 = vmul.f32 %v1366, 0.5
        %v1375 = vmul.f32 %v1126, %v1367
        %v1376 = vmul.f32 %v1152, %v1368
        %v1377 = vmul.f32 %v1178, %v1369
        %v1378 = vmul.f32 %v1204, %v1370
        %v1379 = vmul.f32 %v1230, %v1371
        %v1380 = vmul.f32 %v1256, %v1372
        %v1381 = vmul.f32 %v1282, %v1373
        %v1382 = vmul.f32 %v1308, %v1374
        %v1383 = vpack.c.bf16 %v1375, %v1375
        %v1384 = vpack.c.bf16 %v1376, %v1376
        %v1385 = vpack.c.bf16 %v1377, %v1377
        %v1386 = vpack.c.bf16 %v1378, %v1378
        %v1387 = vpack.c.bf16 %v1379, %v1379
        %v1388 = vpack.c.bf16 %v1380, %v1380
        %v1389 = vpack.c.bf16 %v1381, %v1381
        %v1390 = vpack.c.bf16 %v1382, %v1382
        %v1391 = vld [vmem:[#allocation4] sm:$0xff]
        %v1392 = vld [vmem:[#allocation4 + $0x8] sm:$0xff]
        %v1393 = vld [vmem:[#allocation4 + $0x10] sm:$0xff]
        %v1394 = vld [vmem:[#allocation4 + $0x18] sm:$0xff]
        %v1395 = vld [vmem:[#allocation4 + $0x20] sm:$0xff]
        %v1396 = vld [vmem:[#allocation4 + $0x28] sm:$0xff]
        %v1397 = vld [vmem:[#allocation4 + $0x30] sm:$0xff]
        %v1398 = vld [vmem:[#allocation4 + $0x38] sm:$0xff]
        %v1399 = vld [vmem:[#allocation4 + $0x40] sm:$0xff]
        %v1400 = vld [vmem:[#allocation4 + $0x48] sm:$0xff]
        %v1401 = vld [vmem:[#allocation4 + $0x50] sm:$0xff]
        %v1402 = vld [vmem:[#allocation4 + $0x58] sm:$0xff]
        %v1403 = vld [vmem:[#allocation4 + $0x60] sm:$0xff]
        %v1404 = vld [vmem:[#allocation4 + $0x68] sm:$0xff]
        %v1405 = vld [vmem:[#allocation4 + $0x70] sm:$0xff]
        %v1406 = vld [vmem:[#allocation4 + $0x78] sm:$0xff]
        %v1407 = vld [vmem:[#allocation4 + $0x80] sm:$0xff]
        %v1408 = vld [vmem:[#allocation4 + $0x88] sm:$0xff]
        %v1409 = vld [vmem:[#allocation4 + $0x90] sm:$0xff]
        %v1410 = vld [vmem:[#allocation4 + $0x98] sm:$0xff]
        %v1411 = vld [vmem:[#allocation4 + $0xa0] sm:$0xff]
        %v1412 = vld [vmem:[#allocation4 + $0xa8] sm:$0xff]
        %v1413 = vld [vmem:[#allocation4 + $0xb0] sm:$0xff]
        %v1414 = vld [vmem:[#allocation4 + $0xb8] sm:$0xff]
        %v1415 = vld [vmem:[#allocation4 + $0xc0] sm:$0xff]
        %v1416 = vld [vmem:[#allocation4 + $0xc8] sm:$0xff]
        %v1417 = vld [vmem:[#allocation4 + $0xd0] sm:$0xff]
        %v1418 = vld [vmem:[#allocation4 + $0xd8] sm:$0xff]
        %v1419 = vld [vmem:[#allocation4 + $0xe0] sm:$0xff]
        %v1420 = vld [vmem:[#allocation4 + $0xe8] sm:$0xff]
        %v1421 = vld [vmem:[#allocation4 + $0xf0] sm:$0xff]
        %v1422 = vld [vmem:[#allocation4 + $0xf8] sm:$0xff]
        %v1423 = vld [vmem:[#allocation4 + $0x100] sm:$0xff]
        %v1424 = vld [vmem:[#allocation4 + $0x108] sm:$0xff]
        %v1425 = vld [vmem:[#allocation4 + $0x110] sm:$0xff]
        %v1426 = vld [vmem:[#allocation4 + $0x118] sm:$0xff]
        %v1427 = vld [vmem:[#allocation4 + $0x120] sm:$0xff]
        %v1428 = vld [vmem:[#allocation4 + $0x128] sm:$0xff]
        %v1429 = vld [vmem:[#allocation4 + $0x130] sm:$0xff]
        %v1430 = vld [vmem:[#allocation4 + $0x138] sm:$0xff]
        %v1431 = vld [vmem:[#allocation4 + $0x140] sm:$0xff]
        %v1432 = vld [vmem:[#allocation4 + $0x148] sm:$0xff]
        %v1433 = vld [vmem:[#allocation4 + $0x150] sm:$0xff]
        %v1434 = vld [vmem:[#allocation4 + $0x158] sm:$0xff]
        %v1435 = vld [vmem:[#allocation4 + $0x160] sm:$0xff]
        %v1436 = vld [vmem:[#allocation4 + $0x168] sm:$0xff]
        %v1437 = vld [vmem:[#allocation4 + $0x170] sm:$0xff]
        %v1438 = vld [vmem:[#allocation4 + $0x178] sm:$0xff]
        %v1439 = vld [vmem:[#allocation4 + $0x180] sm:$0xff]
        %v1440 = vld [vmem:[#allocation4 + $0x188] sm:$0xff]
        %v1441 = vld [vmem:[#allocation4 + $0x190] sm:$0xff]
        %v1442 = vld [vmem:[#allocation4 + $0x198] sm:$0xff]
        %v1443 = vld [vmem:[#allocation4 + $0x1a0] sm:$0xff]
        %v1444 = vld [vmem:[#allocation4 + $0x1a8] sm:$0xff]
        %v1445 = vld [vmem:[#allocation4 + $0x1b0] sm:$0xff]
        %v1446 = vld [vmem:[#allocation4 + $0x1b8] sm:$0xff]
        %v1447 = vld [vmem:[#allocation4 + $0x1c0] sm:$0xff]
        %v1448 = vld [vmem:[#allocation4 + $0x1c8] sm:$0xff]
        %v1449 = vld [vmem:[#allocation4 + $0x1d0] sm:$0xff]
        %v1450 = vld [vmem:[#allocation4 + $0x1d8] sm:$0xff]
        %v1451 = vld [vmem:[#allocation4 + $0x1e0] sm:$0xff]
        %v1452 = vld [vmem:[#allocation4 + $0x1e8] sm:$0xff]
        %v1453 = vld [vmem:[#allocation4 + $0x1f0] sm:$0xff]
        %v1454 = vld [vmem:[#allocation4 + $0x1f8] sm:$0xff]
        %v1455 = vld [vmem:[#allocation4 + $0x200] sm:$0xff]
        %v1456 = vld [vmem:[#allocation4 + $0x208] sm:$0xff]
        %v1457 = vld [vmem:[#allocation4 + $0x210] sm:$0xff]
        %v1458 = vld [vmem:[#allocation4 + $0x218] sm:$0xff]
        %v1459 = vld [vmem:[#allocation4 + $0x220] sm:$0xff]
        %v1460 = vld [vmem:[#allocation4 + $0x228] sm:$0xff]
        %v1461 = vld [vmem:[#allocation4 + $0x230] sm:$0xff]
        %v1462 = vld [vmem:[#allocation4 + $0x238] sm:$0xff]
        %v1463 = vld [vmem:[#allocation4 + $0x240] sm:$0xff]
        %v1464 = vld [vmem:[#allocation4 + $0x248] sm:$0xff]
        %v1465 = vld [vmem:[#allocation4 + $0x250] sm:$0xff]
        %v1466 = vld [vmem:[#allocation4 + $0x258] sm:$0xff]
        %v1467 = vld [vmem:[#allocation4 + $0x260] sm:$0xff]
        %v1468 = vld [vmem:[#allocation4 + $0x268] sm:$0xff]
        %v1469 = vld [vmem:[#allocation4 + $0x270] sm:$0xff]
        %v1470 = vld [vmem:[#allocation4 + $0x278] sm:$0xff]
        %v1471 = vld [vmem:[#allocation4 + $0x280] sm:$0xff]
        %v1472 = vld [vmem:[#allocation4 + $0x288] sm:$0xff]
        %v1473 = vld [vmem:[#allocation4 + $0x290] sm:$0xff]
        %v1474 = vld [vmem:[#allocation4 + $0x298] sm:$0xff]
        %v1475 = vld [vmem:[#allocation4 + $0x2a0] sm:$0xff]
        %v1476 = vld [vmem:[#allocation4 + $0x2a8] sm:$0xff]
        %v1477 = vld [vmem:[#allocation4 + $0x2b0] sm:$0xff]
        %v1478 = vld [vmem:[#allocation4 + $0x2b8] sm:$0xff]
        %v1479 = vld [vmem:[#allocation4 + $0x2c0] sm:$0xff]
        %v1480 = vld [vmem:[#allocation4 + $0x2c8] sm:$0xff]
        %v1481 = vld [vmem:[#allocation4 + $0x2d0] sm:$0xff]
        %v1482 = vld [vmem:[#allocation4 + $0x2d8] sm:$0xff]
        %v1483 = vld [vmem:[#allocation4 + $0x2e0] sm:$0xff]
        %v1484 = vld [vmem:[#allocation4 + $0x2e8] sm:$0xff]
        %v1485 = vld [vmem:[#allocation4 + $0x2f0] sm:$0xff]
        %v1486 = vld [vmem:[#allocation4 + $0x2f8] sm:$0xff]
        %v1487 = vld [vmem:[#allocation4 + $0x300] sm:$0xff]
        %v1488 = vld [vmem:[#allocation4 + $0x308] sm:$0xff]
        %v1489 = vld [vmem:[#allocation4 + $0x310] sm:$0xff]
        %v1490 = vld [vmem:[#allocation4 + $0x318] sm:$0xff]
        %v1491 = vld [vmem:[#allocation4 + $0x320] sm:$0xff]
        %v1492 = vld [vmem:[#allocation4 + $0x328] sm:$0xff]
        %v1493 = vld [vmem:[#allocation4 + $0x330] sm:$0xff]
        %v1494 = vld [vmem:[#allocation4 + $0x338] sm:$0xff]
        %v1495 = vld [vmem:[#allocation4 + $0x340] sm:$0xff]
        %v1496 = vld [vmem:[#allocation4 + $0x348] sm:$0xff]
        %v1497 = vld [vmem:[#allocation4 + $0x350] sm:$0xff]
        %v1498 = vld [vmem:[#allocation4 + $0x358] sm:$0xff]
        %v1499 = vld [vmem:[#allocation4 + $0x360] sm:$0xff]
        %v1500 = vld [vmem:[#allocation4 + $0x368] sm:$0xff]
        %v1501 = vld [vmem:[#allocation4 + $0x370] sm:$0xff]
        %v1502 = vld [vmem:[#allocation4 + $0x378] sm:$0xff]
        %v1503 = vld [vmem:[#allocation4 + $0x380] sm:$0xff]
        %v1504 = vld [vmem:[#allocation4 + $0x388] sm:$0xff]
        %v1505 = vld [vmem:[#allocation4 + $0x390] sm:$0xff]
        %v1506 = vld [vmem:[#allocation4 + $0x398] sm:$0xff]
        %v1507 = vld [vmem:[#allocation4 + $0x3a0] sm:$0xff]
        %v1508 = vld [vmem:[#allocation4 + $0x3a8] sm:$0xff]
        %v1509 = vld [vmem:[#allocation4 + $0x3b0] sm:$0xff]
        %v1510 = vld [vmem:[#allocation4 + $0x3b8] sm:$0xff]
        %v1511 = vld [vmem:[#allocation4 + $0x3c0] sm:$0xff]
        %v1512 = vld [vmem:[#allocation4 + $0x3c8] sm:$0xff]
        %v1513 = vld [vmem:[#allocation4 + $0x3d0] sm:$0xff]
        %v1514 = vld [vmem:[#allocation4 + $0x3d8] sm:$0xff]
        %v1515 = vld [vmem:[#allocation4 + $0x3e0] sm:$0xff]
        %v1516 = vld [vmem:[#allocation4 + $0x3e8] sm:$0xff]
        %v1517 = vld [vmem:[#allocation4 + $0x3f0] sm:$0xff]
        %v1518 = vld [vmem:[#allocation4 + $0x3f8] sm:$0xff]
        %v1519 = vld [vmem:[%s4] sm:$0x3]
        %v1521 = vperm.slane %v1519, 0
        %v1522 = vperm.slane %v1519, 1
        %v1653 = vunpack.c.l.b16 %v1391
        %v1654 = vunpack.c.h.b16 %v1391
        %v1655 = vunpack.c.l.b16 %v1392
        %v1656 = vunpack.c.h.b16 %v1392
        %v1657 = vunpack.c.l.b16 %v1393
        %v1658 = vunpack.c.h.b16 %v1393
        %v1659 = vunpack.c.l.b16 %v1394
        %v1660 = vunpack.c.h.b16 %v1394
        %v1661 = vunpack.c.l.b16 %v1395
        %v1662 = vunpack.c.h.b16 %v1395
        %v1663 = vunpack.c.l.b16 %v1396
        %v1664 = vunpack.c.h.b16 %v1396
        %v1665 = vunpack.c.l.b16 %v1397
        %v1666 = vunpack.c.h.b16 %v1397
        %v1667 = vunpack.c.l.b16 %v1398
        %v1668 = vunpack.c.h.b16 %v1398
        %v1669 = vunpack.c.l.b16 %v1399
        %v1670 = vunpack.c.h.b16 %v1399
        %v1671 = vunpack.c.l.b16 %v1400
        %v1672 = vunpack.c.h.b16 %v1400
        %v1673 = vunpack.c.l.b16 %v1401
        %v1674 = vunpack.c.h.b16 %v1401
        %v1675 = vunpack.c.l.b16 %v1402
        %v1676 = vunpack.c.h.b16 %v1402
        %v1677 = vunpack.c.l.b16 %v1403
        %v1678 = vunpack.c.h.b16 %v1403
        %v1679 = vunpack.c.l.b16 %v1404
        %v1680 = vunpack.c.h.b16 %v1404
        %v1681 = vunpack.c.l.b16 %v1405
        %v1682 = vunpack.c.h.b16 %v1405
        %v1683 = vunpack.c.l.b16 %v1406
        %v1684 = vunpack.c.h.b16 %v1406
        %v1685 = vunpack.c.l.b16 %v1407
        %v1686 = vunpack.c.h.b16 %v1407
        %v1687 = vunpack.c.l.b16 %v1408
        %v1688 = vunpack.c.h.b16 %v1408
        %v1689 = vunpack.c.l.b16 %v1409
        %v1690 = vunpack.c.h.b16 %v1409
        %v1691 = vunpack.c.l.b16 %v1410
        %v1692 = vunpack.c.h.b16 %v1410
        %v1693 = vunpack.c.l.b16 %v1411
        %v1694 = vunpack.c.h.b16 %v1411
        %v1695 = vunpack.c.l.b16 %v1412
        %v1696 = vunpack.c.h.b16 %v1412
        %v1697 = vunpack.c.l.b16 %v1413
        %v1698 = vunpack.c.h.b16 %v1413
        %v1699 = vunpack.c.l.b16 %v1414
        %v1700 = vunpack.c.h.b16 %v1414
        %v1701 = vunpack.c.l.b16 %v1415
        %v1702 = vunpack.c.h.b16 %v1415
        %v1703 = vunpack.c.l.b16 %v1416
        %v1704 = vunpack.c.h.b16 %v1416
        %v1705 = vunpack.c.l.b16 %v1417
        %v1706 = vunpack.c.h.b16 %v1417
        %v1707 = vunpack.c.l.b16 %v1418
        %v1708 = vunpack.c.h.b16 %v1418
        %v1709 = vunpack.c.l.b16 %v1419
        %v1710 = vunpack.c.h.b16 %v1419
        %v1711 = vunpack.c.l.b16 %v1420
        %v1712 = vunpack.c.h.b16 %v1420
        %v1713 = vunpack.c.l.b16 %v1421
        %v1714 = vunpack.c.h.b16 %v1421
        %v1715 = vunpack.c.l.b16 %v1422
        %v1716 = vunpack.c.h.b16 %v1422
        %v1717 = vunpack.c.l.b16 %v1423
        %v1718 = vunpack.c.h.b16 %v1423
        %v1719 = vunpack.c.l.b16 %v1424
        %v1720 = vunpack.c.h.b16 %v1424
        %v1721 = vunpack.c.l.b16 %v1425
        %v1722 = vunpack.c.h.b16 %v1425
        %v1723 = vunpack.c.l.b16 %v1426
        %v1724 = vunpack.c.h.b16 %v1426
        %v1725 = vunpack.c.l.b16 %v1427
        %v1726 = vunpack.c.h.b16 %v1427
        %v1727 = vunpack.c.l.b16 %v1428
        %v1728 = vunpack.c.h.b16 %v1428
        %v1729 = vunpack.c.l.b16 %v1429
        %v1730 = vunpack.c.h.b16 %v1429
        %v1731 = vunpack.c.l.b16 %v1430
        %v1732 = vunpack.c.h.b16 %v1430
        %v1733 = vunpack.c.l.b16 %v1431
        %v1734 = vunpack.c.h.b16 %v1431
        %v1735 = vunpack.c.l.b16 %v1432
        %v1736 = vunpack.c.h.b16 %v1432
        %v1737 = vunpack.c.l.b16 %v1433
        %v1738 = vunpack.c.h.b16 %v1433
        %v1739 = vunpack.c.l.b16 %v1434
        %v1740 = vunpack.c.h.b16 %v1434
        %v1741 = vunpack.c.l.b16 %v1435
        %v1742 = vunpack.c.h.b16 %v1435
        %v1743 = vunpack.c.l.b16 %v1436
        %v1744 = vunpack.c.h.b16 %v1436
        %v1745 = vunpack.c.l.b16 %v1437
        %v1746 = vunpack.c.h.b16 %v1437
        %v1747 = vunpack.c.l.b16 %v1438
        %v1748 = vunpack.c.h.b16 %v1438
        %v1749 = vunpack.c.l.b16 %v1439
        %v1750 = vunpack.c.h.b16 %v1439
        %v1751 = vunpack.c.l.b16 %v1440
        %v1752 = vunpack.c.h.b16 %v1440
        %v1753 = vunpack.c.l.b16 %v1441
        %v1754 = vunpack.c.h.b16 %v1441
        %v1755 = vunpack.c.l.b16 %v1442
        %v1756 = vunpack.c.h.b16 %v1442
        %v1757 = vunpack.c.l.b16 %v1443
        %v1758 = vunpack.c.h.b16 %v1443
        %v1759 = vunpack.c.l.b16 %v1444
        %v1760 = vunpack.c.h.b16 %v1444
        %v1761 = vunpack.c.l.b16 %v1445
        %v1762 = vunpack.c.h.b16 %v1445
        %v1763 = vunpack.c.l.b16 %v1446
        %v1764 = vunpack.c.h.b16 %v1446
        %v1765 = vunpack.c.l.b16 %v1447
        %v1766 = vunpack.c.h.b16 %v1447
        %v1767 = vunpack.c.l.b16 %v1448
        %v1768 = vunpack.c.h.b16 %v1448
        %v1769 = vunpack.c.l.b16 %v1449
        %v1770 = vunpack.c.h.b16 %v1449
        %v1771 = vunpack.c.l.b16 %v1450
        %v1772 = vunpack.c.h.b16 %v1450
        %v1773 = vunpack.c.l.b16 %v1451
        %v1774 = vunpack.c.h.b16 %v1451
        %v1775 = vunpack.c.l.b16 %v1452
        %v1776 = vunpack.c.h.b16 %v1452
        %v1777 = vunpack.c.l.b16 %v1453
        %v1778 = vunpack.c.h.b16 %v1453
        %v1779 = vunpack.c.l.b16 %v1454
        %v1780 = vunpack.c.h.b16 %v1454
        %v1781 = vunpack.c.l.b16 %v1455
        %v1782 = vunpack.c.h.b16 %v1455
        %v1783 = vunpack.c.l.b16 %v1456
        %v1784 = vunpack.c.h.b16 %v1456
        %v1785 = vunpack.c.l.b16 %v1457
        %v1786 = vunpack.c.h.b16 %v1457
        %v1787 = vunpack.c.l.b16 %v1458
        %v1788 = vunpack.c.h.b16 %v1458
        %v1789 = vunpack.c.l.b16 %v1459
        %v1790 = vunpack.c.h.b16 %v1459
        %v1791 = vunpack.c.l.b16 %v1460
        %v1792 = vunpack.c.h.b16 %v1460
        %v1793 = vunpack.c.l.b16 %v1461
        %v1794 = vunpack.c.h.b16 %v1461
        %v1795 = vunpack.c.l.b16 %v1462
        %v1796 = vunpack.c.h.b16 %v1462
        %v1797 = vunpack.c.l.b16 %v1463
        %v1798 = vunpack.c.h.b16 %v1463
        %v1799 = vunpack.c.l.b16 %v1464
        %v1800 = vunpack.c.h.b16 %v1464
        %v1801 = vunpack.c.l.b16 %v1465
        %v1802 = vunpack.c.h.b16 %v1465
        %v1803 = vunpack.c.l.b16 %v1466
        %v1804 = vunpack.c.h.b16 %v1466
        %v1805 = vunpack.c.l.b16 %v1467
        %v1806 = vunpack.c.h.b16 %v1467
        %v1807 = vunpack.c.l.b16 %v1468
        %v1808 = vunpack.c.h.b16 %v1468
        %v1809 = vunpack.c.l.b16 %v1469
        %v1810 = vunpack.c.h.b16 %v1469
        %v1811 = vunpack.c.l.b16 %v1470
        %v1812 = vunpack.c.h.b16 %v1470
        %v1813 = vunpack.c.l.b16 %v1471
        %v1814 = vunpack.c.h.b16 %v1471
        %v1815 = vunpack.c.l.b16 %v1472
        %v1816 = vunpack.c.h.b16 %v1472
        %v1817 = vunpack.c.l.b16 %v1473
        %v1818 = vunpack.c.h.b16 %v1473
        %v1819 = vunpack.c.l.b16 %v1474
        %v1820 = vunpack.c.h.b16 %v1474
        %v1821 = vunpack.c.l.b16 %v1475
        %v1822 = vunpack.c.h.b16 %v1475
        %v1823 = vunpack.c.l.b16 %v1476
        %v1824 = vunpack.c.h.b16 %v1476
        %v1825 = vunpack.c.l.b16 %v1477
        %v1826 = vunpack.c.h.b16 %v1477
        %v1827 = vunpack.c.l.b16 %v1478
        %v1828 = vunpack.c.h.b16 %v1478
        %v1829 = vunpack.c.l.b16 %v1479
        %v1830 = vunpack.c.h.b16 %v1479
        %v1831 = vunpack.c.l.b16 %v1480
        %v1832 = vunpack.c.h.b16 %v1480
        %v1833 = vunpack.c.l.b16 %v1481
        %v1834 = vunpack.c.h.b16 %v1481
        %v1835 = vunpack.c.l.b16 %v1482
        %v1836 = vunpack.c.h.b16 %v1482
        %v1837 = vunpack.c.l.b16 %v1483
        %v1838 = vunpack.c.h.b16 %v1483
        %v1839 = vunpack.c.l.b16 %v1484
        %v1840 = vunpack.c.h.b16 %v1484
        %v1841 = vunpack.c.l.b16 %v1485
        %v1842 = vunpack.c.h.b16 %v1485
        %v1843 = vunpack.c.l.b16 %v1486
        %v1844 = vunpack.c.h.b16 %v1486
        %v1845 = vunpack.c.l.b16 %v1487
        %v1846 = vunpack.c.h.b16 %v1487
        %v1847 = vunpack.c.l.b16 %v1488
        %v1848 = vunpack.c.h.b16 %v1488
        %v1849 = vunpack.c.l.b16 %v1489
        %v1850 = vunpack.c.h.b16 %v1489
        %v1851 = vunpack.c.l.b16 %v1490
        %v1852 = vunpack.c.h.b16 %v1490
        %v1853 = vunpack.c.l.b16 %v1491
        %v1854 = vunpack.c.h.b16 %v1491
        %v1855 = vunpack.c.l.b16 %v1492
        %v1856 = vunpack.c.h.b16 %v1492
        %v1857 = vunpack.c.l.b16 %v1493
        %v1858 = vunpack.c.h.b16 %v1493
        %v1859 = vunpack.c.l.b16 %v1494
        %v1860 = vunpack.c.h.b16 %v1494
        %v1861 = vunpack.c.l.b16 %v1495
        %v1862 = vunpack.c.h.b16 %v1495
        %v1863 = vunpack.c.l.b16 %v1496
        %v1864 = vunpack.c.h.b16 %v1496
        %v1865 = vunpack.c.l.b16 %v1497
        %v1866 = vunpack.c.h.b16 %v1497
        %v1867 = vunpack.c.l.b16 %v1498
        %v1868 = vunpack.c.h.b16 %v1498
        %v1869 = vunpack.c.l.b16 %v1499
        %v1870 = vunpack.c.h.b16 %v1499
        %v1871 = vunpack.c.l.b16 %v1500
        %v1872 = vunpack.c.h.b16 %v1500
        %v1873 = vunpack.c.l.b16 %v1501
        %v1874 = vunpack.c.h.b16 %v1501
        %v1875 = vunpack.c.l.b16 %v1502
        %v1876 = vunpack.c.h.b16 %v1502
        %v1877 = vunpack.c.l.b16 %v1503
        %v1878 = vunpack.c.h.b16 %v1503
        %v1879 = vunpack.c.l.b16 %v1504
        %v1880 = vunpack.c.h.b16 %v1504
        %v1881 = vunpack.c.l.b16 %v1505
        %v1882 = vunpack.c.h.b16 %v1505
        %v1883 = vunpack.c.l.b16 %v1506
        %v1884 = vunpack.c.h.b16 %v1506
        %v1885 = vunpack.c.l.b16 %v1507
        %v1886 = vunpack.c.h.b16 %v1507
        %v1887 = vunpack.c.l.b16 %v1508
        %v1888 = vunpack.c.h.b16 %v1508
        %v1889 = vunpack.c.l.b16 %v1509
        %v1890 = vunpack.c.h.b16 %v1509
        %v1891 = vunpack.c.l.b16 %v1510
        %v1892 = vunpack.c.h.b16 %v1510
        %v1893 = vunpack.c.l.b16 %v1511
        %v1894 = vunpack.c.h.b16 %v1511
        %v1895 = vunpack.c.l.b16 %v1512
        %v1896 = vunpack.c.h.b16 %v1512
        %v1897 = vunpack.c.l.b16 %v1513
        %v1898 = vunpack.c.h.b16 %v1513
        %v1899 = vunpack.c.l.b16 %v1514
        %v1900 = vunpack.c.h.b16 %v1514
        %v1901 = vunpack.c.l.b16 %v1515
        %v1902 = vunpack.c.h.b16 %v1515
        %v1903 = vunpack.c.l.b16 %v1516
        %v1904 = vunpack.c.h.b16 %v1516
        %v1905 = vunpack.c.l.b16 %v1517
        %v1906 = vunpack.c.h.b16 %v1517
        %v1907 = vunpack.c.l.b16 %v1518
        %v1908 = vunpack.c.h.b16 %v1518
        %v1909 = vpack.c.b16 %v1655, %v1653
        %v1910 = vpack.c.b16 %v1656, %v1654
        %v1911 = vpack.c.b16 %v1659, %v1657
        %v1912 = vpack.c.b16 %v1660, %v1658
        %v1913 = vpack.c.b16 %v1663, %v1661
        %v1914 = vpack.c.b16 %v1664, %v1662
        %v1915 = vpack.c.b16 %v1667, %v1665
        %v1916 = vpack.c.b16 %v1668, %v1666
        %v1917 = vpack.c.b16 %v1671, %v1669
        %v1918 = vpack.c.b16 %v1672, %v1670
        %v1919 = vpack.c.b16 %v1675, %v1673
        %v1920 = vpack.c.b16 %v1676, %v1674
        %v1921 = vpack.c.b16 %v1679, %v1677
        %v1922 = vpack.c.b16 %v1680, %v1678
        %v1923 = vpack.c.b16 %v1683, %v1681
        %v1924 = vpack.c.b16 %v1684, %v1682
        %v1925 = vpack.c.b16 %v1687, %v1685
        %v1926 = vpack.c.b16 %v1688, %v1686
        %v1927 = vpack.c.b16 %v1691, %v1689
        %v1928 = vpack.c.b16 %v1692, %v1690
        %v1929 = vpack.c.b16 %v1695, %v1693
        %v1930 = vpack.c.b16 %v1696, %v1694
        %v1931 = vpack.c.b16 %v1699, %v1697
        %v1932 = vpack.c.b16 %v1700, %v1698
        %v1933 = vpack.c.b16 %v1703, %v1701
        %v1934 = vpack.c.b16 %v1704, %v1702
        %v1935 = vpack.c.b16 %v1707, %v1705
        %v1936 = vpack.c.b16 %v1708, %v1706
        %v1937 = vpack.c.b16 %v1711, %v1709
        %v1938 = vpack.c.b16 %v1712, %v1710
        %v1939 = vpack.c.b16 %v1715, %v1713
        %v1940 = vpack.c.b16 %v1716, %v1714
        %v1941 = vpack.c.b16 %v1719, %v1717
        %v1942 = vpack.c.b16 %v1720, %v1718
        %v1943 = vpack.c.b16 %v1723, %v1721
        %v1944 = vpack.c.b16 %v1724, %v1722
        %v1945 = vpack.c.b16 %v1727, %v1725
        %v1946 = vpack.c.b16 %v1728, %v1726
        %v1947 = vpack.c.b16 %v1731, %v1729
        %v1948 = vpack.c.b16 %v1732, %v1730
        %v1949 = vpack.c.b16 %v1735, %v1733
        %v1950 = vpack.c.b16 %v1736, %v1734
        %v1951 = vpack.c.b16 %v1739, %v1737
        %v1952 = vpack.c.b16 %v1740, %v1738
        %v1953 = vpack.c.b16 %v1743, %v1741
        %v1954 = vpack.c.b16 %v1744, %v1742
        %v1955 = vpack.c.b16 %v1747, %v1745
        %v1956 = vpack.c.b16 %v1748, %v1746
        %v1957 = vpack.c.b16 %v1751, %v1749
        %v1958 = vpack.c.b16 %v1752, %v1750
        %v1959 = vpack.c.b16 %v1755, %v1753
        %v1960 = vpack.c.b16 %v1756, %v1754
        %v1961 = vpack.c.b16 %v1759, %v1757
        %v1962 = vpack.c.b16 %v1760, %v1758
        %v1963 = vpack.c.b16 %v1763, %v1761
        %v1964 = vpack.c.b16 %v1764, %v1762
        %v1965 = vpack.c.b16 %v1767, %v1765
        %v1966 = vpack.c.b16 %v1768, %v1766
        %v1967 = vpack.c.b16 %v1771, %v1769
        %v1968 = vpack.c.b16 %v1772, %v1770
        %v1969 = vpack.c.b16 %v1775, %v1773
        %v1970 = vpack.c.b16 %v1776, %v1774
        %v1971 = vpack.c.b16 %v1779, %v1777
        %v1972 = vpack.c.b16 %v1780, %v1778
        %v1973 = vpack.c.b16 %v1783, %v1781
        %v1974 = vpack.c.b16 %v1784, %v1782
        %v1975 = vpack.c.b16 %v1787, %v1785
        %v1976 = vpack.c.b16 %v1788, %v1786
        %v1977 = vpack.c.b16 %v1791, %v1789
        %v1978 = vpack.c.b16 %v1792, %v1790
        %v1979 = vpack.c.b16 %v1795, %v1793
        %v1980 = vpack.c.b16 %v1796, %v1794
        %v1981 = vpack.c.b16 %v1799, %v1797
        %v1982 = vpack.c.b16 %v1800, %v1798
        %v1983 = vpack.c.b16 %v1803, %v1801
        %v1984 = vpack.c.b16 %v1804, %v1802
        %v1985 = vpack.c.b16 %v1807, %v1805
        %v1986 = vpack.c.b16 %v1808, %v1806
        %v1987 = vpack.c.b16 %v1811, %v1809
        %v1988 = vpack.c.b16 %v1812, %v1810
        %v1989 = vpack.c.b16 %v1815, %v1813
        %v1990 = vpack.c.b16 %v1816, %v1814
        %v1991 = vpack.c.b16 %v1819, %v1817
        %v1992 = vpack.c.b16 %v1820, %v1818
        %v1993 = vpack.c.b16 %v1823, %v1821
        %v1994 = vpack.c.b16 %v1824, %v1822
        %v1995 = vpack.c.b16 %v1827, %v1825
        %v1996 = vpack.c.b16 %v1828, %v1826
        %v1997 = vpack.c.b16 %v1831, %v1829
        %v1998 = vpack.c.b16 %v1832, %v1830
        %v1999 = vpack.c.b16 %v1835, %v1833
        %v2000 = vpack.c.b16 %v1836, %v1834
        %v2001 = vpack.c.b16 %v1839, %v1837
        %v2002 = vpack.c.b16 %v1840, %v1838
        %v2003 = vpack.c.b16 %v1843, %v1841
        %v2004 = vpack.c.b16 %v1844, %v1842
        %v2005 = vpack.c.b16 %v1847, %v1845
        %v2006 = vpack.c.b16 %v1848, %v1846
        %v2007 = vpack.c.b16 %v1851, %v1849
        %v2008 = vpack.c.b16 %v1852, %v1850
        %v2009 = vpack.c.b16 %v1855, %v1853
        %v2010 = vpack.c.b16 %v1856, %v1854
        %v2011 = vpack.c.b16 %v1859, %v1857
        %v2012 = vpack.c.b16 %v1860, %v1858
        %v2013 = vpack.c.b16 %v1863, %v1861
        %v2014 = vpack.c.b16 %v1864, %v1862
        %v2015 = vpack.c.b16 %v1867, %v1865
        %v2016 = vpack.c.b16 %v1868, %v1866
        %v2017 = vpack.c.b16 %v1871, %v1869
        %v2018 = vpack.c.b16 %v1872, %v1870
        %v2019 = vpack.c.b16 %v1875, %v1873
        %v2020 = vpack.c.b16 %v1876, %v1874
        %v2021 = vpack.c.b16 %v1879, %v1877
        %v2022 = vpack.c.b16 %v1880, %v1878
        %v2023 = vpack.c.b16 %v1883, %v1881
        %v2024 = vpack.c.b16 %v1884, %v1882
        %v2025 = vpack.c.b16 %v1887, %v1885
        %v2026 = vpack.c.b16 %v1888, %v1886
        %v2027 = vpack.c.b16 %v1891, %v1889
        %v2028 = vpack.c.b16 %v1892, %v1890
        %v2029 = vpack.c.b16 %v1895, %v1893
        %v2030 = vpack.c.b16 %v1896, %v1894
        %v2031 = vpack.c.b16 %v1899, %v1897
        %v2032 = vpack.c.b16 %v1900, %v1898
        %v2033 = vpack.c.b16 %v1903, %v1901
        %v2034 = vpack.c.b16 %v1904, %v1902
        %v2035 = vpack.c.b16 %v1907, %v1905
        %v2036 = vpack.c.b16 %v1908, %v1906
        %2165 = vmatpush.bf16.msra.mxu0 %v1923
        %2166 = vmatpush.bf16.msra.mxu0 %v1921
        %2167 = vmatpush.bf16.msra.mxu0 %v1919
        %2168 = vmatpush.bf16.msra.mxu0 %v1917
        %2169 = vmatpush.bf16.msra.mxu0 %v1915
        %2170 = vmatpush.bf16.msra.mxu0 %v1913
        %2171 = vmatpush.bf16.msra.mxu0 %v1911
        %2172 = vmatpush.bf16.msra.mxu0 %v1909
        %2173 = vmatmul.bf16.gmra.mxu0 %v1383
        %v2174 = vpop.f32.mrf.mxu0
        %v2175 = vadd.f32 %v1521, %v2174
        %v2176 = vpop.f32.mrf.mxu0
        %2177 = vdwg.mxu0
        %2178 = vmatpush.bf16.msra.mxu0 %v1939
        %2179 = vmatpush.bf16.msra.mxu0 %v1937
        %2180 = vmatpush.bf16.msra.mxu0 %v1935
        %2181 = vmatpush.bf16.msra.mxu0 %v1933
        %2182 = vmatpush.bf16.msra.mxu0 %v1931
        %2183 = vmatpush.bf16.msra.mxu0 %v1929
        %2184 = vmatpush.bf16.msra.mxu0 %v1927
        %2185 = vmatpush.bf16.msra.mxu0 %v1925
        %2186 = vmatmul.bf16.gmra.mxu0 %v1384
        %v2187 = vpop.f32.mrf.mxu0
        %v2188 = vadd.f32 %v2175, %v2187
        %v2189 = vpop.f32.mrf.mxu0
        %2190 = vdwg.mxu0
        %2191 = vmatpush.bf16.msra.mxu0 %v1955
        %2192 = vmatpush.bf16.msra.mxu0 %v1953
        %2193 = vmatpush.bf16.msra.mxu0 %v1951
        %2194 = vmatpush.bf16.msra.mxu0 %v1949
        %2195 = vmatpush.bf16.msra.mxu0 %v1947
        %2196 = vmatpush.bf16.msra.mxu0 %v1945
        %2197 = vmatpush.bf16.msra.mxu0 %v1943
        %2198 = vmatpush.bf16.msra.mxu0 %v1941
        %2199 = vmatmul.bf16.gmra.mxu0 %v1385
        %v2200 = vpop.f32.mrf.mxu0
        %v2201 = vadd.f32 %v2188, %v2200
        %v2202 = vpop.f32.mrf.mxu0
        %2203 = vdwg.mxu0
        %2204 = vmatpush.bf16.msra.mxu0 %v1971
        %2205 = vmatpush.bf16.msra.mxu0 %v1969
        %2206 = vmatpush.bf16.msra.mxu0 %v1967
        %2207 = vmatpush.bf16.msra.mxu0 %v1965
        %2208 = vmatpush.bf16.msra.mxu0 %v1963
        %2209 = vmatpush.bf16.msra.mxu0 %v1961
        %2210 = vmatpush.bf16.msra.mxu0 %v1959
        %2211 = vmatpush.bf16.msra.mxu0 %v1957
        %2212 = vmatmul.bf16.gmra.mxu0 %v1386
        %v2213 = vpop.f32.mrf.mxu0
        %v2214 = vadd.f32 %v2201, %v2213
        %v2215 = vpop.f32.mrf.mxu0
        %2216 = vdwg.mxu0
        %2217 = vmatpush.bf16.msra.mxu0 %v1987
        %2218 = vmatpush.bf16.msra.mxu0 %v1985
        %2219 = vmatpush.bf16.msra.mxu0 %v1983
        %2220 = vmatpush.bf16.msra.mxu0 %v1981
        %2221 = vmatpush.bf16.msra.mxu0 %v1979
        %2222 = vmatpush.bf16.msra.mxu0 %v1977
        %2223 = vmatpush.bf16.msra.mxu0 %v1975
        %2224 = vmatpush.bf16.msra.mxu0 %v1973
        %2225 = vmatmul.bf16.gmra.mxu0 %v1387
        %v2226 = vpop.f32.mrf.mxu0
        %v2227 = vadd.f32 %v2214, %v2226
        %v2228 = vpop.f32.mrf.mxu0
        %2229 = vdwg.mxu0
        %2230 = vmatpush.bf16.msra.mxu0 %v2003
        %2231 = vmatpush.bf16.msra.mxu0 %v2001
        %2232 = vmatpush.bf16.msra.mxu0 %v1999
        %2233 = vmatpush.bf16.msra.mxu0 %v1997
        %2234 = vmatpush.bf16.msra.mxu0 %v1995
        %2235 = vmatpush.bf16.msra.mxu0 %v1993
        %2236 = vmatpush.bf16.msra.mxu0 %v1991
        %2237 = vmatpush.bf16.msra.mxu0 %v1989
        %2238 = vmatmul.bf16.gmra.mxu0 %v1388
        %v2239 = vpop.f32.mrf.mxu0
        %v2240 = vadd.f32 %v2227, %v2239
        %v2241 = vpop.f32.mrf.mxu0
        %2242 = vdwg.mxu0
        %2243 = vmatpush.bf16.msra.mxu0 %v2019
        %2244 = vmatpush.bf16.msra.mxu0 %v2017
        %2245 = vmatpush.bf16.msra.mxu0 %v2015
        %2246 = vmatpush.bf16.msra.mxu0 %v2013
        %2247 = vmatpush.bf16.msra.mxu0 %v2011
        %2248 = vmatpush.bf16.msra.mxu0 %v2009
        %2249 = vmatpush.bf16.msra.mxu0 %v2007
        %2250 = vmatpush.bf16.msra.mxu0 %v2005
        %2251 = vmatmul.bf16.gmra.mxu0 %v1389
        %v2252 = vpop.f32.mrf.mxu0
        %v2253 = vadd.f32 %v2240, %v2252
        %v2254 = vpop.f32.mrf.mxu0
        %2255 = vdwg.mxu0
        %2256 = vmatpush.bf16.msra.mxu0 %v2035
        %2257 = vmatpush.bf16.msra.mxu0 %v2033
        %2258 = vmatpush.bf16.msra.mxu0 %v2031
        %2259 = vmatpush.bf16.msra.mxu0 %v2029
        %2260 = vmatpush.bf16.msra.mxu0 %v2027
        %2261 = vmatpush.bf16.msra.mxu0 %v2025
        %2262 = vmatpush.bf16.msra.mxu0 %v2023
        %2263 = vmatpush.bf16.msra.mxu0 %v2021
        %2264 = vmatmul.bf16.gmra.mxu0 %v1390
        %v2265 = vpop.f32.mrf.mxu0
        %v2266 = vadd.f32 %v2253, %v2265
        %v2267 = vpop.f32.mrf.mxu0
        %2268 = vdwg.mxu0
        %2269 = vmatpush.bf16.msra.mxu0 %v1924
        %2270 = vmatpush.bf16.msra.mxu0 %v1922
        %2271 = vmatpush.bf16.msra.mxu0 %v1920
        %2272 = vmatpush.bf16.msra.mxu0 %v1918
        %2273 = vmatpush.bf16.msra.mxu0 %v1916
        %2274 = vmatpush.bf16.msra.mxu0 %v1914
        %2275 = vmatpush.bf16.msra.mxu0 %v1912
        %2276 = vmatpush.bf16.msra.mxu0 %v1910
        %2277 = vmatmul.bf16.gmra.mxu0 %v1383
        %v2278 = vpop.f32.mrf.mxu0
        %v2279 = vadd.f32 %v1522, %v2278
        %v2280 = vpop.f32.mrf.mxu0
        %2281 = vdwg.mxu0
        %2282 = vmatpush.bf16.msra.mxu0 %v1940
        %2283 = vmatpush.bf16.msra.mxu0 %v1938
        %2284 = vmatpush.bf16.msra.mxu0 %v1936
        %2285 = vmatpush.bf16.msra.mxu0 %v1934
        %2286 = vmatpush.bf16.msra.mxu0 %v1932
        %2287 = vmatpush.bf16.msra.mxu0 %v1930
        %2288 = vmatpush.bf16.msra.mxu0 %v1928
        %2289 = vmatpush.bf16.msra.mxu0 %v1926
        %2290 = vmatmul.bf16.gmra.mxu0 %v1384
        %v2291 = vpop.f32.mrf.mxu0
        %v2292 = vadd.f32 %v2279, %v2291
        %v2293 = vpop.f32.mrf.mxu0
        %2294 = vdwg.mxu0
        %2295 = vmatpush.bf16.msra.mxu0 %v1956
        %2296 = vmatpush.bf16.msra.mxu0 %v1954
        %2297 = vmatpush.bf16.msra.mxu0 %v1952
        %2298 = vmatpush.bf16.msra.mxu0 %v1950
        %2299 = vmatpush.bf16.msra.mxu0 %v1948
        %2300 = vmatpush.bf16.msra.mxu0 %v1946
        %2301 = vmatpush.bf16.msra.mxu0 %v1944
        %2302 = vmatpush.bf16.msra.mxu0 %v1942
        %2303 = vmatmul.bf16.gmra.mxu0 %v1385
        %v2304 = vpop.f32.mrf.mxu0
        %v2305 = vadd.f32 %v2292, %v2304
        %v2306 = vpop.f32.mrf.mxu0
        %2307 = vdwg.mxu0
        %2308 = vmatpush.bf16.msra.mxu0 %v1972
        %2309 = vmatpush.bf16.msra.mxu0 %v1970
        %2310 = vmatpush.bf16.msra.mxu0 %v1968
        %2311 = vmatpush.bf16.msra.mxu0 %v1966
        %2312 = vmatpush.bf16.msra.mxu0 %v1964
        %2313 = vmatpush.bf16.msra.mxu0 %v1962
        %2314 = vmatpush.bf16.msra.mxu0 %v1960
        %2315 = vmatpush.bf16.msra.mxu0 %v1958
        %2316 = vmatmul.bf16.gmra.mxu0 %v1386
        %v2317 = vpop.f32.mrf.mxu0
        %v2318 = vadd.f32 %v2305, %v2317
        %v2319 = vpop.f32.mrf.mxu0
        %2320 = vdwg.mxu0
        %2321 = vmatpush.bf16.msra.mxu0 %v1988
        %2322 = vmatpush.bf16.msra.mxu0 %v1986
        %2323 = vmatpush.bf16.msra.mxu0 %v1984
        %2324 = vmatpush.bf16.msra.mxu0 %v1982
        %2325 = vmatpush.bf16.msra.mxu0 %v1980
        %2326 = vmatpush.bf16.msra.mxu0 %v1978
        %2327 = vmatpush.bf16.msra.mxu0 %v1976
        %2328 = vmatpush.bf16.msra.mxu0 %v1974
        %2329 = vmatmul.bf16.gmra.mxu0 %v1387
        %v2330 = vpop.f32.mrf.mxu0
        %v2331 = vadd.f32 %v2318, %v2330
        %v2332 = vpop.f32.mrf.mxu0
        %2333 = vdwg.mxu0
        %2334 = vmatpush.bf16.msra.mxu0 %v2004
        %2335 = vmatpush.bf16.msra.mxu0 %v2002
        %2336 = vmatpush.bf16.msra.mxu0 %v2000
        %2337 = vmatpush.bf16.msra.mxu0 %v1998
        %2338 = vmatpush.bf16.msra.mxu0 %v1996
        %2339 = vmatpush.bf16.msra.mxu0 %v1994
        %2340 = vmatpush.bf16.msra.mxu0 %v1992
        %2341 = vmatpush.bf16.msra.mxu0 %v1990
        %2342 = vmatmul.bf16.gmra.mxu0 %v1388
        %v2343 = vpop.f32.mrf.mxu0
        %v2344 = vadd.f32 %v2331, %v2343
        %v2345 = vpop.f32.mrf.mxu0
        %2346 = vdwg.mxu0
        %2347 = vmatpush.bf16.msra.mxu0 %v2020
        %2348 = vmatpush.bf16.msra.mxu0 %v2018
        %2349 = vmatpush.bf16.msra.mxu0 %v2016
        %2350 = vmatpush.bf16.msra.mxu0 %v2014
        %2351 = vmatpush.bf16.msra.mxu0 %v2012
        %2352 = vmatpush.bf16.msra.mxu0 %v2010
        %2353 = vmatpush.bf16.msra.mxu0 %v2008
        %2354 = vmatpush.bf16.msra.mxu0 %v2006
        %2355 = vmatmul.bf16.gmra.mxu0 %v1389
        %v2356 = vpop.f32.mrf.mxu0
        %v2357 = vadd.f32 %v2344, %v2356
        %v2358 = vpop.f32.mrf.mxu0
        %2359 = vdwg.mxu0
        %2360 = vmatpush.bf16.msra.mxu0 %v2036
        %2361 = vmatpush.bf16.msra.mxu0 %v2034
        %2362 = vmatpush.bf16.msra.mxu0 %v2032
        %2363 = vmatpush.bf16.msra.mxu0 %v2030
        %2364 = vmatpush.bf16.msra.mxu0 %v2028
        %2365 = vmatpush.bf16.msra.mxu0 %v2026
        %2366 = vmatpush.bf16.msra.mxu0 %v2024
        %2367 = vmatpush.bf16.msra.mxu0 %v2022
        %2368 = vmatmul.bf16.gmra.mxu0 %v1390
        %v2369 = vpop.f32.mrf.mxu0
        %v2370 = vadd.f32 %v2357, %v2369
        %v2371 = vpop.f32.mrf.mxu0
        %2372 = vdwg.mxu0
        %v2373 = vadd.f32 %v2266, %v313
        %v2374 = vadd.f32 %v2370, %v314
        %v2375 = vld [vmem:[%s5] sm:$0x3]
        %v2376 = vld [vmem:[%s6] sm:$0x3]
        %v2377 = vadd.f32 %v2373, %v2374
        %2378 = vadd.xlane.f32.xlu0 %v2377
        %v2379 = vpop.xlane.xlu0 %2378
        %v2380 = vrcp.pop 256.0
        %v2381 = vmul.f32 256.0, %v2380
        %v2382 = vsub.f32 1.0, %v2381
        %v2383 = vmul.f32 %v2380, %v2382
        %v2384 = vadd.f32 %v2380, %v2383
        %vm2385 = vweird.f32 %v2380
        %v2386 = vsel %vm2385, %v2380, %v2384
        %v2387 = vmul.f32 %v2379, %v2386
        %v2388 = vsub.f32 %v2373, %v2387
        %v2389 = vsub.f32 %v2374, %v2387
        %v2390 = vmul.f32 %v2388, %v2388
        %v2391 = vmul.f32 %v2389, %v2389
        %v2392 = vadd.f32 %v2390, %v2391
        %2393 = vadd.xlane.f32.xlu0 %v2392
        %v2394 = vpop.xlane.xlu0 %2393
        %v2395 = vmul.f32 %v2394, %v2386
        %v2396 = vadd.f32 %v2395, 1e-12
        %v2397 = vrsqrt.pop %v2396
        %v2398 = vmul.f32 %v2397, %v2396
        %v2399 = vmul.f32 %v2398, %v2397
        %v2400 = vmul.f32 0.5, %v2399
        %v2401 = vsub.f32 1.5, %v2400
        %v2402 = vmul.f32 %v2397, %v2401
        %vm2403 = vweird.f32 %v2396
        %vm2404 = vweird.f32 %v2397
        %vm2405 = vmor %vm2403, %vm2404
        %v2406 = vsel %vm2405, %v2397, %v2402
        %v2407 = vmul.f32 %v2388, %v2406
        %v2408 = vmul.f32 %v2389, %v2406
        %v2410 = vperm.slane %v2375, 0
        %v2411 = vperm.slane %v2375, 1
        %v2414 = vmul.f32 %v2407, %v2410
        %v2415 = vmul.f32 %v2408, %v2411
        %v2417 = vperm.slane %v2376, 0
        %v2418 = vperm.slane %v2376, 1
        %v2421 = vadd.f32 %v2414, %v2417
        %v2422 = vadd.f32 %v2415, %v2418
        %2423 = vst [vmem:[%s312] sm:$0xff] %v2421
        %2424 = vst [vmem:[%s312 + $0x8] sm:$0xff] %v2422
        %p2425 = scmp.lt.s32.totalorder %s20, 1
        %s2426 = scalar_select %p2425, %s20, 1
        %s2427 = smul.addr %s2426, 2
        %s2428 = smul.addr %s2427, 8
        %s2429 = scalar_lea.vmem %s7, %s2428
        // Predicated region
        $region57: #{deep_flatten_forward.7} parent=47 // pred_check
          %p2430 = pneg %p190
        $region58: #{deep_flatten_forward.7} parent=47 // pred_check_branch
          %2432 = sbr.rel (%p2430) target = $region60
        $region59: #{deep_flatten_forward.7} parent=47 // pred_region
          _
        $region60: #{deep_flatten_forward.7} parent=47 // pred_fallthru
          _
      $region48: #{deep_flatten_forward.7} parent=5 // pred_fallthru
        _
      %p2433 = scmp.le.s32.totalorder 2, %s15
      // Predicated region
      $region61: #{deep_flatten_forward.7} parent=5 // pred_check
        %p2434 = pneg %p2433
      $region62: #{deep_flatten_forward.7} parent=5 // pred_check_branch
        %2436 = sbr.rel (%p2434) target = $region64
      $region63: #{deep_flatten_forward.7} parent=5 // pred_region
        %s2437 = ssub.s32 %s15, 2
        // Predicated region
        $region65: #{deep_flatten_forward.7} parent=63 // pred_check
          %p2438 = pneg %p196
        $region66: #{deep_flatten_forward.7} parent=63 // pred_check_branch
          %2440 = sbr.rel (%p2438) target = $region68
        $region67: #{deep_flatten_forward.7} parent=63 // pred_region
          %p2441 = scmp.lt.s32.totalorder %s21, 1
          %s2442 = scalar_select %p2441, %s21, 1
          %s2443 = smul.addr %s2442, 2
          %s2444 = smul.addr %s2443, 8
          %s2445 = scalar_lea.vmem %s7, %s2444
        $region68: #{deep_flatten_forward.7} parent=63 // pred_fallthru
          _
      $region64: #{deep_flatten_forward.7} parent=5 // pred_fallthru
        _
    $region6: #{deep_flatten_forward.7} parent=1 // loop_footer
      %s19 = sadd.s32 1, %s15
    $region7: #{deep_flatten_forward.7} parent=1 // loop_footer_branch
      %14 = sbr.rel target = $region3
    $region8: #{deep_flatten_forward.7} parent=1 // loop_exit
      _
    %2446 = vsyncpa [#allocation3], 1
    %s2447 = scalar_lea.sflag [#allocation3], 1
    %2448 = vsyncpa %s2447, 1
    %2449 = vsyncpa [#allocation5], 1

// kernel: deep_flatten_forward.6
$region0: #{deep_flatten_forward.6}
  #allocation0 [shape = 'u32[]', space=smem, size = 0x4, offset = 0x4, fixed_abs, tag = 'smem constant byte address 0x4 - core index']
  #allocation1 [shape = 'u32[72,128]{1,0:T(1,128)}', space=vmem, size = 0x9000, scoped, tag = 'internal scratch']
  #allocation2 [shape = 'f32[8,768]{1,0:T(8,128)}', space=vmem, size = 0x6000, scoped, tag = 'scratch operand']
  #allocation3 [shape = 'f32[8,256]{1,0:T(8,128)}', space=vmem, size = 0x2000, scoped, tag = 'scratch operand']
  %s0 = inlined_call_operand.vmem [shape: f32[16,256], index: 0, kind: input, shape index: {}]
  %s1 = inlined_call_operand.hbm [shape: bf16[256,768], index: 1, kind: input, shape index: {}]
  %s2 = inlined_call_operand.vmem [shape: f32[1,768], index: 2, kind: input, shape index: {}]
  %s3 = inlined_call_operand.vmem [shape: bf16[256,256], index: 3, kind: input, shape index: {}]
  %s4 = inlined_call_operand.vmem [shape: f32[1,256], index: 4, kind: input, shape index: {}]
  %s5 = inlined_call_operand.vmem [shape: f32[1,256], index: 5, kind: input, shape index: {}]
  %s6 = inlined_call_operand.vmem [shape: f32[1,256], index: 6, kind: input, shape index: {}]
  %s7 = inlined_call_operand.vmem [shape: f32[16,256], index: 7, kind: output, shape index: {}]
  %s8 = sld [smem:[#allocation0]]
  $region72: #{deep_flatten_forward.6} parent=0
    _
  %s10 = ssub.s32 1, %s8
  %s11 = scalar_select 0, %s10, %s8
  $region1: #{deep_flatten_forward.6} parent=0
    #allocation4 [shape = 'u8[393216]{0}', space=vmem, size = 0x60000, scoped, tag = 'input window, operand 1, single buffered']
    #allocation5 [shape = 's32[2]{0}', space=sflag, size = 0x8, scoped, tag = 'scoped memory for deep_flatten_forward.6']
    %12 = vsyncpa [#allocation5], 0
    loop: start=0, step=1, limit=4
    $region2: #{deep_flatten_forward.6} parent=1 // loop_pre_header
      _
    $region3: #{deep_flatten_forward.6} parent=1 // loop_header
      %s14 = sphi 0, %s18
      %p15 = scmp.ge.s32.totalorder %s14, 4
      %s24 = sphi 0, %s26
      %s27 = sphi 0, %s24
      %s28 = sphi 0, %s27
      %s44 = sphi 0, %s28
      %s48 = sphi 0, %s48
      %s50 = sphi 0, %s48
      %s51 = sphi 0, %s50
      %s65 = sphi 0, %s51
      %s69 = sphi 0, %s69
      %s71 = sphi 0, %s69
      %s72 = sphi 0, %s71
      %s86 = sphi 0, %s72
      %s90 = sphi 0, %s90
      %s92 = sphi 0, %s90
      %s93 = sphi 0, %s92
      %s107 = sphi 0, %s93
      %s111 = sphi 0, %s111
      %s113 = sphi 0, %s111
      %s114 = sphi 0, %s113
      %s128 = sphi 0, %s114
      %s132 = sphi 0, %s132
      %s134 = sphi 0, %s132
      %s135 = sphi 0, %s134
      %s149 = sphi 0, %s135
      %s153 = sphi 0, %s153
      %s155 = sphi 0, %s153
      %s156 = sphi 0, %s155
      %s170 = sphi 0, %s156
      %s176 = sphi 0, %s178
      %s179 = sphi 0, %s176
      %s180 = sphi 0, %s179
      %s196 = sphi 0, %s180
    $region4: #{deep_flatten_forward.6} parent=1 // loop_header_branch
      %17 = sbr.rel (%p15) target = $region8
    $region5: #{deep_flatten_forward.6} parent=1 // loop_body
      %s19 = ssub.s32 %s14, 1
      %s20 = ssub.s32 %s14, 2
      %s21 = sadd.s32 %s14, 1
      %s22 = ssub.s32 %s14, %s21
      %p23 = scmp.eq.s32.totalorder %s22, 0
      %s25 = sadd.s32 %s24, 1
      %s26 = scalar_select %p23, %s24, %s25
      %p29 = pneg %p23
      %p30 = scmp.eq.s32.totalorder %s14, 1
      %p31 = por %p29, %p30
      %p32 = scmp.ne.s32.totalorder %s24, %s27
      %p33 = scmp.eq.s32.totalorder %s14, 0
      %p34 = por %p32, %p33
      %p35 = scmp.ne.s32.totalorder %s24, %s27
      %p36 = scmp.eq.s32.totalorder %s19, 1
      %p37 = por %p35, %p36
      %p38 = scmp.ne.s32.totalorder %s27, %s28
      %p39 = scmp.eq.s32.totalorder %s19, 0
      %p40 = por %p38, %p39
      %p41 = scmp.ne.s32.totalorder %s27, %s28
      %p42 = scmp.eq.s32.totalorder %s20, 1
      %p43 = por %p41, %p42
      %p45 = scmp.ne.s32.totalorder %s28, %s44
      %p46 = scmp.eq.s32.totalorder %s20, 0
      %p47 = por %p45, %p46
      %s49 = sadd.s32 %s48, 1
      %p52 = scmp.eq.s32.totalorder %s14, 1
      %p53 = scmp.ne.s32.totalorder %s48, %s50
      %p54 = scmp.eq.s32.totalorder %s14, 0
      %p55 = por %p53, %p54
      %p56 = scmp.ne.s32.totalorder %s48, %s50
      %p57 = scmp.eq.s32.totalorder %s19, 1
      %p58 = por %p56, %p57
      %p59 = scmp.ne.s32.totalorder %s50, %s51
      %p60 = scmp.eq.s32.totalorder %s19, 0
      %p61 = por %p59, %p60
      %p62 = scmp.ne.s32.totalorder %s50, %s51
      %p63 = scmp.eq.s32.totalorder %s20, 1
      %p64 = por %p62, %p63
      %p66 = scmp.ne.s32.totalorder %s51, %s65
      %p67 = scmp.eq.s32.totalorder %s20, 0
      %p68 = por %p66, %p67
      %s70 = sadd.s32 %s69, 1
      %p73 = scmp.eq.s32.totalorder %s14, 1
      %p74 = scmp.ne.s32.totalorder %s69, %s71
      %p75 = scmp.eq.s32.totalorder %s14, 0
      %p76 = por %p74, %p75
      %p77 = scmp.ne.s32.totalorder %s69, %s71
      %p78 = scmp.eq.s32.totalorder %s19, 1
      %p79 = por %p77, %p78
      %p80 = scmp.ne.s32.totalorder %s71, %s72
      %p81 = scmp.eq.s32.totalorder %s19, 0
      %p82 = por %p80, %p81
      %p83 = scmp.ne.s32.totalorder %s71, %s72
      %p84 = scmp.eq.s32.totalorder %s20, 1
      %p85 = por %p83, %p84
      %p87 = scmp.ne.s32.totalorder %s72, %s86
      %p88 = scmp.eq.s32.totalorder %s20, 0
      %p89 = por %p87, %p88
      %s91 = sadd.s32 %s90, 1
      %p94 = scmp.eq.s32.totalorder %s14, 1
      %p95 = scmp.ne.s32.totalorder %s90, %s92
      %p96 = scmp.eq.s32.totalorder %s14, 0
      %p97 = por %p95, %p96
      %p98 = scmp.ne.s32.totalorder %s90, %s92
      %p99 = scmp.eq.s32.totalorder %s19, 1
      %p100 = por %p98, %p99
      %p101 = scmp.ne.s32.totalorder %s92, %s93
      %p102 = scmp.eq.s32.totalorder %s19, 0
      %p103 = por %p101, %p102
      %p104 = scmp.ne.s32.totalorder %s92, %s93
      %p105 = scmp.eq.s32.totalorder %s20, 1
      %p106 = por %p104, %p105
      %p108 = scmp.ne.s32.totalorder %s93, %s107
      %p109 = scmp.eq.s32.totalorder %s20, 0
      %p110 = por %p108, %p109
      %s112 = sadd.s32 %s111, 1
      %p115 = scmp.eq.s32.totalorder %s14, 1
      %p116 = scmp.ne.s32.totalorder %s111, %s113
      %p117 = scmp.eq.s32.totalorder %s14, 0
      %p118 = por %p116, %p117
      %p119 = scmp.ne.s32.totalorder %s111, %s113
      %p120 = scmp.eq.s32.totalorder %s19, 1
      %p121 = por %p119, %p120
      %p122 = scmp.ne.s32.totalorder %s113, %s114
      %p123 = scmp.eq.s32.totalorder %s19, 0
      %p124 = por %p122, %p123
      %p125 = scmp.ne.s32.totalorder %s113, %s114
      %p126 = scmp.eq.s32.totalorder %s20, 1
      %p127 = por %p125, %p126
      %p129 = scmp.ne.s32.totalorder %s114, %s128
      %p130 = scmp.eq.s32.totalorder %s20, 0
      %p131 = por %p129, %p130
      %s133 = sadd.s32 %s132, 1
      %p136 = scmp.eq.s32.totalorder %s14, 1
      %p137 = scmp.ne.s32.totalorder %s132, %s134
      %p138 = scmp.eq.s32.totalorder %s14, 0
      %p139 = por %p137, %p138
      %p140 = scmp.ne.s32.totalorder %s132, %s134
      %p141 = scmp.eq.s32.totalorder %s19, 1
      %p142 = por %p140, %p141
      %p143 = scmp.ne.s32.totalorder %s134, %s135
      %p144 = scmp.eq.s32.totalorder %s19, 0
      %p145 = por %p143, %p144
      %p146 = scmp.ne.s32.totalorder %s134, %s135
      %p147 = scmp.eq.s32.totalorder %s20, 1
      %p148 = por %p146, %p147
      %p150 = scmp.ne.s32.totalorder %s135, %s149
      %p151 = scmp.eq.s32.totalorder %s20, 0
      %p152 = por %p150, %p151
      %s154 = sadd.s32 %s153, 1
      %p157 = scmp.eq.s32.totalorder %s14, 1
      %p158 = scmp.ne.s32.totalorder %s153, %s155
      %p159 = scmp.eq.s32.totalorder %s14, 0
      %p160 = por %p158, %p159
      %p161 = scmp.ne.s32.totalorder %s153, %s155
      %p162 = scmp.eq.s32.totalorder %s19, 1
      %p163 = por %p161, %p162
      %p164 = scmp.ne.s32.totalorder %s155, %s156
      %p165 = scmp.eq.s32.totalorder %s19, 0
      %p166 = por %p164, %p165
      %p167 = scmp.ne.s32.totalorder %s155, %s156
      %p168 = scmp.eq.s32.totalorder %s20, 1
      %p169 = por %p167, %p168
      %p171 = scmp.ne.s32.totalorder %s156, %s170
      %p172 = scmp.eq.s32.totalorder %s20, 0
      %p173 = por %p171, %p172
      %s174 = ssub.s32 %s14, %s21
      %p175 = scmp.eq.s32.totalorder %s174, 0
      %s177 = sadd.s32 %s176, 1
      %s178 = scalar_select %p175, %s176, %s177
      %p181 = pneg %p175
      %p182 = scmp.eq.s32.totalorder %s14, 1
      %p183 = por %p181, %p182
      %p184 = scmp.ne.s32.totalorder %s176, %s179
      %p185 = scmp.eq.s32.totalorder %s14, 0
      %p186 = por %p184, %p185
      %p187 = scmp.ne.s32.totalorder %s176, %s179
      %p188 = scmp.eq.s32.totalorder %s19, 1
      %p189 = por %p187, %p188
      %p190 = scmp.ne.s32.totalorder %s179, %s180
      %p191 = scmp.eq.s32.totalorder %s19, 0
      %p192 = por %p190, %p191
      %p193 = scmp.ne.s32.totalorder %s179, %s180
      %p194 = scmp.eq.s32.totalorder %s20, 1
      %p195 = por %p193, %p194
      %p197 = scmp.ne.s32.totalorder %s180, %s196
      %p198 = scmp.eq.s32.totalorder %s20, 0
      %p199 = por %p197, %p198
      %p200 = scmp.le.s32.totalorder 1, %s14
      %p201 = scmp.lt.s32.totalorder %s14, 3
      %p202 = pnand %p200, %p201
      %p203 = pneg %p202
      // Predicated region
      $region9: #{deep_flatten_forward.6} parent=5 // pred_check
        _
      $region10: #{deep_flatten_forward.6} parent=5 // pred_check_branch
        %205 = sbr.rel (%p202) target = $region12
      $region11: #{deep_flatten_forward.6} parent=5 // pred_region
        %s206 = ssub.s32 %s14, 1
        // Predicated region
        $region13: #{deep_flatten_forward.6} parent=11 // pred_check
          %p207 = pneg %p61
        $region14: #{deep_flatten_forward.6} parent=11 // pred_check_branch
          %209 = sbr.rel (%p207) target = $region16
        $region15: #{deep_flatten_forward.6} parent=11 // pred_region
          %211 = vsyncadd [#allocation5], 0
          %s212 = sshll.u32 %s1, 4
          %s213 = int_to_ptr.hbm [resolvable:$true] %s212
          %s214 = sshll.u32 [#allocation4], 4
          %s215 = int_to_ptr.vmem [resolvable:$true] %s214
          %220 = dma.hbm_to_vmem [thread:$0]  %s213, 12288, %s215, [#allocation5], 384, 384, 24
        $region16: #{deep_flatten_forward.6} parent=11 // pred_fallthru
          _
        // Predicated region
        $region17: #{deep_flatten_forward.6} parent=11 // pred_check
          %p221 = pneg %p82
        $region18: #{deep_flatten_forward.6} parent=11 // pred_check_branch
          %223 = sbr.rel (%p221) target = $region20
        $region19: #{deep_flatten_forward.6} parent=11 // pred_region
          _
        $region20: #{deep_flatten_forward.6} parent=11 // pred_fallthru
          _
        // Predicated region
        $region21: #{deep_flatten_forward.6} parent=11 // pred_check
          %p224 = pneg %p103
        $region22: #{deep_flatten_forward.6} parent=11 // pred_check_branch
          %226 = sbr.rel (%p224) target = $region24
        $region23: #{deep_flatten_forward.6} parent=11 // pred_region
          _
        $region24: #{deep_flatten_forward.6} parent=11 // pred_fallthru
          _
        // Predicated region
        $region25: #{deep_flatten_forward.6} parent=11 // pred_check
          %p227 = pneg %p124
        $region26: #{deep_flatten_forward.6} parent=11 // pred_check_branch
          %229 = sbr.rel (%p227) target = $region28
        $region27: #{deep_flatten_forward.6} parent=11 // pred_region
          _
        $region28: #{deep_flatten_forward.6} parent=11 // pred_fallthru
          _
        // Predicated region
        $region29: #{deep_flatten_forward.6} parent=11 // pred_check
          %p230 = pneg %p145
        $region30: #{deep_flatten_forward.6} parent=11 // pred_check_branch
          %232 = sbr.rel (%p230) target = $region32
        $region31: #{deep_flatten_forward.6} parent=11 // pred_region
          _
        $region32: #{deep_flatten_forward.6} parent=11 // pred_fallthru
          _
        // Predicated region
        $region33: #{deep_flatten_forward.6} parent=11 // pred_check
          %p233 = pneg %p166
        $region34: #{deep_flatten_forward.6} parent=11 // pred_check_branch
          %235 = sbr.rel (%p233) target = $region36
        $region35: #{deep_flatten_forward.6} parent=11 // pred_region
          _
        $region36: #{deep_flatten_forward.6} parent=11 // pred_fallthru
          _
      $region12: #{deep_flatten_forward.6} parent=5 // pred_fallthru
        _
      %p236 = scmp.lt.s32.totalorder %s14, 2
      // Predicated region
      $region37: #{deep_flatten_forward.6} parent=5 // pred_check
        %p237 = pneg %p236
      $region38: #{deep_flatten_forward.6} parent=5 // pred_check_branch
        %239 = sbr.rel (%p237) target = $region40
      $region39: #{deep_flatten_forward.6} parent=5 // pred_region
        // Predicated region
        $region41: #{deep_flatten_forward.6} parent=39 // pred_check
          %p240 = pneg %p34
        $region42: #{deep_flatten_forward.6} parent=39 // pred_check_branch
          %242 = sbr.rel (%p240) target = $region44
        $region43: #{deep_flatten_forward.6} parent=39 // pred_region
          %p243 = scmp.lt.s32.totalorder %s14, 1
          %s244 = scalar_select %p243, %s14, 1
          %s245 = smul.addr %s244, 2
          %s246 = smul.addr %s245, 8
          %s247 = scalar_lea.vmem %s0, %s246
        $region44: #{deep_flatten_forward.6} parent=39 // pred_fallthru
          _
      $region40: #{deep_flatten_forward.6} parent=5 // pred_fallthru
        _
      %p248 = scmp.le.s32.totalorder 1, %s14
      %p249 = scmp.lt.s32.totalorder %s14, 3
      %p250 = pnand %p248, %p249
      %p251 = pneg %p250
      // Predicated region
      $region45: #{deep_flatten_forward.6} parent=5 // pred_check
        _
      $region46: #{deep_flatten_forward.6} parent=5 // pred_check_branch
        %253 = sbr.rel (%p250) target = $region48
      $region47: #{deep_flatten_forward.6} parent=5 // pred_region
        %s254 = ssub.s32 %s14, 1
        // Predicated region
        $region49: #{deep_flatten_forward.6} parent=47 // pred_check
          %p255 = pneg %p61
        $region50: #{deep_flatten_forward.6} parent=47 // pred_check_branch
          %257 = sbr.rel (%p255) target = $region52
        $region51: #{deep_flatten_forward.6} parent=47 // pred_region
          %259 = dma.done [#allocation5], 12288
        $region52: #{deep_flatten_forward.6} parent=47 // pred_fallthru
          _
        %p260 = scmp.lt.s32.totalorder %s19, 1
        %s261 = scalar_select %p260, %s19, 1
        %s262 = smul.addr %s261, 2
        %s263 = smul.addr %s262, 8
        %s264 = scalar_lea.vmem %s0, %s263
        %p265 = pneg %p40
        %p266 = pneg %p37
        %p267 = pneg %p61
        %p268 = pneg %p58
        %p269 = pneg %p82
        %p270 = pneg %p79
        %p271 = pneg %p103
        %p272 = pneg %p100
        %p273 = pneg %p124
        %p274 = pneg %p121
        %p275 = pneg %p145
        %p276 = pneg %p142
        %p277 = pneg %p166
        %p278 = pneg %p163
        %p279 = pneg %p192
        %p280 = pneg %p189
        %p281 = scmp.lt.s32.totalorder %s19, 1
        %s282 = scalar_select %p281, %s19, 1
        %s283 = smul.addr %s282, 2
        %s284 = smul.addr %s283, 8
        %s285 = scalar_lea.vmem %s7, %s284
        %p286 = scmp.lt.s32.totalorder %s19, 1
        %s287 = scalar_select %p286, %s19, 1
        %s288 = smul.addr %s287, 2
        %s289 = smul.addr %s288, 8
        %s290 = scalar_lea.vmem %s0, %s289
        %p291 = scmp.lt.s32.totalorder %s19, 1
        %s292 = scalar_select %p291, %s19, 1
        %s293 = smul.addr %s292, 2
        %s294 = smul.addr %s293, 8
        %s295 = scalar_lea.vmem %s7, %s294
        %v297 = vld [vmem:[%s290] sm:$0xff]
        %v298 = vld [vmem:[%s290 + $0x8] sm:$0xff]
        %v299 = vpack.c.bf16 %v297, %v297
        %v300 = vpack.c.bf16 %v298, %v298
        %v301 = vld [vmem:[#allocation4] sm:$0xff]
        %v302 = vld [vmem:[#allocation4 + $0x8] sm:$0xff]
        %v303 = vld [vmem:[#allocation4 + $0x10] sm:$0xff]
        %v304 = vld [vmem:[#allocation4 + $0x18] sm:$0xff]
        %v305 = vld [vmem:[#allocation4 + $0x20] sm:$0xff]
        %v306 = vld [vmem:[#allocation4 + $0x28] sm:$0xff]
        %v307 = vld [vmem:[#allocation4 + $0x30] sm:$0xff]
        %v308 = vld [vmem:[#allocation4 + $0x38] sm:$0xff]
        %v309 = vld [vmem:[#allocation4 + $0x40] sm:$0xff]
        %v310 = vld [vmem:[#allocation4 + $0x48] sm:$0xff]
        %v311 = vld [vmem:[#allocation4 + $0x50] sm:$0xff]
        %v312 = vld [vmem:[#allocation4 + $0x58] sm:$0xff]
        %v313 = vld [vmem:[#allocation4 + $0x60] sm:$0xff]
        %v314 = vld [vmem:[#allocation4 + $0x68] sm:$0xff]
        %v315 = vld [vmem:[#allocation4 + $0x70] sm:$0xff]
        %v316 = vld [vmem:[#allocation4 + $0x78] sm:$0xff]
        %v317 = vld [vmem:[#allocation4 + $0x80] sm:$0xff]
        %v318 = vld [vmem:[#allocation4 + $0x88] sm:$0xff]
        %v319 = vld [vmem:[#allocation4 + $0x90] sm:$0xff]
        %v320 = vld [vmem:[#allocation4 + $0x98] sm:$0xff]
        %v321 = vld [vmem:[#allocation4 + $0xa0] sm:$0xff]
        %v322 = vld [vmem:[#allocation4 + $0xa8] sm:$0xff]
        %v323 = vld [vmem:[#allocation4 + $0xb0] sm:$0xff]
        %v324 = vld [vmem:[#allocation4 + $0xb8] sm:$0xff]
        %v325 = vld [vmem:[#allocation4 + $0xc0] sm:$0xff]
        %v326 = vld [vmem:[#allocation4 + $0xc8] sm:$0xff]
        %v327 = vld [vmem:[#allocation4 + $0xd0] sm:$0xff]
        %v328 = vld [vmem:[#allocation4 + $0xd8] sm:$0xff]
        %v329 = vld [vmem:[#allocation4 + $0xe0] sm:$0xff]
        %v330 = vld [vmem:[#allocation4 + $0xe8] sm:$0xff]
        %v331 = vld [vmem:[#allocation4 + $0xf0] sm:$0xff]
        %v332 = vld [vmem:[#allocation4 + $0xf8] sm:$0xff]
        %v333 = vld [vmem:[#allocation4 + $0x100] sm:$0xff]
        %v334 = vld [vmem:[#allocation4 + $0x108] sm:$0xff]
        %v335 = vld [vmem:[#allocation4 + $0x110] sm:$0xff]
        %v336 = vld [vmem:[#allocation4 + $0x118] sm:$0xff]
        %v337 = vld [vmem:[#allocation4 + $0x120] sm:$0xff]
        %v338 = vld [vmem:[#allocation4 + $0x128] sm:$0xff]
        %v339 = vld [vmem:[#allocation4 + $0x130] sm:$0xff]
        %v340 = vld [vmem:[#allocation4 + $0x138] sm:$0xff]
        %v341 = vld [vmem:[#allocation4 + $0x140] sm:$0xff]
        %v342 = vld [vmem:[#allocation4 + $0x148] sm:$0xff]
        %v343 = vld [vmem:[#allocation4 + $0x150] sm:$0xff]
        %v344 = vld [vmem:[#allocation4 + $0x158] sm:$0xff]
        %v345 = vld [vmem:[#allocation4 + $0x160] sm:$0xff]
        %v346 = vld [vmem:[#allocation4 + $0x168] sm:$0xff]
        %v347 = vld [vmem:[#allocation4 + $0x170] sm:$0xff]
        %v348 = vld [vmem:[#allocation4 + $0x178] sm:$0xff]
        %v349 = vld [vmem:[#allocation4 + $0x180] sm:$0xff]
        %v350 = vld [vmem:[#allocation4 + $0x188] sm:$0xff]
        %v351 = vld [vmem:[#allocation4 + $0x190] sm:$0xff]
        %v352 = vld [vmem:[#allocation4 + $0x198] sm:$0xff]
        %v353 = vld [vmem:[#allocation4 + $0x1a0] sm:$0xff]
        %v354 = vld [vmem:[#allocation4 + $0x1a8] sm:$0xff]
        %v355 = vld [vmem:[#allocation4 + $0x1b0] sm:$0xff]
        %v356 = vld [vmem:[#allocation4 + $0x1b8] sm:$0xff]
        %v357 = vld [vmem:[#allocation4 + $0x1c0] sm:$0xff]
        %v358 = vld [vmem:[#allocation4 + $0x1c8] sm:$0xff]
        %v359 = vld [vmem:[#allocation4 + $0x1d0] sm:$0xff]
        %v360 = vld [vmem:[#allocation4 + $0x1d8] sm:$0xff]
        %v361 = vld [vmem:[#allocation4 + $0x1e0] sm:$0xff]
        %v362 = vld [vmem:[#allocation4 + $0x1e8] sm:$0xff]
        %v363 = vld [vmem:[#allocation4 + $0x1f0] sm:$0xff]
        %v364 = vld [vmem:[#allocation4 + $0x1f8] sm:$0xff]
        %v365 = vld [vmem:[#allocation4 + $0x200] sm:$0xff]
        %v366 = vld [vmem:[#allocation4 + $0x208] sm:$0xff]
        %v367 = vld [vmem:[#allocation4 + $0x210] sm:$0xff]
        %v368 = vld [vmem:[#allocation4 + $0x218] sm:$0xff]
        %v369 = vld [vmem:[#allocation4 + $0x220] sm:$0xff]
        %v370 = vld [vmem:[#allocation4 + $0x228] sm:$0xff]
        %v371 = vld [vmem:[#allocation4 + $0x230] sm:$0xff]
        %v372 = vld [vmem:[#allocation4 + $0x238] sm:$0xff]
        %v373 = vld [vmem:[#allocation4 + $0x240] sm:$0xff]
        %v374 = vld [vmem:[#allocation4 + $0x248] sm:$0xff]
        %v375 = vld [vmem:[#allocation4 + $0x250] sm:$0xff]
        %v376 = vld [vmem:[#allocation4 + $0x258] sm:$0xff]
        %v377 = vld [vmem:[#allocation4 + $0x260] sm:$0xff]
        %v378 = vld [vmem:[#allocation4 + $0x268] sm:$0xff]
        %v379 = vld [vmem:[#allocation4 + $0x270] sm:$0xff]
        %v380 = vld [vmem:[#allocation4 + $0x278] sm:$0xff]
        %v381 = vld [vmem:[#allocation4 + $0x280] sm:$0xff]
        %v382 = vld [vmem:[#allocation4 + $0x288] sm:$0xff]
        %v383 = vld [vmem:[#allocation4 + $0x290] sm:$0xff]
        %v384 = vld [vmem:[#allocation4 + $0x298] sm:$0xff]
        %v385 = vld [vmem:[#allocation4 + $0x2a0] sm:$0xff]
        %v386 = vld [vmem:[#allocation4 + $0x2a8] sm:$0xff]
        %v387 = vld [vmem:[#allocation4 + $0x2b0] sm:$0xff]
        %v388 = vld [vmem:[#allocation4 + $0x2b8] sm:$0xff]
        %v389 = vld [vmem:[#allocation4 + $0x2c0] sm:$0xff]
        %v390 = vld [vmem:[#allocation4 + $0x2c8] sm:$0xff]
        %v391 = vld [vmem:[#allocation4 + $0x2d0] sm:$0xff]
        %v392 = vld [vmem:[#allocation4 + $0x2d8] sm:$0xff]
        %v393 = vld [vmem:[#allocation4 + $0x2e0] sm:$0xff]
        %v394 = vld [vmem:[#allocation4 + $0x2e8] sm:$0xff]
        %v395 = vld [vmem:[#allocation4 + $0x2f0] sm:$0xff]
        %v396 = vld [vmem:[#allocation4 + $0x2f8] sm:$0xff]
        %v397 = vld [vmem:[%s2] sm:$0x3f]
        %v399 = vperm.slane %v397, 0
        %v400 = vperm.slane %v397, 1
        %v401 = vperm.slane %v397, 2
        %v402 = vperm.slane %v397, 3
        %v403 = vperm.slane %v397, 4
        %v404 = vperm.slane %v397, 5
        %v507 = vunpack.c.l.b16 %v301
        %v508 = vunpack.c.h.b16 %v301
        %v509 = vunpack.c.l.b16 %v302
        %v510 = vunpack.c.h.b16 %v302
        %v511 = vunpack.c.l.b16 %v303
        %v512 = vunpack.c.h.b16 %v303
        %v513 = vunpack.c.l.b16 %v304
        %v514 = vunpack.c.h.b16 %v304
        %v515 = vunpack.c.l.b16 %v305
        %v516 = vunpack.c.h.b16 %v305
        %v517 = vunpack.c.l.b16 %v306
        %v518 = vunpack.c.h.b16 %v306
        %v519 = vunpack.c.l.b16 %v307
        %v520 = vunpack.c.h.b16 %v307
        %v521 = vunpack.c.l.b16 %v308
        %v522 = vunpack.c.h.b16 %v308
        %v523 = vunpack.c.l.b16 %v309
        %v524 = vunpack.c.h.b16 %v309
        %v525 = vunpack.c.l.b16 %v310
        %v526 = vunpack.c.h.b16 %v310
        %v527 = vunpack.c.l.b16 %v311
        %v528 = vunpack.c.h.b16 %v311
        %v529 = vunpack.c.l.b16 %v312
        %v530 = vunpack.c.h.b16 %v312
        %v531 = vunpack.c.l.b16 %v313
        %v532 = vunpack.c.h.b16 %v313
        %v533 = vunpack.c.l.b16 %v314
        %v534 = vunpack.c.h.b16 %v314
        %v535 = vunpack.c.l.b16 %v315
        %v536 = vunpack.c.h.b16 %v315
        %v537 = vunpack.c.l.b16 %v316
        %v538 = vunpack.c.h.b16 %v316
        %v539 = vunpack.c.l.b16 %v317
        %v540 = vunpack.c.h.b16 %v317
        %v541 = vunpack.c.l.b16 %v318
        %v542 = vunpack.c.h.b16 %v318
        %v543 = vunpack.c.l.b16 %v319
        %v544 = vunpack.c.h.b16 %v319
        %v545 = vunpack.c.l.b16 %v320
        %v546 = vunpack.c.h.b16 %v320
        %v547 = vunpack.c.l.b16 %v321
        %v548 = vunpack.c.h.b16 %v321
        %v549 = vunpack.c.l.b16 %v322
        %v550 = vunpack.c.h.b16 %v322
        %v551 = vunpack.c.l.b16 %v323
        %v552 = vunpack.c.h.b16 %v323
        %v553 = vunpack.c.l.b16 %v324
        %v554 = vunpack.c.h.b16 %v324
        %v555 = vunpack.c.l.b16 %v325
        %v556 = vunpack.c.h.b16 %v325
        %v557 = vunpack.c.l.b16 %v326
        %v558 = vunpack.c.h.b16 %v326
        %v559 = vunpack.c.l.b16 %v327
        %v560 = vunpack.c.h.b16 %v327
        %v561 = vunpack.c.l.b16 %v328
        %v562 = vunpack.c.h.b16 %v328
        %v563 = vunpack.c.l.b16 %v329
        %v564 = vunpack.c.h.b16 %v329
        %v565 = vunpack.c.l.b16 %v330
        %v566 = vunpack.c.h.b16 %v330
        %v567 = vunpack.c.l.b16 %v331
        %v568 = vunpack.c.h.b16 %v331
        %v569 = vunpack.c.l.b16 %v332
        %v570 = vunpack.c.h.b16 %v332
        %v571 = vunpack.c.l.b16 %v333
        %v572 = vunpack.c.h.b16 %v333
        %v573 = vunpack.c.l.b16 %v334
        %v574 = vunpack.c.h.b16 %v334
        %v575 = vunpack.c.l.b16 %v335
        %v576 = vunpack.c.h.b16 %v335
        %v577 = vunpack.c.l.b16 %v336
        %v578 = vunpack.c.h.b16 %v336
        %v579 = vunpack.c.l.b16 %v337
        %v580 = vunpack.c.h.b16 %v337
        %v581 = vunpack.c.l.b16 %v338
        %v582 = vunpack.c.h.b16 %v338
        %v583 = vunpack.c.l.b16 %v339
        %v584 = vunpack.c.h.b16 %v339
        %v585 = vunpack.c.l.b16 %v340
        %v586 = vunpack.c.h.b16 %v340
        %v587 = vunpack.c.l.b16 %v341
        %v588 = vunpack.c.h.b16 %v341
        %v589 = vunpack.c.l.b16 %v342
        %v590 = vunpack.c.h.b16 %v342
        %v591 = vunpack.c.l.b16 %v343
        %v592 = vunpack.c.h.b16 %v343
        %v593 = vunpack.c.l.b16 %v344
        %v594 = vunpack.c.h.b16 %v344
        %v595 = vunpack.c.l.b16 %v345
        %v596 = vunpack.c.h.b16 %v345
        %v597 = vunpack.c.l.b16 %v346
        %v598 = vunpack.c.h.b16 %v346
        %v599 = vunpack.c.l.b16 %v347
        %v600 = vunpack.c.h.b16 %v347
        %v601 = vunpack.c.l.b16 %v348
        %v602 = vunpack.c.h.b16 %v348
        %v603 = vunpack.c.l.b16 %v349
        %v604 = vunpack.c.h.b16 %v349
        %v605 = vunpack.c.l.b16 %v350
        %v606 = vunpack.c.h.b16 %v350
        %v607 = vunpack.c.l.b16 %v351
        %v608 = vunpack.c.h.b16 %v351
        %v609 = vunpack.c.l.b16 %v352
        %v610 = vunpack.c.h.b16 %v352
        %v611 = vunpack.c.l.b16 %v353
        %v612 = vunpack.c.h.b16 %v353
        %v613 = vunpack.c.l.b16 %v354
        %v614 = vunpack.c.h.b16 %v354
        %v615 = vunpack.c.l.b16 %v355
        %v616 = vunpack.c.h.b16 %v355
        %v617 = vunpack.c.l.b16 %v356
        %v618 = vunpack.c.h.b16 %v356
        %v619 = vunpack.c.l.b16 %v357
        %v620 = vunpack.c.h.b16 %v357
        %v621 = vunpack.c.l.b16 %v358
        %v622 = vunpack.c.h.b16 %v358
        %v623 = vunpack.c.l.b16 %v359
        %v624 = vunpack.c.h.b16 %v359
        %v625 = vunpack.c.l.b16 %v360
        %v626 = vunpack.c.h.b16 %v360
        %v627 = vunpack.c.l.b16 %v361
        %v628 = vunpack.c.h.b16 %v361
        %v629 = vunpack.c.l.b16 %v362
        %v630 = vunpack.c.h.b16 %v362
        %v631 = vunpack.c.l.b16 %v363
        %v632 = vunpack.c.h.b16 %v363
        %v633 = vunpack.c.l.b16 %v364
        %v634 = vunpack.c.h.b16 %v364
        %v635 = vunpack.c.l.b16 %v365
        %v636 = vunpack.c.h.b16 %v365
        %v637 = vunpack.c.l.b16 %v366
        %v638 = vunpack.c.h.b16 %v366
        %v639 = vunpack.c.l.b16 %v367
        %v640 = vunpack.c.h.b16 %v367
        %v641 = vunpack.c.l.b16 %v368
        %v642 = vunpack.c.h.b16 %v368
        %v643 = vunpack.c.l.b16 %v369
        %v644 = vunpack.c.h.b16 %v369
        %v645 = vunpack.c.l.b16 %v370
        %v646 = vunpack.c.h.b16 %v370
        %v647 = vunpack.c.l.b16 %v371
        %v648 = vunpack.c.h.b16 %v371
        %v649 = vunpack.c.l.b16 %v372
        %v650 = vunpack.c.h.b16 %v372
        %v651 = vunpack.c.l.b16 %v373
        %v652 = vunpack.c.h.b16 %v373
        %v653 = vunpack.c.l.b16 %v374
        %v654 = vunpack.c.h.b16 %v374
        %v655 = vunpack.c.l.b16 %v375
        %v656 = vunpack.c.h.b16 %v375
        %v657 = vunpack.c.l.b16 %v376
        %v658 = vunpack.c.h.b16 %v376
        %v659 = vunpack.c.l.b16 %v377
        %v660 = vunpack.c.h.b16 %v377
        %v661 = vunpack.c.l.b16 %v378
        %v662 = vunpack.c.h.b16 %v378
        %v663 = vunpack.c.l.b16 %v379
        %v664 = vunpack.c.h.b16 %v379
        %v665 = vunpack.c.l.b16 %v380
        %v666 = vunpack.c.h.b16 %v380
        %v667 = vunpack.c.l.b16 %v381
        %v668 = vunpack.c.h.b16 %v381
        %v669 = vunpack.c.l.b16 %v382
        %v670 = vunpack.c.h.b16 %v382
        %v671 = vunpack.c.l.b16 %v383
        %v672 = vunpack.c.h.b16 %v383
        %v673 = vunpack.c.l.b16 %v384
        %v674 = vunpack.c.h.b16 %v384
        %v675 = vunpack.c.l.b16 %v385
        %v676 = vunpack.c.h.b16 %v385
        %v677 = vunpack.c.l.b16 %v386
        %v678 = vunpack.c.h.b16 %v386
        %v679 = vunpack.c.l.b16 %v387
        %v680 = vunpack.c.h.b16 %v387
        %v681 = vunpack.c.l.b16 %v388
        %v682 = vunpack.c.h.b16 %v388
        %v683 = vunpack.c.l.b16 %v389
        %v684 = vunpack.c.h.b16 %v389
        %v685 = vunpack.c.l.b16 %v390
        %v686 = vunpack.c.h.b16 %v390
        %v687 = vunpack.c.l.b16 %v391
        %v688 = vunpack.c.h.b16 %v391
        %v689 = vunpack.c.l.b16 %v392
        %v690 = vunpack.c.h.b16 %v392
        %v691 = vunpack.c.l.b16 %v393
        %v692 = vunpack.c.h.b16 %v393
        %v693 = vunpack.c.l.b16 %v394
        %v694 = vunpack.c.h.b16 %v394
        %v695 = vunpack.c.l.b16 %v395
        %v696 = vunpack.c.h.b16 %v395
        %v697 = vunpack.c.l.b16 %v396
        %v698 = vunpack.c.h.b16 %v396
        %v699 = vpack.c.b16 %v513, %v507
        %v700 = vpack.c.b16 %v514, %v508
        %v701 = vpack.c.b16 %v515, %v509
        %v702 = vpack.c.b16 %v516, %v510
        %v703 = vpack.c.b16 %v517, %v511
        %v704 = vpack.c.b16 %v518, %v512
        %v705 = vpack.c.b16 %v525, %v519
        %v706 = vpack.c.b16 %v526, %v520
        %v707 = vpack.c.b16 %v527, %v521
        %v708 = vpack.c.b16 %v528, %v522
        %v709 = vpack.c.b16 %v529, %v523
        %v710 = vpack.c.b16 %v530, %v524
        %v711 = vpack.c.b16 %v537, %v531
        %v712 = vpack.c.b16 %v538, %v532
        %v713 = vpack.c.b16 %v539, %v533
        %v714 = vpack.c.b16 %v540, %v534
        %v715 = vpack.c.b16 %v541, %v535
        %v716 = vpack.c.b16 %v542, %v536
        %v717 = vpack.c.b16 %v549, %v543
        %v718 = vpack.c.b16 %v550, %v544
        %v719 = vpack.c.b16 %v551, %v545
        %v720 = vpack.c.b16 %v552, %v546
        %v721 = vpack.c.b16 %v553, %v547
        %v722 = vpack.c.b16 %v554, %v548
        %v723 = vpack.c.b16 %v561, %v555
        %v724 = vpack.c.b16 %v562, %v556
        %v725 = vpack.c.b16 %v563, %v557
        %v726 = vpack.c.b16 %v564, %v558
        %v727 = vpack.c.b16 %v565, %v559
        %v728 = vpack.c.b16 %v566, %v560
        %v729 = vpack.c.b16 %v573, %v567
        %v730 = vpack.c.b16 %v574, %v568
        %v731 = vpack.c.b16 %v575, %v569
        %v732 = vpack.c.b16 %v576, %v570
        %v733 = vpack.c.b16 %v577, %v571
        %v734 = vpack.c.b16 %v578, %v572
        %v735 = vpack.c.b16 %v585, %v579
        %v736 = vpack.c.b16 %v586, %v580
        %v737 = vpack.c.b16 %v587, %v581
        %v738 = vpack.c.b16 %v588, %v582
        %v739 = vpack.c.b16 %v589, %v583
        %v740 = vpack.c.b16 %v590, %v584
        %v741 = vpack.c.b16 %v597, %v591
        %v742 = vpack.c.b16 %v598, %v592
        %v743 = vpack.c.b16 %v599, %v593
        %v744 = vpack.c.b16 %v600, %v594
        %v745 = vpack.c.b16 %v601, %v595
        %v746 = vpack.c.b16 %v602, %v596
        %v747 = vpack.c.b16 %v609, %v603
        %v748 = vpack.c.b16 %v610, %v604
        %v749 = vpack.c.b16 %v611, %v605
        %v750 = vpack.c.b16 %v612, %v606
        %v751 = vpack.c.b16 %v613, %v607
        %v752 = vpack.c.b16 %v614, %v608
        %v753 = vpack.c.b16 %v621, %v615
        %v754 = vpack.c.b16 %v622, %v616
        %v755 = vpack.c.b16 %v623, %v617
        %v756 = vpack.c.b16 %v624, %v618
        %v757 = vpack.c.b16 %v625, %v619
        %v758 = vpack.c.b16 %v626, %v620
        %v759 = vpack.c.b16 %v633, %v627
        %v760 = vpack.c.b16 %v634, %v628
        %v761 = vpack.c.b16 %v635, %v629
        %v762 = vpack.c.b16 %v636, %v630
        %v763 = vpack.c.b16 %v637, %v631
        %v764 = vpack.c.b16 %v638, %v632
        %v765 = vpack.c.b16 %v645, %v639
        %v766 = vpack.c.b16 %v646, %v640
        %v767 = vpack.c.b16 %v647, %v641
        %v768 = vpack.c.b16 %v648, %v642
        %v769 = vpack.c.b16 %v649, %v643
        %v770 = vpack.c.b16 %v650, %v644
        %v771 = vpack.c.b16 %v657, %v651
        %v772 = vpack.c.b16 %v658, %v652
        %v773 = vpack.c.b16 %v659, %v653
        %v774 = vpack.c.b16 %v660, %v654
        %v775 = vpack.c.b16 %v661, %v655
        %v776 = vpack.c.b16 %v662, %v656
        %v777 = vpack.c.b16 %v669, %v663
        %v778 = vpack.c.b16 %v670, %v664
        %v779 = vpack.c.b16 %v671, %v665
        %v780 = vpack.c.b16 %v672, %v666
        %v781 = vpack.c.b16 %v673, %v667
        %v782 = vpack.c.b16 %v674, %v668
        %v783 = vpack.c.b16 %v681, %v675
        %v784 = vpack.c.b16 %v682, %v676
        %v785 = vpack.c.b16 %v683, %v677
        %v786 = vpack.c.b16 %v684, %v678
        %v787 = vpack.c.b16 %v685, %v679
        %v788 = vpack.c.b16 %v686, %v680
        %v789 = vpack.c.b16 %v693, %v687
        %v790 = vpack.c.b16 %v694, %v688
        %v791 = vpack.c.b16 %v695, %v689
        %v792 = vpack.c.b16 %v696, %v690
        %v793 = vpack.c.b16 %v697, %v691
        %v794 = vpack.c.b16 %v698, %v692
        %891 = vmatpush.bf16.msra.mxu0 %v741
        %892 = vmatpush.bf16.msra.mxu0 %v735
        %893 = vmatpush.bf16.msra.mxu0 %v729
        %894 = vmatpush.bf16.msra.mxu0 %v723
        %895 = vmatpush.bf16.msra.mxu0 %v717
        %896 = vmatpush.bf16.msra.mxu0 %v711
        %897 = vmatpush.bf16.msra.mxu0 %v705
        %898 = vmatpush.bf16.msra.mxu0 %v699
        %899 = vmatmul.bf16.gmra.mxu0 %v299
        %v900 = vpop.f32.mrf.mxu0
        %v901 = vadd.f32 %v399, %v900
        %v902 = vpop.f32.mrf.mxu0
        %903 = vdwg.mxu0
        %904 = vmatpush.bf16.msra.mxu0 %v789
        %905 = vmatpush.bf16.msra.mxu0 %v783
        %906 = vmatpush.bf16.msra.mxu0 %v777
        %907 = vmatpush.bf16.msra.mxu0 %v771
        %908 = vmatpush.bf16.msra.mxu0 %v765
        %909 = vmatpush.bf16.msra.mxu0 %v759
        %910 = vmatpush.bf16.msra.mxu0 %v753
        %911 = vmatpush.bf16.msra.mxu0 %v747
        %912 = vmatmul.bf16.gmra.mxu0 %v300
        %v913 = vpop.f32.mrf.mxu0
        %v914 = vadd.f32 %v901, %v913
        %v915 = vpop.f32.mrf.mxu0
        %916 = vdwg.mxu0
        %917 = vmatpush.bf16.msra.mxu0 %v742
        %918 = vmatpush.bf16.msra.mxu0 %v736
        %919 = vmatpush.bf16.msra.mxu0 %v730
        %920 = vmatpush.bf16.msra.mxu0 %v724
        %921 = vmatpush.bf16.msra.mxu0 %v718
        %922 = vmatpush.bf16.msra.mxu0 %v712
        %923 = vmatpush.bf16.msra.mxu0 %v706
        %924 = vmatpush.bf16.msra.mxu0 %v700
        %925 = vmatmul.bf16.gmra.mxu0 %v299
        %v926 = vpop.f32.mrf.mxu0
        %v927 = vadd.f32 %v400, %v926
        %v928 = vpop.f32.mrf.mxu0
        %929 = vdwg.mxu0
        %930 = vmatpush.bf16.msra.mxu0 %v790
        %931 = vmatpush.bf16.msra.mxu0 %v784
        %932 = vmatpush.bf16.msra.mxu0 %v778
        %933 = vmatpush.bf16.msra.mxu0 %v772
        %934 = vmatpush.bf16.msra.mxu0 %v766
        %935 = vmatpush.bf16.msra.mxu0 %v760
        %936 = vmatpush.bf16.msra.mxu0 %v754
        %937 = vmatpush.bf16.msra.mxu0 %v748
        %938 = vmatmul.bf16.gmra.mxu0 %v300
        %v939 = vpop.f32.mrf.mxu0
        %v940 = vadd.f32 %v927, %v939
        %v941 = vpop.f32.mrf.mxu0
        %942 = vdwg.mxu0
        %943 = vmatpush.bf16.msra.mxu0 %v743
        %944 = vmatpush.bf16.msra.mxu0 %v737
        %945 = vmatpush.bf16.msra.mxu0 %v731
        %946 = vmatpush.bf16.msra.mxu0 %v725
        %947 = vmatpush.bf16.msra.mxu0 %v719
        %948 = vmatpush.bf16.msra.mxu0 %v713
        %949 = vmatpush.bf16.msra.mxu0 %v707
        %950 = vmatpush.bf16.msra.mxu0 %v701
        %951 = vmatmul.bf16.gmra.mxu0 %v299
        %v952 = vpop.f32.mrf.mxu0
        %v953 = vadd.f32 %v401, %v952
        %v954 = vpop.f32.mrf.mxu0
        %955 = vdwg.mxu0
        %956 = vmatpush.bf16.msra.mxu0 %v791
        %957 = vmatpush.bf16.msra.mxu0 %v785
        %958 = vmatpush.bf16.msra.mxu0 %v779
        %959 = vmatpush.bf16.msra.mxu0 %v773
        %960 = vmatpush.bf16.msra.mxu0 %v767
        %961 = vmatpush.bf16.msra.mxu0 %v761
        %962 = vmatpush.bf16.msra.mxu0 %v755
        %963 = vmatpush.bf16.msra.mxu0 %v749
        %964 = vmatmul.bf16.gmra.mxu0 %v300
        %v965 = vpop.f32.mrf.mxu0
        %v966 = vadd.f32 %v953, %v965
        %v967 = vpop.f32.mrf.mxu0
        %968 = vdwg.mxu0
        %969 = vmatpush.bf16.msra.mxu0 %v744
        %970 = vmatpush.bf16.msra.mxu0 %v738
        %971 = vmatpush.bf16.msra.mxu0 %v732
        %972 = vmatpush.bf16.msra.mxu0 %v726
        %973 = vmatpush.bf16.msra.mxu0 %v720
        %974 = vmatpush.bf16.msra.mxu0 %v714
        %975 = vmatpush.bf16.msra.mxu0 %v708
        %976 = vmatpush.bf16.msra.mxu0 %v702
        %977 = vmatmul.bf16.gmra.mxu0 %v299
        %v978 = vpop.f32.mrf.mxu0
        %v979 = vadd.f32 %v402, %v978
        %v980 = vpop.f32.mrf.mxu0
        %981 = vdwg.mxu0
        %982 = vmatpush.bf16.msra.mxu0 %v792
        %983 = vmatpush.bf16.msra.mxu0 %v786
        %984 = vmatpush.bf16.msra.mxu0 %v780
        %985 = vmatpush.bf16.msra.mxu0 %v774
        %986 = vmatpush.bf16.msra.mxu0 %v768
        %987 = vmatpush.bf16.msra.mxu0 %v762
        %988 = vmatpush.bf16.msra.mxu0 %v756
        %989 = vmatpush.bf16.msra.mxu0 %v750
        %990 = vmatmul.bf16.gmra.mxu0 %v300
        %v991 = vpop.f32.mrf.mxu0
        %v992 = vadd.f32 %v979, %v991
        %v993 = vpop.f32.mrf.mxu0
        %994 = vdwg.mxu0
        %995 = vmatpush.bf16.msra.mxu0 %v745
        %996 = vmatpush.bf16.msra.mxu0 %v739
        %997 = vmatpush.bf16.msra.mxu0 %v733
        %998 = vmatpush.bf16.msra.mxu0 %v727
        %999 = vmatpush.bf16.msra.mxu0 %v721
        %1000 = vmatpush.bf16.msra.mxu0 %v715
        %1001 = vmatpush.bf16.msra.mxu0 %v709
        %1002 = vmatpush.bf16.msra.mxu0 %v703
        %1003 = vmatmul.bf16.gmra.mxu0 %v299
        %v1004 = vpop.f32.mrf.mxu0
        %v1005 = vadd.f32 %v403, %v1004
        %v1006 = vpop.f32.mrf.mxu0
        %1007 = vdwg.mxu0
        %1008 = vmatpush.bf16.msra.mxu0 %v793
        %1009 = vmatpush.bf16.msra.mxu0 %v787
        %1010 = vmatpush.bf16.msra.mxu0 %v781
        %1011 = vmatpush.bf16.msra.mxu0 %v775
        %1012 = vmatpush.bf16.msra.mxu0 %v769
        %1013 = vmatpush.bf16.msra.mxu0 %v763
        %1014 = vmatpush.bf16.msra.mxu0 %v757
        %1015 = vmatpush.bf16.msra.mxu0 %v751
        %1016 = vmatmul.bf16.gmra.mxu0 %v300
        %v1017 = vpop.f32.mrf.mxu0
        %v1018 = vadd.f32 %v1005, %v1017
        %v1019 = vpop.f32.mrf.mxu0
        %1020 = vdwg.mxu0
        %1021 = vmatpush.bf16.msra.mxu0 %v746
        %1022 = vmatpush.bf16.msra.mxu0 %v740
        %1023 = vmatpush.bf16.msra.mxu0 %v734
        %1024 = vmatpush.bf16.msra.mxu0 %v728
        %1025 = vmatpush.bf16.msra.mxu0 %v722
        %1026 = vmatpush.bf16.msra.mxu0 %v716
        %1027 = vmatpush.bf16.msra.mxu0 %v710
        %1028 = vmatpush.bf16.msra.mxu0 %v704
        %1029 = vmatmul.bf16.gmra.mxu0 %v299
        %v1030 = vpop.f32.mrf.mxu0
        %v1031 = vadd.f32 %v404, %v1030
        %v1032 = vpop.f32.mrf.mxu0
        %1033 = vdwg.mxu0
        %1034 = vmatpush.bf16.msra.mxu0 %v794
        %1035 = vmatpush.bf16.msra.mxu0 %v788
        %1036 = vmatpush.bf16.msra.mxu0 %v782
        %1037 = vmatpush.bf16.msra.mxu0 %v776
        %1038 = vmatpush.bf16.msra.mxu0 %v770
        %1039 = vmatpush.bf16.msra.mxu0 %v764
        %1040 = vmatpush.bf16.msra.mxu0 %v758
        %1041 = vmatpush.bf16.msra.mxu0 %v752
        %1042 = vmatmul.bf16.gmra.mxu0 %v300
        %v1043 = vpop.f32.mrf.mxu0
        %v1044 = vadd.f32 %v1031, %v1043
        %v1045 = vpop.f32.mrf.mxu0
        %1046 = vdwg.mxu0
        %1047 = vst [vmem:[#allocation2] sm:$0xff] %v914
        %1048 = vst [vmem:[#allocation2 + $0x8] sm:$0xff] %v940
        %1049 = vst [vmem:[#allocation2 + $0x10] sm:$0xff] %v966
        %1050 = vst [vmem:[#allocation2 + $0x18] sm:$0xff] %v992
        %1051 = vst [vmem:[#allocation2 + $0x20] sm:$0xff] %v1018
        %1052 = vst [vmem:[#allocation2 + $0x28] sm:$0xff] %v1044
        loop: start=0, step=1, limit=2
        $region53: #{deep_flatten_forward.6} parent=47 // loop_pre_header
          _
        $region54: #{deep_flatten_forward.6} parent=47 // loop_header
          %s1054 = sphi 0, %s1058
          %p1055 = scmp.ge.s32.totalorder %s1054, 2
        $region55: #{deep_flatten_forward.6} parent=47 // loop_header_branch
          %1057 = sbr.rel (%p1055) target = $region59
        $region56: #{deep_flatten_forward.6} parent=47 // loop_body
          %s1059 = smul.u32 %s1054, 128
          %s1060 = sadd.s32 %s1059, 256
          %s1061 = sadd.s32 %s1059, 512
          %s1062 = sshra.s32 %s1059, 7
          %s1063 = sand.u32 %s1059, 127
          %s1064 = smul.addr %s1062, 8
          %s1065 = scalar_lea.vmem [#allocation2], %s1064
          %v1066 = vld [vmem:[%s1065] sm:$0xff]
          %v1067 = vmul.f32 %v1066, 0.088388346
          %s1068 = sshra.s32 %s1060, 7
          %s1069 = sand.u32 %s1060, 127
          %s1070 = smul.addr %s1068, 8
          %s1071 = scalar_lea.vmem [#allocation2], %s1070
          %v1072 = vld [vmem:[%s1071] sm:$0xff]
          %s1073 = sshra.s32 %s1061, 7
          %s1074 = sand.u32 %s1061, 127
          %s1075 = smul.addr %s1073, 8
          %s1076 = scalar_lea.vmem [#allocation2], %s1075
          %v1077 = vld [vmem:[%s1076] sm:$0xff]
          %v1078 = vpack.c.bf16 %v1067, %v1067
          %v1079 = vpack.c.bf16 %v1072, %v1072
          %1080 = vmatpush.bf16.xpose.msra.mxu0 0
          %1081 = vmatpush.bf16.xpose.msra.mxu0 0
          %1082 = vmatpush.bf16.xpose.msra.mxu0 0
          %1083 = vmatpush.bf16.xpose.msra.mxu0 0
          %1084 = vmatpush.bf16.xpose.msra.mxu0 0
          %1085 = vmatpush.bf16.xpose.msra.mxu0 0
          %1086 = vmatpush.bf16.xpose.msra.mxu0 0
          %1087 = vmatpush.bf16.xpose.msra.mxu0 %v1079
          %1088 = vmatmul.bf16.gmra.mxu0 %v1078
          %v1089 = vpop.f32.mrf.mxu0
          %v1090 = vadd.f32 0.0, %v1089
          %v1091 = vpop.f32.mrf.mxu0
          %1092 = vdwg.mxu0
          %vm1093 = vcmask 64512
          %v1094 = vsel %vm1093, %v1090, -inf
          %1095 = vmax.xlane.f32.xlu0 %v1094
          %v1096 = vpop.xlane.xlu0 %1095
          %v1097 = vsub.f32 %v1090, %v1096
          %v1098 = vmul.f32 %v1097, 1.442695
          %v1099 = vpow.pop %v1098
          %v1100 = vsel %vm1093, %v1099, 0.0
          %1101 = vadd.xlane.f32.xlu0 %v1100
          %v1102 = vpop.xlane.xlu0 %1101
          %v1103 = vrcp.pop %v1102
          %v1104 = vpack.c.bf16 %v1099, %v1099
          %v1105 = vpack.c.bf16 %v1077, %v1077
          %v1107 = vsel %vm1093, %v1104, 0
          %vm1109 = vcmask 1043456
          %v1111 = vsel %vm1109, %v1105, 0
          %1113 = vmatpush.bf16.msra.mxu0 0
          %1114 = vmatpush.bf16.msra.mxu0 0
          %1115 = vmatpush.bf16.msra.mxu0 0
          %1116 = vmatpush.bf16.msra.mxu0 0
          %1117 = vmatpush.bf16.msra.mxu0 0
          %1118 = vmatpush.bf16.msra.mxu0 0
          %1119 = vmatpush.bf16.msra.mxu0 0
          %1120 = vmatpush.bf16.msra.mxu0 %v1111
          %1121 = vmatmul.bf16.gmra.mxu0 %v1107
          %v1122 = vpop.f32.mrf.mxu0
          %v1123 = vadd.f32 0.0, %v1122
          %v1124 = vpop.f32.mrf.mxu0
          %1125 = vdwg.mxu0
          %v1126 = vmul.f32 %v1123, %v1103
          %s1127 = smul.addr %s1062, 8
          %s1128 = scalar_lea.vmem [#allocation3], %s1127
          %1129 = vst [vmem:[%s1128] sm:$0xff] %v1126
        $region57: #{deep_flatten_forward.6} parent=47 // loop_footer
          %s1058 = sadd.s32 1, %s1054
        $region58: #{deep_flatten_forward.6} parent=47 // loop_footer_branch
          %1053 = sbr.rel target = $region54
        $region59: #{deep_flatten_forward.6} parent=47 // loop_exit
          _
        %v1130 = vld [vmem:[#allocation3] sm:$0xff]
        %v1131 = vld [vmem:[#allocation3 + $0x8] sm:$0xff]
        %v1132 = vpack.c.bf16 %v1130, %v1130
        %v1133 = vpack.c.bf16 %v1131, %v1131
        %v1134 = vld [vmem:[%s3] sm:$0xff]
        %v1135 = vld [vmem:[%s3 + $0x8] sm:$0xff]
        %v1136 = vld [vmem:[%s3 + $0x10] sm:$0xff]
        %v1137 = vld [vmem:[%s3 + $0x18] sm:$0xff]
        %v1138 = vld [vmem:[%s3 + $0x20] sm:$0xff]
        %v1139 = vld [vmem:[%s3 + $0x28] sm:$0xff]
        %v1140 = vld [vmem:[%s3 + $0x30] sm:$0xff]
        %v1141 = vld [vmem:[%s3 + $0x38] sm:$0xff]
        %v1142 = vld [vmem:[%s3 + $0x40] sm:$0xff]
        %v1143 = vld [vmem:[%s3 + $0x48] sm:$0xff]
        %v1144 = vld [vmem:[%s3 + $0x50] sm:$0xff]
        %v1145 = vld [vmem:[%s3 + $0x58] sm:$0xff]
        %v1146 = vld [vmem:[%s3 + $0x60] sm:$0xff]
        %v1147 = vld [vmem:[%s3 + $0x68] sm:$0xff]
        %v1148 = vld [vmem:[%s3 + $0x70] sm:$0xff]
        %v1149 = vld [vmem:[%s3 + $0x78] sm:$0xff]
        %v1150 = vld [vmem:[%s3 + $0x80] sm:$0xff]
        %v1151 = vld [vmem:[%s3 + $0x88] sm:$0xff]
        %v1152 = vld [vmem:[%s3 + $0x90] sm:$0xff]
        %v1153 = vld [vmem:[%s3 + $0x98] sm:$0xff]
        %v1154 = vld [vmem:[%s3 + $0xa0] sm:$0xff]
        %v1155 = vld [vmem:[%s3 + $0xa8] sm:$0xff]
        %v1156 = vld [vmem:[%s3 + $0xb0] sm:$0xff]
        %v1157 = vld [vmem:[%s3 + $0xb8] sm:$0xff]
        %v1158 = vld [vmem:[%s3 + $0xc0] sm:$0xff]
        %v1159 = vld [vmem:[%s3 + $0xc8] sm:$0xff]
        %v1160 = vld [vmem:[%s3 + $0xd0] sm:$0xff]
        %v1161 = vld [vmem:[%s3 + $0xd8] sm:$0xff]
        %v1162 = vld [vmem:[%s3 + $0xe0] sm:$0xff]
        %v1163 = vld [vmem:[%s3 + $0xe8] sm:$0xff]
        %v1164 = vld [vmem:[%s3 + $0xf0] sm:$0xff]
        %v1165 = vld [vmem:[%s3 + $0xf8] sm:$0xff]
        %v1166 = vld [vmem:[%s4] sm:$0x3]
        %v1168 = vperm.slane %v1166, 0
        %v1169 = vperm.slane %v1166, 1
        %v1204 = vunpack.c.l.b16 %v1134
        %v1205 = vunpack.c.h.b16 %v1134
        %v1206 = vunpack.c.l.b16 %v1135
        %v1207 = vunpack.c.h.b16 %v1135
        %v1208 = vunpack.c.l.b16 %v1136
        %v1209 = vunpack.c.h.b16 %v1136
        %v1210 = vunpack.c.l.b16 %v1137
        %v1211 = vunpack.c.h.b16 %v1137
        %v1212 = vunpack.c.l.b16 %v1138
        %v1213 = vunpack.c.h.b16 %v1138
        %v1214 = vunpack.c.l.b16 %v1139
        %v1215 = vunpack.c.h.b16 %v1139
        %v1216 = vunpack.c.l.b16 %v1140
        %v1217 = vunpack.c.h.b16 %v1140
        %v1218 = vunpack.c.l.b16 %v1141
        %v1219 = vunpack.c.h.b16 %v1141
        %v1220 = vunpack.c.l.b16 %v1142
        %v1221 = vunpack.c.h.b16 %v1142
        %v1222 = vunpack.c.l.b16 %v1143
        %v1223 = vunpack.c.h.b16 %v1143
        %v1224 = vunpack.c.l.b16 %v1144
        %v1225 = vunpack.c.h.b16 %v1144
        %v1226 = vunpack.c.l.b16 %v1145
        %v1227 = vunpack.c.h.b16 %v1145
        %v1228 = vunpack.c.l.b16 %v1146
        %v1229 = vunpack.c.h.b16 %v1146
        %v1230 = vunpack.c.l.b16 %v1147
        %v1231 = vunpack.c.h.b16 %v1147
        %v1232 = vunpack.c.l.b16 %v1148
        %v1233 = vunpack.c.h.b16 %v1148
        %v1234 = vunpack.c.l.b16 %v1149
        %v1235 = vunpack.c.h.b16 %v1149
        %v1236 = vunpack.c.l.b16 %v1150
        %v1237 = vunpack.c.h.b16 %v1150
        %v1238 = vunpack.c.l.b16 %v1151
        %v1239 = vunpack.c.h.b16 %v1151
        %v1240 = vunpack.c.l.b16 %v1152
        %v1241 = vunpack.c.h.b16 %v1152
        %v1242 = vunpack.c.l.b16 %v1153
        %v1243 = vunpack.c.h.b16 %v1153
        %v1244 = vunpack.c.l.b16 %v1154
        %v1245 = vunpack.c.h.b16 %v1154
        %v1246 = vunpack.c.l.b16 %v1155
        %v1247 = vunpack.c.h.b16 %v1155
        %v1248 = vunpack.c.l.b16 %v1156
        %v1249 = vunpack.c.h.b16 %v1156
        %v1250 = vunpack.c.l.b16 %v1157
        %v1251 = vunpack.c.h.b16 %v1157
        %v1252 = vunpack.c.l.b16 %v1158
        %v1253 = vunpack.c.h.b16 %v1158
        %v1254 = vunpack.c.l.b16 %v1159
        %v1255 = vunpack.c.h.b16 %v1159
        %v1256 = vunpack.c.l.b16 %v1160
        %v1257 = vunpack.c.h.b16 %v1160
        %v1258 = vunpack.c.l.b16 %v1161
        %v1259 = vunpack.c.h.b16 %v1161
        %v1260 = vunpack.c.l.b16 %v1162
        %v1261 = vunpack.c.h.b16 %v1162
        %v1262 = vunpack.c.l.b16 %v1163
        %v1263 = vunpack.c.h.b16 %v1163
        %v1264 = vunpack.c.l.b16 %v1164
        %v1265 = vunpack.c.h.b16 %v1164
        %v1266 = vunpack.c.l.b16 %v1165
        %v1267 = vunpack.c.h.b16 %v1165
        %v1268 = vpack.c.b16 %v1206, %v1204
        %v1269 = vpack.c.b16 %v1207, %v1205
        %v1270 = vpack.c.b16 %v1210, %v1208
        %v1271 = vpack.c.b16 %v1211, %v1209
        %v1272 = vpack.c.b16 %v1214, %v1212
        %v1273 = vpack.c.b16 %v1215, %v1213
        %v1274 = vpack.c.b16 %v1218, %v1216
        %v1275 = vpack.c.b16 %v1219, %v1217
        %v1276 = vpack.c.b16 %v1222, %v1220
        %v1277 = vpack.c.b16 %v1223, %v1221
        %v1278 = vpack.c.b16 %v1226, %v1224
        %v1279 = vpack.c.b16 %v1227, %v1225
        %v1280 = vpack.c.b16 %v1230, %v1228
        %v1281 = vpack.c.b16 %v1231, %v1229
        %v1282 = vpack.c.b16 %v1234, %v1232
        %v1283 = vpack.c.b16 %v1235, %v1233
        %v1284 = vpack.c.b16 %v1238, %v1236
        %v1285 = vpack.c.b16 %v1239, %v1237
        %v1286 = vpack.c.b16 %v1242, %v1240
        %v1287 = vpack.c.b16 %v1243, %v1241
        %v1288 = vpack.c.b16 %v1246, %v1244
        %v1289 = vpack.c.b16 %v1247, %v1245
        %v1290 = vpack.c.b16 %v1250, %v1248
        %v1291 = vpack.c.b16 %v1251, %v1249
        %v1292 = vpack.c.b16 %v1254, %v1252
        %v1293 = vpack.c.b16 %v1255, %v1253
        %v1294 = vpack.c.b16 %v1258, %v1256
        %v1295 = vpack.c.b16 %v1259, %v1257
        %v1296 = vpack.c.b16 %v1262, %v1260
        %v1297 = vpack.c.b16 %v1263, %v1261
        %v1298 = vpack.c.b16 %v1266, %v1264
        %v1299 = vpack.c.b16 %v1267, %v1265
        %1332 = vmatpush.bf16.msra.mxu0 %v1282
        %1333 = vmatpush.bf16.msra.mxu0 %v1280
        %1334 = vmatpush.bf16.msra.mxu0 %v1278
        %1335 = vmatpush.bf16.msra.mxu0 %v1276
        %1336 = vmatpush.bf16.msra.mxu0 %v1274
        %1337 = vmatpush.bf16.msra.mxu0 %v1272
        %1338 = vmatpush.bf16.msra.mxu0 %v1270
        %1339 = vmatpush.bf16.msra.mxu0 %v1268
        %1340 = vmatmul.bf16.gmra.mxu0 %v1132
        %v1341 = vpop.f32.mrf.mxu0
        %v1342 = vadd.f32 %v1168, %v1341
        %v1343 = vpop.f32.mrf.mxu0
        %1344 = vdwg.mxu0
        %1345 = vmatpush.bf16.msra.mxu0 %v1298
        %1346 = vmatpush.bf16.msra.mxu0 %v1296
        %1347 = vmatpush.bf16.msra.mxu0 %v1294
        %1348 = vmatpush.bf16.msra.mxu0 %v1292
        %1349 = vmatpush.bf16.msra.mxu0 %v1290
        %1350 = vmatpush.bf16.msra.mxu0 %v1288
        %1351 = vmatpush.bf16.msra.mxu0 %v1286
        %1352 = vmatpush.bf16.msra.mxu0 %v1284
        %1353 = vmatmul.bf16.gmra.mxu0 %v1133
        %v1354 = vpop.f32.mrf.mxu0
        %v1355 = vadd.f32 %v1342, %v1354
        %v1356 = vpop.f32.mrf.mxu0
        %1357 = vdwg.mxu0
        %1358 = vmatpush.bf16.msra.mxu0 %v1283
        %1359 = vmatpush.bf16.msra.mxu0 %v1281
        %1360 = vmatpush.bf16.msra.mxu0 %v1279
        %1361 = vmatpush.bf16.msra.mxu0 %v1277
        %1362 = vmatpush.bf16.msra.mxu0 %v1275
        %1363 = vmatpush.bf16.msra.mxu0 %v1273
        %1364 = vmatpush.bf16.msra.mxu0 %v1271
        %1365 = vmatpush.bf16.msra.mxu0 %v1269
        %1366 = vmatmul.bf16.gmra.mxu0 %v1132
        %v1367 = vpop.f32.mrf.mxu0
        %v1368 = vadd.f32 %v1169, %v1367
        %v1369 = vpop.f32.mrf.mxu0
        %1370 = vdwg.mxu0
        %1371 = vmatpush.bf16.msra.mxu0 %v1299
        %1372 = vmatpush.bf16.msra.mxu0 %v1297
        %1373 = vmatpush.bf16.msra.mxu0 %v1295
        %1374 = vmatpush.bf16.msra.mxu0 %v1293
        %1375 = vmatpush.bf16.msra.mxu0 %v1291
        %1376 = vmatpush.bf16.msra.mxu0 %v1289
        %1377 = vmatpush.bf16.msra.mxu0 %v1287
        %1378 = vmatpush.bf16.msra.mxu0 %v1285
        %1379 = vmatmul.bf16.gmra.mxu0 %v1133
        %v1380 = vpop.f32.mrf.mxu0
        %v1381 = vadd.f32 %v1368, %v1380
        %v1382 = vpop.f32.mrf.mxu0
        %1383 = vdwg.mxu0
        %v1384 = vadd.f32 %v1355, %v297
        %v1385 = vadd.f32 %v1381, %v298
        %v1386 = vld [vmem:[%s5] sm:$0x3]
        %v1387 = vld [vmem:[%s6] sm:$0x3]
        %v1388 = vadd.f32 %v1384, %v1385
        %1389 = vadd.xlane.f32.xlu0 %v1388
        %v1390 = vpop.xlane.xlu0 %1389
        %v1391 = vrcp.pop 256.0
        %v1392 = vmul.f32 256.0, %v1391
        %v1393 = vsub.f32 1.0, %v1392
        %v1394 = vmul.f32 %v1391, %v1393
        %v1395 = vadd.f32 %v1391, %v1394
        %vm1396 = vweird.f32 %v1391
        %v1397 = vsel %vm1396, %v1391, %v1395
        %v1398 = vmul.f32 %v1390, %v1397
        %v1399 = vsub.f32 %v1384, %v1398
        %v1400 = vsub.f32 %v1385, %v1398
        %v1401 = vmul.f32 %v1399, %v1399
        %v1402 = vmul.f32 %v1400, %v1400
        %v1403 = vadd.f32 %v1401, %v1402
        %1404 = vadd.xlane.f32.xlu0 %v1403
        %v1405 = vpop.xlane.xlu0 %1404
        %v1406 = vmul.f32 %v1405, %v1397
        %v1407 = vadd.f32 %v1406, 1e-12
        %v1408 = vrsqrt.pop %v1407
        %v1409 = vmul.f32 %v1408, %v1407
        %v1410 = vmul.f32 %v1409, %v1408
        %v1411 = vmul.f32 0.5, %v1410
        %v1412 = vsub.f32 1.5, %v1411
        %v1413 = vmul.f32 %v1408, %v1412
        %vm1414 = vweird.f32 %v1407
        %vm1415 = vweird.f32 %v1408
        %vm1416 = vmor %vm1414, %vm1415
        %v1417 = vsel %vm1416, %v1408, %v1413
        %v1418 = vmul.f32 %v1399, %v1417
        %v1419 = vmul.f32 %v1400, %v1417
        %v1421 = vperm.slane %v1386, 0
        %v1422 = vperm.slane %v1386, 1
        %v1425 = vmul.f32 %v1418, %v1421
        %v1426 = vmul.f32 %v1419, %v1422
        %v1428 = vperm.slane %v1387, 0
        %v1429 = vperm.slane %v1387, 1
        %v1432 = vadd.f32 %v1425, %v1428
        %v1433 = vadd.f32 %v1426, %v1429
        %1434 = vst [vmem:[%s295] sm:$0xff] %v1432
        %1435 = vst [vmem:[%s295 + $0x8] sm:$0xff] %v1433
        %p1436 = scmp.lt.s32.totalorder %s19, 1
        %s1437 = scalar_select %p1436, %s19, 1
        %s1438 = smul.addr %s1437, 2
        %s1439 = smul.addr %s1438, 8
        %s1440 = scalar_lea.vmem %s7, %s1439
        // Predicated region
        $region60: #{deep_flatten_forward.6} parent=47 // pred_check
          %p1441 = pneg %p189
        $region61: #{deep_flatten_forward.6} parent=47 // pred_check_branch
          %1443 = sbr.rel (%p1441) target = $region63
        $region62: #{deep_flatten_forward.6} parent=47 // pred_region
          _
        $region63: #{deep_flatten_forward.6} parent=47 // pred_fallthru
          _
      $region48: #{deep_flatten_forward.6} parent=5 // pred_fallthru
        _
      %p1444 = scmp.le.s32.totalorder 2, %s14
      // Predicated region
      $region64: #{deep_flatten_forward.6} parent=5 // pred_check
        %p1445 = pneg %p1444
      $region65: #{deep_flatten_forward.6} parent=5 // pred_check_branch
        %1447 = sbr.rel (%p1445) target = $region67
      $region66: #{deep_flatten_forward.6} parent=5 // pred_region
        %s1448 = ssub.s32 %s14, 2
        // Predicated region
        $region68: #{deep_flatten_forward.6} parent=66 // pred_check
          %p1449 = pneg %p195
        $region69: #{deep_flatten_forward.6} parent=66 // pred_check_branch
          %1451 = sbr.rel (%p1449) target = $region71
        $region70: #{deep_flatten_forward.6} parent=66 // pred_region
          %p1452 = scmp.lt.s32.totalorder %s20, 1
          %s1453 = scalar_select %p1452, %s20, 1
          %s1454 = smul.addr %s1453, 2
          %s1455 = smul.addr %s1454, 8
          %s1456 = scalar_lea.vmem %s7, %s1455
        $region71: #{deep_flatten_forward.6} parent=66 // pred_fallthru
          _
      $region67: #{deep_flatten_forward.6} parent=5 // pred_fallthru
        _
    $region6: #{deep_flatten_forward.6} parent=1 // loop_footer
      %s18 = sadd.s32 1, %s14
    $region7: #{deep_flatten_forward.6} parent=1 // loop_footer_branch
      %13 = sbr.rel target = $region3
    $region8: #{deep_flatten_forward.6} parent=1 // loop_exit
      _
    %1457 = vsyncpa [#allocation5], 1
    %s1458 = scalar_lea.sflag [#allocation5], 1
    %1459 = vsyncpa %s1458, 1

// kernel: deep_flatten_forward.8
$region0: #{deep_flatten_forward.8}
  #allocation0 [shape = 'u32[]', space=smem, size = 0x4, offset = 0x4, fixed_abs, tag = 'smem constant byte address 0x4 - core index']
  #allocation1 [shape = 'u32[72,128]{1,0:T(1,128)}', space=vmem, size = 0x9000, scoped, tag = 'internal scratch']
  #allocation2 [shape = 'f32[8,768]{1,0:T(8,128)}', space=vmem, size = 0x6000, scoped, tag = 'scratch operand']
  #allocation3 [shape = 'f32[8,256]{1,0:T(8,128)}', space=vmem, size = 0x2000, scoped, tag = 'scratch operand']
  %s0 = inlined_call_operand.vmem [shape: f32[16,256], index: 0, kind: input, shape index: {}]
  %s1 = inlined_call_operand.hbm [shape: bf16[256,768], index: 1, kind: input, shape index: {}]
  %s2 = inlined_call_operand.vmem [shape: f32[1,768], index: 2, kind: input, shape index: {}]
  %s3 = inlined_call_operand.hbm [shape: bf16[256,256], index: 3, kind: input, shape index: {}]
  %s4 = inlined_call_operand.vmem [shape: f32[1,256], index: 4, kind: input, shape index: {}]
  %s5 = inlined_call_operand.vmem [shape: f32[1,256], index: 5, kind: input, shape index: {}]
  %s6 = inlined_call_operand.vmem [shape: f32[1,256], index: 6, kind: input, shape index: {}]
  %s7 = inlined_call_operand.vmem [shape: f32[16,256], index: 7, kind: output, shape index: {}]
  %s8 = sld [smem:[#allocation0]]
  $region76: #{deep_flatten_forward.8} parent=0
    _
  %s10 = ssub.s32 1, %s8
  %s11 = scalar_select 0, %s10, %s8
  $region1: #{deep_flatten_forward.8} parent=0
    #allocation4 [shape = 'u8[393216]{0}', space=vmem, size = 0x60000, scoped, tag = 'input window, operand 1, single buffered']
    #allocation5 [shape = 's32[2]{0}', space=sflag, size = 0x8, scoped, tag = 'scoped memory for deep_flatten_forward.8']
    #allocation6 [shape = 'u8[131072]{0}', space=vmem, size = 0x20000, scoped, tag = 'input window, operand 3, single buffered']
    #allocation7 [shape = 's32[1]{0}', space=sflag, size = 0x4, scoped, tag = 'scoped memory for deep_flatten_forward.8']
    %12 = vsyncpa [#allocation5], 0
    %13 = vsyncpa [#allocation7], 0
    loop: start=0, step=1, limit=4
    $region2: #{deep_flatten_forward.8} parent=1 // loop_pre_header
      _
    $region3: #{deep_flatten_forward.8} parent=1 // loop_header
      %s15 = sphi 0, %s19
      %p16 = scmp.ge.s32.totalorder %s15, 4
      %s25 = sphi 0, %s27
      %s28 = sphi 0, %s25
      %s29 = sphi 0, %s28
      %s45 = sphi 0, %s29
      %s49 = sphi 0, %s49
      %s51 = sphi 0, %s49
      %s52 = sphi 0, %s51
      %s66 = sphi 0, %s52
      %s70 = sphi 0, %s70
      %s72 = sphi 0, %s70
      %s73 = sphi 0, %s72
      %s87 = sphi 0, %s73
      %s91 = sphi 0, %s91
      %s93 = sphi 0, %s91
      %s94 = sphi 0, %s93
      %s108 = sphi 0, %s94
      %s112 = sphi 0, %s112
      %s114 = sphi 0, %s112
      %s115 = sphi 0, %s114
      %s129 = sphi 0, %s115
      %s133 = sphi 0, %s133
      %s135 = sphi 0, %s133
      %s136 = sphi 0, %s135
      %s150 = sphi 0, %s136
      %s154 = sphi 0, %s154
      %s156 = sphi 0, %s154
      %s157 = sphi 0, %s156
      %s171 = sphi 0, %s157
      %s177 = sphi 0, %s179
      %s180 = sphi 0, %s177
      %s181 = sphi 0, %s180
      %s197 = sphi 0, %s181
    $region4: #{deep_flatten_forward.8} parent=1 // loop_header_branch
      %18 = sbr.rel (%p16) target = $region8
    $region5: #{deep_flatten_forward.8} parent=1 // loop_body
      %s20 = ssub.s32 %s15, 1
      %s21 = ssub.s32 %s15, 2
      %s22 = sadd.s32 %s15, 1
      %s23 = ssub.s32 %s15, %s22
      %p24 = scmp.eq.s32.totalorder %s23, 0
      %s26 = sadd.s32 %s25, 1
      %s27 = scalar_select %p24, %s25, %s26
      %p30 = pneg %p24
      %p31 = scmp.eq.s32.totalorder %s15, 1
      %p32 = por %p30, %p31
      %p33 = scmp.ne.s32.totalorder %s25, %s28
      %p34 = scmp.eq.s32.totalorder %s15, 0
      %p35 = por %p33, %p34
      %p36 = scmp.ne.s32.totalorder %s25, %s28
      %p37 = scmp.eq.s32.totalorder %s20, 1
      %p38 = por %p36, %p37
      %p39 = scmp.ne.s32.totalorder %s28, %s29
      %p40 = scmp.eq.s32.totalorder %s20, 0
      %p41 = por %p39, %p40
      %p42 = scmp.ne.s32.totalorder %s28, %s29
      %p43 = scmp.eq.s32.totalorder %s21, 1
      %p44 = por %p42, %p43
      %p46 = scmp.ne.s32.totalorder %s29, %s45
      %p47 = scmp.eq.s32.totalorder %s21, 0
      %p48 = por %p46, %p47
      %s50 = sadd.s32 %s49, 1
      %p53 = scmp.eq.s32.totalorder %s15, 1
      %p54 = scmp.ne.s32.totalorder %s49, %s51
      %p55 = scmp.eq.s32.totalorder %s15, 0
      %p56 = por %p54, %p55
      %p57 = scmp.ne.s32.totalorder %s49, %s51
      %p58 = scmp.eq.s32.totalorder %s20, 1
      %p59 = por %p57, %p58
      %p60 = scmp.ne.s32.totalorder %s51, %s52
      %p61 = scmp.eq.s32.totalorder %s20, 0
      %p62 = por %p60, %p61
      %p63 = scmp.ne.s32.totalorder %s51, %s52
      %p64 = scmp.eq.s32.totalorder %s21, 1
      %p65 = por %p63, %p64
      %p67 = scmp.ne.s32.totalorder %s52, %s66
      %p68 = scmp.eq.s32.totalorder %s21, 0
      %p69 = por %p67, %p68
      %s71 = sadd.s32 %s70, 1
      %p74 = scmp.eq.s32.totalorder %s15, 1
      %p75 = scmp.ne.s32.totalorder %s70, %s72
      %p76 = scmp.eq.s32.totalorder %s15, 0
      %p77 = por %p75, %p76
      %p78 = scmp.ne.s32.totalorder %s70, %s72
      %p79 = scmp.eq.s32.totalorder %s20, 1
      %p80 = por %p78, %p79
      %p81 = scmp.ne.s32.totalorder %s72, %s73
      %p82 = scmp.eq.s32.totalorder %s20, 0
      %p83 = por %p81, %p82
      %p84 = scmp.ne.s32.totalorder %s72, %s73
      %p85 = scmp.eq.s32.totalorder %s21, 1
      %p86 = por %p84, %p85
      %p88 = scmp.ne.s32.totalorder %s73, %s87
      %p89 = scmp.eq.s32.totalorder %s21, 0
      %p90 = por %p88, %p89
      %s92 = sadd.s32 %s91, 1
      %p95 = scmp.eq.s32.totalorder %s15, 1
      %p96 = scmp.ne.s32.totalorder %s91, %s93
      %p97 = scmp.eq.s32.totalorder %s15, 0
      %p98 = por %p96, %p97
      %p99 = scmp.ne.s32.totalorder %s91, %s93
      %p100 = scmp.eq.s32.totalorder %s20, 1
      %p101 = por %p99, %p100
      %p102 = scmp.ne.s32.totalorder %s93, %s94
      %p103 = scmp.eq.s32.totalorder %s20, 0
      %p104 = por %p102, %p103
      %p105 = scmp.ne.s32.totalorder %s93, %s94
      %p106 = scmp.eq.s32.totalorder %s21, 1
      %p107 = por %p105, %p106
      %p109 = scmp.ne.s32.totalorder %s94, %s108
      %p110 = scmp.eq.s32.totalorder %s21, 0
      %p111 = por %p109, %p110
      %s113 = sadd.s32 %s112, 1
      %p116 = scmp.eq.s32.totalorder %s15, 1
      %p117 = scmp.ne.s32.totalorder %s112, %s114
      %p118 = scmp.eq.s32.totalorder %s15, 0
      %p119 = por %p117, %p118
      %p120 = scmp.ne.s32.totalorder %s112, %s114
      %p121 = scmp.eq.s32.totalorder %s20, 1
      %p122 = por %p120, %p121
      %p123 = scmp.ne.s32.totalorder %s114, %s115
      %p124 = scmp.eq.s32.totalorder %s20, 0
      %p125 = por %p123, %p124
      %p126 = scmp.ne.s32.totalorder %s114, %s115
      %p127 = scmp.eq.s32.totalorder %s21, 1
      %p128 = por %p126, %p127
      %p130 = scmp.ne.s32.totalorder %s115, %s129
      %p131 = scmp.eq.s32.totalorder %s21, 0
      %p132 = por %p130, %p131
      %s134 = sadd.s32 %s133, 1
      %p137 = scmp.eq.s32.totalorder %s15, 1
      %p138 = scmp.ne.s32.totalorder %s133, %s135
      %p139 = scmp.eq.s32.totalorder %s15, 0
      %p140 = por %p138, %p139
      %p141 = scmp.ne.s32.totalorder %s133, %s135
      %p142 = scmp.eq.s32.totalorder %s20, 1
      %p143 = por %p141, %p142
      %p144 = scmp.ne.s32.totalorder %s135, %s136
      %p145 = scmp.eq.s32.totalorder %s20, 0
      %p146 = por %p144, %p145
      %p147 = scmp.ne.s32.totalorder %s135, %s136
      %p148 = scmp.eq.s32.totalorder %s21, 1
      %p149 = por %p147, %p148
      %p151 = scmp.ne.s32.totalorder %s136, %s150
      %p152 = scmp.eq.s32.totalorder %s21, 0
      %p153 = por %p151, %p152
      %s155 = sadd.s32 %s154, 1
      %p158 = scmp.eq.s32.totalorder %s15, 1
      %p159 = scmp.ne.s32.totalorder %s154, %s156
      %p160 = scmp.eq.s32.totalorder %s15, 0
      %p161 = por %p159, %p160
      %p162 = scmp.ne.s32.totalorder %s154, %s156
      %p163 = scmp.eq.s32.totalorder %s20, 1
      %p164 = por %p162, %p163
      %p165 = scmp.ne.s32.totalorder %s156, %s157
      %p166 = scmp.eq.s32.totalorder %s20, 0
      %p167 = por %p165, %p166
      %p168 = scmp.ne.s32.totalorder %s156, %s157
      %p169 = scmp.eq.s32.totalorder %s21, 1
      %p170 = por %p168, %p169
      %p172 = scmp.ne.s32.totalorder %s157, %s171
      %p173 = scmp.eq.s32.totalorder %s21, 0
      %p174 = por %p172, %p173
      %s175 = ssub.s32 %s15, %s22
      %p176 = scmp.eq.s32.totalorder %s175, 0
      %s178 = sadd.s32 %s177, 1
      %s179 = scalar_select %p176, %s177, %s178
      %p182 = pneg %p176
      %p183 = scmp.eq.s32.totalorder %s15, 1
      %p184 = por %p182, %p183
      %p185 = scmp.ne.s32.totalorder %s177, %s180
      %p186 = scmp.eq.s32.totalorder %s15, 0
      %p187 = por %p185, %p186
      %p188 = scmp.ne.s32.totalorder %s177, %s180
      %p189 = scmp.eq.s32.totalorder %s20, 1
      %p190 = por %p188, %p189
      %p191 = scmp.ne.s32.totalorder %s180, %s181
      %p192 = scmp.eq.s32.totalorder %s20, 0
      %p193 = por %p191, %p192
      %p194 = scmp.ne.s32.totalorder %s180, %s181
      %p195 = scmp.eq.s32.totalorder %s21, 1
      %p196 = por %p194, %p195
      %p198 = scmp.ne.s32.totalorder %s181, %s197
      %p199 = scmp.eq.s32.totalorder %s21, 0
      %p200 = por %p198, %p199
      %p201 = scmp.le.s32.totalorder 1, %s15
      %p202 = scmp.lt.s32.totalorder %s15, 3
      %p203 = pnand %p201, %p202
      %p204 = pneg %p203
      // Predicated region
      $region9: #{deep_flatten_forward.8} parent=5 // pred_check
        _
      $region10: #{deep_flatten_forward.8} parent=5 // pred_check_branch
        %206 = sbr.rel (%p203) target = $region12
      $region11: #{deep_flatten_forward.8} parent=5 // pred_region
        %s207 = ssub.s32 %s15, 1
        // Predicated region
        $region13: #{deep_flatten_forward.8} parent=11 // pred_check
          %p208 = pneg %p62
        $region14: #{deep_flatten_forward.8} parent=11 // pred_check_branch
          %210 = sbr.rel (%p208) target = $region16
        $region15: #{deep_flatten_forward.8} parent=11 // pred_region
          %212 = vsyncadd [#allocation5], 0
          %s213 = sshll.u32 %s1, 4
          %s214 = int_to_ptr.hbm [resolvable:$true] %s213
          %s215 = sshll.u32 [#allocation4], 4
          %s216 = int_to_ptr.vmem [resolvable:$true] %s215
          %221 = dma.hbm_to_vmem [thread:$0]  %s214, 12288, %s216, [#allocation5], 384, 384, 24
        $region16: #{deep_flatten_forward.8} parent=11 // pred_fallthru
          _
        // Predicated region
        $region17: #{deep_flatten_forward.8} parent=11 // pred_check
          %p222 = pneg %p83
        $region18: #{deep_flatten_forward.8} parent=11 // pred_check_branch
          %224 = sbr.rel (%p222) target = $region20
        $region19: #{deep_flatten_forward.8} parent=11 // pred_region
          _
        $region20: #{deep_flatten_forward.8} parent=11 // pred_fallthru
          _
        // Predicated region
        $region21: #{deep_flatten_forward.8} parent=11 // pred_check
          %p225 = pneg %p104
        $region22: #{deep_flatten_forward.8} parent=11 // pred_check_branch
          %227 = sbr.rel (%p225) target = $region24
        $region23: #{deep_flatten_forward.8} parent=11 // pred_region
          %229 = vsyncadd [#allocation7], 0
          %s230 = sshll.u32 %s3, 4
          %s231 = int_to_ptr.hbm [resolvable:$true] %s230
          %s232 = sshll.u32 [#allocation6], 4
          %s233 = int_to_ptr.vmem [resolvable:$true] %s232
          %238 = dma.hbm_to_vmem [thread:$0]  %s231, 4096, %s233, [#allocation7], 128, 128, 8
        $region24: #{deep_flatten_forward.8} parent=11 // pred_fallthru
          _
        // Predicated region
        $region25: #{deep_flatten_forward.8} parent=11 // pred_check
          %p239 = pneg %p125
        $region26: #{deep_flatten_forward.8} parent=11 // pred_check_branch
          %241 = sbr.rel (%p239) target = $region28
        $region27: #{deep_flatten_forward.8} parent=11 // pred_region
          _
        $region28: #{deep_flatten_forward.8} parent=11 // pred_fallthru
          _
        // Predicated region
        $region29: #{deep_flatten_forward.8} parent=11 // pred_check
          %p242 = pneg %p146
        $region30: #{deep_flatten_forward.8} parent=11 // pred_check_branch
          %244 = sbr.rel (%p242) target = $region32
        $region31: #{deep_flatten_forward.8} parent=11 // pred_region
          _
        $region32: #{deep_flatten_forward.8} parent=11 // pred_fallthru
          _
        // Predicated region
        $region33: #{deep_flatten_forward.8} parent=11 // pred_check
          %p245 = pneg %p167
        $region34: #{deep_flatten_forward.8} parent=11 // pred_check_branch
          %247 = sbr.rel (%p245) target = $region36
        $region35: #{deep_flatten_forward.8} parent=11 // pred_region
          _
        $region36: #{deep_flatten_forward.8} parent=11 // pred_fallthru
          _
      $region12: #{deep_flatten_forward.8} parent=5 // pred_fallthru
        _
      %p248 = scmp.lt.s32.totalorder %s15, 2
      // Predicated region
      $region37: #{deep_flatten_forward.8} parent=5 // pred_check
        %p249 = pneg %p248
      $region38: #{deep_flatten_forward.8} parent=5 // pred_check_branch
        %251 = sbr.rel (%p249) target = $region40
      $region39: #{deep_flatten_forward.8} parent=5 // pred_region
        // Predicated region
        $region41: #{deep_flatten_forward.8} parent=39 // pred_check
          %p252 = pneg %p35
        $region42: #{deep_flatten_forward.8} parent=39 // pred_check_branch
          %254 = sbr.rel (%p252) target = $region44
        $region43: #{deep_flatten_forward.8} parent=39 // pred_region
          %p255 = scmp.lt.s32.totalorder %s15, 1
          %s256 = scalar_select %p255, %s15, 1
          %s257 = smul.addr %s256, 2
          %s258 = smul.addr %s257, 8
          %s259 = scalar_lea.vmem %s0, %s258
        $region44: #{deep_flatten_forward.8} parent=39 // pred_fallthru
          _
      $region40: #{deep_flatten_forward.8} parent=5 // pred_fallthru
        _
      %p260 = scmp.le.s32.totalorder 1, %s15
      %p261 = scmp.lt.s32.totalorder %s15, 3
      %p262 = pnand %p260, %p261
      %p263 = pneg %p262
      // Predicated region
      $region45: #{deep_flatten_forward.8} parent=5 // pred_check
        _
      $region46: #{deep_flatten_forward.8} parent=5 // pred_check_branch
        %265 = sbr.rel (%p262) target = $region48
      $region47: #{deep_flatten_forward.8} parent=5 // pred_region
        %s266 = ssub.s32 %s15, 1
        // Predicated region
        $region49: #{deep_flatten_forward.8} parent=47 // pred_check
          %p267 = pneg %p62
        $region50: #{deep_flatten_forward.8} parent=47 // pred_check_branch
          %269 = sbr.rel (%p267) target = $region52
        $region51: #{deep_flatten_forward.8} parent=47 // pred_region
          %271 = dma.done [#allocation5], 12288
        $region52: #{deep_flatten_forward.8} parent=47 // pred_fallthru
          _
        // Predicated region
        $region53: #{deep_flatten_forward.8} parent=47 // pred_check
          %p272 = pneg %p104
        $region54: #{deep_flatten_forward.8} parent=47 // pred_check_branch
          %274 = sbr.rel (%p272) target = $region56
        $region55: #{deep_flatten_forward.8} parent=47 // pred_region
          %276 = dma.done [#allocation7], 4096
        $region56: #{deep_flatten_forward.8} parent=47 // pred_fallthru
          _
        %p277 = scmp.lt.s32.totalorder %s20, 1
        %s278 = scalar_select %p277, %s20, 1
        %s279 = smul.addr %s278, 2
        %s280 = smul.addr %s279, 8
        %s281 = scalar_lea.vmem %s0, %s280
        %p282 = pneg %p41
        %p283 = pneg %p38
        %p284 = pneg %p62
        %p285 = pneg %p59
        %p286 = pneg %p83
        %p287 = pneg %p80
        %p288 = pneg %p104
        %p289 = pneg %p101
        %p290 = pneg %p125
        %p291 = pneg %p122
        %p292 = pneg %p146
        %p293 = pneg %p143
        %p294 = pneg %p167
        %p295 = pneg %p164
        %p296 = pneg %p193
        %p297 = pneg %p190
        %p298 = scmp.lt.s32.totalorder %s20, 1
        %s299 = scalar_select %p298, %s20, 1
        %s300 = smul.addr %s299, 2
        %s301 = smul.addr %s300, 8
        %s302 = scalar_lea.vmem %s7, %s301
        %p303 = scmp.lt.s32.totalorder %s20, 1
        %s304 = scalar_select %p303, %s20, 1
        %s305 = smul.addr %s304, 2
        %s306 = smul.addr %s305, 8
        %s307 = scalar_lea.vmem %s0, %s306
        %p308 = scmp.lt.s32.totalorder %s20, 1
        %s309 = scalar_select %p308, %s20, 1
        %s310 = smul.addr %s309, 2
        %s311 = smul.addr %s310, 8
        %s312 = scalar_lea.vmem %s7, %s311
        %v314 = vld [vmem:[%s307] sm:$0xff]
        %v315 = vld [vmem:[%s307 + $0x8] sm:$0xff]
        %v316 = vpack.c.bf16 %v314, %v314
        %v317 = vpack.c.bf16 %v315, %v315
        %v318 = vld [vmem:[#allocation4] sm:$0xff]
        %v319 = vld [vmem:[#allocation4 + $0x8] sm:$0xff]
        %v320 = vld [vmem:[#allocation4 + $0x10] sm:$0xff]
        %v321 = vld [vmem:[#allocation4 + $0x18] sm:$0xff]
        %v322 = vld [vmem:[#allocation4 + $0x20] sm:$0xff]
        %v323 = vld [vmem:[#allocation4 + $0x28] sm:$0xff]
        %v324 = vld [vmem:[#allocation4 + $0x30] sm:$0xff]
        %v325 = vld [vmem:[#allocation4 + $0x38] sm:$0xff]
        %v326 = vld [vmem:[#allocation4 + $0x40] sm:$0xff]
        %v327 = vld [vmem:[#allocation4 + $0x48] sm:$0xff]
        %v328 = vld [vmem:[#allocation4 + $0x50] sm:$0xff]
        %v329 = vld [vmem:[#allocation4 + $0x58] sm:$0xff]
        %v330 = vld [vmem:[#allocation4 + $0x60] sm:$0xff]
        %v331 = vld [vmem:[#allocation4 + $0x68] sm:$0xff]
        %v332 = vld [vmem:[#allocation4 + $0x70] sm:$0xff]
        %v333 = vld [vmem:[#allocation4 + $0x78] sm:$0xff]
        %v334 = vld [vmem:[#allocation4 + $0x80] sm:$0xff]
        %v335 = vld [vmem:[#allocation4 + $0x88] sm:$0xff]
        %v336 = vld [vmem:[#allocation4 + $0x90] sm:$0xff]
        %v337 = vld [vmem:[#allocation4 + $0x98] sm:$0xff]
        %v338 = vld [vmem:[#allocation4 + $0xa0] sm:$0xff]
        %v339 = vld [vmem:[#allocation4 + $0xa8] sm:$0xff]
        %v340 = vld [vmem:[#allocation4 + $0xb0] sm:$0xff]
        %v341 = vld [vmem:[#allocation4 + $0xb8] sm:$0xff]
        %v342 = vld [vmem:[#allocation4 + $0xc0] sm:$0xff]
        %v343 = vld [vmem:[#allocation4 + $0xc8] sm:$0xff]
        %v344 = vld [vmem:[#allocation4 + $0xd0] sm:$0xff]
        %v345 = vld [vmem:[#allocation4 + $0xd8] sm:$0xff]
        %v346 = vld [vmem:[#allocation4 + $0xe0] sm:$0xff]
        %v347 = vld [vmem:[#allocation4 + $0xe8] sm:$0xff]
        %v348 = vld [vmem:[#allocation4 + $0xf0] sm:$0xff]
        %v349 = vld [vmem:[#allocation4 + $0xf8] sm:$0xff]
        %v350 = vld [vmem:[#allocation4 + $0x100] sm:$0xff]
        %v351 = vld [vmem:[#allocation4 + $0x108] sm:$0xff]
        %v352 = vld [vmem:[#allocation4 + $0x110] sm:$0xff]
        %v353 = vld [vmem:[#allocation4 + $0x118] sm:$0xff]
        %v354 = vld [vmem:[#allocation4 + $0x120] sm:$0xff]
        %v355 = vld [vmem:[#allocation4 + $0x128] sm:$0xff]
        %v356 = vld [vmem:[#allocation4 + $0x130] sm:$0xff]
        %v357 = vld [vmem:[#allocation4 + $0x138] sm:$0xff]
        %v358 = vld [vmem:[#allocation4 + $0x140] sm:$0xff]
        %v359 = vld [vmem:[#allocation4 + $0x148] sm:$0xff]
        %v360 = vld [vmem:[#allocation4 + $0x150] sm:$0xff]
        %v361 = vld [vmem:[#allocation4 + $0x158] sm:$0xff]
        %v362 = vld [vmem:[#allocation4 + $0x160] sm:$0xff]
        %v363 = vld [vmem:[#allocation4 + $0x168] sm:$0xff]
        %v364 = vld [vmem:[#allocation4 + $0x170] sm:$0xff]
        %v365 = vld [vmem:[#allocation4 + $0x178] sm:$0xff]
        %v366 = vld [vmem:[#allocation4 + $0x180] sm:$0xff]
        %v367 = vld [vmem:[#allocation4 + $0x188] sm:$0xff]
        %v368 = vld [vmem:[#allocation4 + $0x190] sm:$0xff]
        %v369 = vld [vmem:[#allocation4 + $0x198] sm:$0xff]
        %v370 = vld [vmem:[#allocation4 + $0x1a0] sm:$0xff]
        %v371 = vld [vmem:[#allocation4 + $0x1a8] sm:$0xff]
        %v372 = vld [vmem:[#allocation4 + $0x1b0] sm:$0xff]
        %v373 = vld [vmem:[#allocation4 + $0x1b8] sm:$0xff]
        %v374 = vld [vmem:[#allocation4 + $0x1c0] sm:$0xff]
        %v375 = vld [vmem:[#allocation4 + $0x1c8] sm:$0xff]
        %v376 = vld [vmem:[#allocation4 + $0x1d0] sm:$0xff]
        %v377 = vld [vmem:[#allocation4 + $0x1d8] sm:$0xff]
        %v378 = vld [vmem:[#allocation4 + $0x1e0] sm:$0xff]
        %v379 = vld [vmem:[#allocation4 + $0x1e8] sm:$0xff]
        %v380 = vld [vmem:[#allocation4 + $0x1f0] sm:$0xff]
        %v381 = vld [vmem:[#allocation4 + $0x1f8] sm:$0xff]
        %v382 = vld [vmem:[#allocation4 + $0x200] sm:$0xff]
        %v383 = vld [vmem:[#allocation4 + $0x208] sm:$0xff]
        %v384 = vld [vmem:[#allocation4 + $0x210] sm:$0xff]
        %v385 = vld [vmem:[#allocation4 + $0x218] sm:$0xff]
        %v386 = vld [vmem:[#allocation4 + $0x220] sm:$0xff]
        %v387 = vld [vmem:[#allocation4 + $0x228] sm:$0xff]
        %v388 = vld [vmem:[#allocation4 + $0x230] sm:$0xff]
        %v389 = vld [vmem:[#allocation4 + $0x238] sm:$0xff]
        %v390 = vld [vmem:[#allocation4 + $0x240] sm:$0xff]
        %v391 = vld [vmem:[#allocation4 + $0x248] sm:$0xff]
        %v392 = vld [vmem:[#allocation4 + $0x250] sm:$0xff]
        %v393 = vld [vmem:[#allocation4 + $0x258] sm:$0xff]
        %v394 = vld [vmem:[#allocation4 + $0x260] sm:$0xff]
        %v395 = vld [vmem:[#allocation4 + $0x268] sm:$0xff]
        %v396 = vld [vmem:[#allocation4 + $0x270] sm:$0xff]
        %v397 = vld [vmem:[#allocation4 + $0x278] sm:$0xff]
        %v398 = vld [vmem:[#allocation4 + $0x280] sm:$0xff]
        %v399 = vld [vmem:[#allocation4 + $0x288] sm:$0xff]
        %v400 = vld [vmem:[#allocation4 + $0x290] sm:$0xff]
        %v401 = vld [vmem:[#allocation4 + $0x298] sm:$0xff]
        %v402 = vld [vmem:[#allocation4 + $0x2a0] sm:$0xff]
        %v403 = vld [vmem:[#allocation4 + $0x2a8] sm:$0xff]
        %v404 = vld [vmem:[#allocation4 + $0x2b0] sm:$0xff]
        %v405 = vld [vmem:[#allocation4 + $0x2b8] sm:$0xff]
        %v406 = vld [vmem:[#allocation4 + $0x2c0] sm:$0xff]
        %v407 = vld [vmem:[#allocation4 + $0x2c8] sm:$0xff]
        %v408 = vld [vmem:[#allocation4 + $0x2d0] sm:$0xff]
        %v409 = vld [vmem:[#allocation4 + $0x2d8] sm:$0xff]
        %v410 = vld [vmem:[#allocation4 + $0x2e0] sm:$0xff]
        %v411 = vld [vmem:[#allocation4 + $0x2e8] sm:$0xff]
        %v412 = vld [vmem:[#allocation4 + $0x2f0] sm:$0xff]
        %v413 = vld [vmem:[#allocation4 + $0x2f8] sm:$0xff]
        %v414 = vld [vmem:[%s2] sm:$0x3f]
        %v416 = vperm.slane %v414, 0
        %v417 = vperm.slane %v414, 1
        %v418 = vperm.slane %v414, 2
        %v419 = vperm.slane %v414, 3
        %v420 = vperm.slane %v414, 4
        %v421 = vperm.slane %v414, 5
        %v524 = vunpack.c.l.b16 %v318
        %v525 = vunpack.c.h.b16 %v318
        %v526 = vunpack.c.l.b16 %v319
        %v527 = vunpack.c.h.b16 %v319
        %v528 = vunpack.c.l.b16 %v320
        %v529 = vunpack.c.h.b16 %v320
        %v530 = vunpack.c.l.b16 %v321
        %v531 = vunpack.c.h.b16 %v321
        %v532 = vunpack.c.l.b16 %v322
        %v533 = vunpack.c.h.b16 %v322
        %v534 = vunpack.c.l.b16 %v323
        %v535 = vunpack.c.h.b16 %v323
        %v536 = vunpack.c.l.b16 %v324
        %v537 = vunpack.c.h.b16 %v324
        %v538 = vunpack.c.l.b16 %v325
        %v539 = vunpack.c.h.b16 %v325
        %v540 = vunpack.c.l.b16 %v326
        %v541 = vunpack.c.h.b16 %v326
        %v542 = vunpack.c.l.b16 %v327
        %v543 = vunpack.c.h.b16 %v327
        %v544 = vunpack.c.l.b16 %v328
        %v545 = vunpack.c.h.b16 %v328
        %v546 = vunpack.c.l.b16 %v329
        %v547 = vunpack.c.h.b16 %v329
        %v548 = vunpack.c.l.b16 %v330
        %v549 = vunpack.c.h.b16 %v330
        %v550 = vunpack.c.l.b16 %v331
        %v551 = vunpack.c.h.b16 %v331
        %v552 = vunpack.c.l.b16 %v332
        %v553 = vunpack.c.h.b16 %v332
        %v554 = vunpack.c.l.b16 %v333
        %v555 = vunpack.c.h.b16 %v333
        %v556 = vunpack.c.l.b16 %v334
        %v557 = vunpack.c.h.b16 %v334
        %v558 = vunpack.c.l.b16 %v335
        %v559 = vunpack.c.h.b16 %v335
        %v560 = vunpack.c.l.b16 %v336
        %v561 = vunpack.c.h.b16 %v336
        %v562 = vunpack.c.l.b16 %v337
        %v563 = vunpack.c.h.b16 %v337
        %v564 = vunpack.c.l.b16 %v338
        %v565 = vunpack.c.h.b16 %v338
        %v566 = vunpack.c.l.b16 %v339
        %v567 = vunpack.c.h.b16 %v339
        %v568 = vunpack.c.l.b16 %v340
        %v569 = vunpack.c.h.b16 %v340
        %v570 = vunpack.c.l.b16 %v341
        %v571 = vunpack.c.h.b16 %v341
        %v572 = vunpack.c.l.b16 %v342
        %v573 = vunpack.c.h.b16 %v342
        %v574 = vunpack.c.l.b16 %v343
        %v575 = vunpack.c.h.b16 %v343
        %v576 = vunpack.c.l.b16 %v344
        %v577 = vunpack.c.h.b16 %v344
        %v578 = vunpack.c.l.b16 %v345
        %v579 = vunpack.c.h.b16 %v345
        %v580 = vunpack.c.l.b16 %v346
        %v581 = vunpack.c.h.b16 %v346
        %v582 = vunpack.c.l.b16 %v347
        %v583 = vunpack.c.h.b16 %v347
        %v584 = vunpack.c.l.b16 %v348
        %v585 = vunpack.c.h.b16 %v348
        %v586 = vunpack.c.l.b16 %v349
        %v587 = vunpack.c.h.b16 %v349
        %v588 = vunpack.c.l.b16 %v350
        %v589 = vunpack.c.h.b16 %v350
        %v590 = vunpack.c.l.b16 %v351
        %v591 = vunpack.c.h.b16 %v351
        %v592 = vunpack.c.l.b16 %v352
        %v593 = vunpack.c.h.b16 %v352
        %v594 = vunpack.c.l.b16 %v353
        %v595 = vunpack.c.h.b16 %v353
        %v596 = vunpack.c.l.b16 %v354
        %v597 = vunpack.c.h.b16 %v354
        %v598 = vunpack.c.l.b16 %v355
        %v599 = vunpack.c.h.b16 %v355
        %v600 = vunpack.c.l.b16 %v356
        %v601 = vunpack.c.h.b16 %v356
        %v602 = vunpack.c.l.b16 %v357
        %v603 = vunpack.c.h.b16 %v357
        %v604 = vunpack.c.l.b16 %v358
        %v605 = vunpack.c.h.b16 %v358
        %v606 = vunpack.c.l.b16 %v359
        %v607 = vunpack.c.h.b16 %v359
        %v608 = vunpack.c.l.b16 %v360
        %v609 = vunpack.c.h.b16 %v360
        %v610 = vunpack.c.l.b16 %v361
        %v611 = vunpack.c.h.b16 %v361
        %v612 = vunpack.c.l.b16 %v362
        %v613 = vunpack.c.h.b16 %v362
        %v614 = vunpack.c.l.b16 %v363
        %v615 = vunpack.c.h.b16 %v363
        %v616 = vunpack.c.l.b16 %v364
        %v617 = vunpack.c.h.b16 %v364
        %v618 = vunpack.c.l.b16 %v365
        %v619 = vunpack.c.h.b16 %v365
        %v620 = vunpack.c.l.b16 %v366
        %v621 = vunpack.c.h.b16 %v366
        %v622 = vunpack.c.l.b16 %v367
        %v623 = vunpack.c.h.b16 %v367
        %v624 = vunpack.c.l.b16 %v368
        %v625 = vunpack.c.h.b16 %v368
        %v626 = vunpack.c.l.b16 %v369
        %v627 = vunpack.c.h.b16 %v369
        %v628 = vunpack.c.l.b16 %v370
        %v629 = vunpack.c.h.b16 %v370
        %v630 = vunpack.c.l.b16 %v371
        %v631 = vunpack.c.h.b16 %v371
        %v632 = vunpack.c.l.b16 %v372
        %v633 = vunpack.c.h.b16 %v372
        %v634 = vunpack.c.l.b16 %v373
        %v635 = vunpack.c.h.b16 %v373
        %v636 = vunpack.c.l.b16 %v374
        %v637 = vunpack.c.h.b16 %v374
        %v638 = vunpack.c.l.b16 %v375
        %v639 = vunpack.c.h.b16 %v375
        %v640 = vunpack.c.l.b16 %v376
        %v641 = vunpack.c.h.b16 %v376
        %v642 = vunpack.c.l.b16 %v377
        %v643 = vunpack.c.h.b16 %v377
        %v644 = vunpack.c.l.b16 %v378
        %v645 = vunpack.c.h.b16 %v378
        %v646 = vunpack.c.l.b16 %v379
        %v647 = vunpack.c.h.b16 %v379
        %v648 = vunpack.c.l.b16 %v380
        %v649 = vunpack.c.h.b16 %v380
        %v650 = vunpack.c.l.b16 %v381
        %v651 = vunpack.c.h.b16 %v381
        %v652 = vunpack.c.l.b16 %v382
        %v653 = vunpack.c.h.b16 %v382
        %v654 = vunpack.c.l.b16 %v383
        %v655 = vunpack.c.h.b16 %v383
        %v656 = vunpack.c.l.b16 %v384
        %v657 = vunpack.c.h.b16 %v384
        %v658 = vunpack.c.l.b16 %v385
        %v659 = vunpack.c.h.b16 %v385
        %v660 = vunpack.c.l.b16 %v386
        %v661 = vunpack.c.h.b16 %v386
        %v662 = vunpack.c.l.b16 %v387
        %v663 = vunpack.c.h.b16 %v387
        %v664 = vunpack.c.l.b16 %v388
        %v665 = vunpack.c.h.b16 %v388
        %v666 = vunpack.c.l.b16 %v389
        %v667 = vunpack.c.h.b16 %v389
        %v668 = vunpack.c.l.b16 %v390
        %v669 = vunpack.c.h.b16 %v390
        %v670 = vunpack.c.l.b16 %v391
        %v671 = vunpack.c.h.b16 %v391
        %v672 = vunpack.c.l.b16 %v392
        %v673 = vunpack.c.h.b16 %v392
        %v674 = vunpack.c.l.b16 %v393
        %v675 = vunpack.c.h.b16 %v393
        %v676 = vunpack.c.l.b16 %v394
        %v677 = vunpack.c.h.b16 %v394
        %v678 = vunpack.c.l.b16 %v395
        %v679 = vunpack.c.h.b16 %v395
        %v680 = vunpack.c.l.b16 %v396
        %v681 = vunpack.c.h.b16 %v396
        %v682 = vunpack.c.l.b16 %v397
        %v683 = vunpack.c.h.b16 %v397
        %v684 = vunpack.c.l.b16 %v398
        %v685 = vunpack.c.h.b16 %v398
        %v686 = vunpack.c.l.b16 %v399
        %v687 = vunpack.c.h.b16 %v399
        %v688 = vunpack.c.l.b16 %v400
        %v689 = vunpack.c.h.b16 %v400
        %v690 = vunpack.c.l.b16 %v401
        %v691 = vunpack.c.h.b16 %v401
        %v692 = vunpack.c.l.b16 %v402
        %v693 = vunpack.c.h.b16 %v402
        %v694 = vunpack.c.l.b16 %v403
        %v695 = vunpack.c.h.b16 %v403
        %v696 = vunpack.c.l.b16 %v404
        %v697 = vunpack.c.h.b16 %v404
        %v698 = vunpack.c.l.b16 %v405
        %v699 = vunpack.c.h.b16 %v405
        %v700 = vunpack.c.l.b16 %v406
        %v701 = vunpack.c.h.b16 %v406
        %v702 = vunpack.c.l.b16 %v407
        %v703 = vunpack.c.h.b16 %v407
        %v704 = vunpack.c.l.b16 %v408
        %v705 = vunpack.c.h.b16 %v408
        %v706 = vunpack.c.l.b16 %v409
        %v707 = vunpack.c.h.b16 %v409
        %v708 = vunpack.c.l.b16 %v410
        %v709 = vunpack.c.h.b16 %v410
        %v710 = vunpack.c.l.b16 %v411
        %v711 = vunpack.c.h.b16 %v411
        %v712 = vunpack.c.l.b16 %v412
        %v713 = vunpack.c.h.b16 %v412
        %v714 = vunpack.c.l.b16 %v413
        %v715 = vunpack.c.h.b16 %v413
        %v716 = vpack.c.b16 %v530, %v524
        %v717 = vpack.c.b16 %v531, %v525
        %v718 = vpack.c.b16 %v532, %v526
        %v719 = vpack.c.b16 %v533, %v527
        %v720 = vpack.c.b16 %v534, %v528
        %v721 = vpack.c.b16 %v535, %v529
        %v722 = vpack.c.b16 %v542, %v536
        %v723 = vpack.c.b16 %v543, %v537
        %v724 = vpack.c.b16 %v544, %v538
        %v725 = vpack.c.b16 %v545, %v539
        %v726 = vpack.c.b16 %v546, %v540
        %v727 = vpack.c.b16 %v547, %v541
        %v728 = vpack.c.b16 %v554, %v548
        %v729 = vpack.c.b16 %v555, %v549
        %v730 = vpack.c.b16 %v556, %v550
        %v731 = vpack.c.b16 %v557, %v551
        %v732 = vpack.c.b16 %v558, %v552
        %v733 = vpack.c.b16 %v559, %v553
        %v734 = vpack.c.b16 %v566, %v560
        %v735 = vpack.c.b16 %v567, %v561
        %v736 = vpack.c.b16 %v568, %v562
        %v737 = vpack.c.b16 %v569, %v563
        %v738 = vpack.c.b16 %v570, %v564
        %v739 = vpack.c.b16 %v571, %v565
        %v740 = vpack.c.b16 %v578, %v572
        %v741 = vpack.c.b16 %v579, %v573
        %v742 = vpack.c.b16 %v580, %v574
        %v743 = vpack.c.b16 %v581, %v575
        %v744 = vpack.c.b16 %v582, %v576
        %v745 = vpack.c.b16 %v583, %v577
        %v746 = vpack.c.b16 %v590, %v584
        %v747 = vpack.c.b16 %v591, %v585
        %v748 = vpack.c.b16 %v592, %v586
        %v749 = vpack.c.b16 %v593, %v587
        %v750 = vpack.c.b16 %v594, %v588
        %v751 = vpack.c.b16 %v595, %v589
        %v752 = vpack.c.b16 %v602, %v596
        %v753 = vpack.c.b16 %v603, %v597
        %v754 = vpack.c.b16 %v604, %v598
        %v755 = vpack.c.b16 %v605, %v599
        %v756 = vpack.c.b16 %v606, %v600
        %v757 = vpack.c.b16 %v607, %v601
        %v758 = vpack.c.b16 %v614, %v608
        %v759 = vpack.c.b16 %v615, %v609
        %v760 = vpack.c.b16 %v616, %v610
        %v761 = vpack.c.b16 %v617, %v611
        %v762 = vpack.c.b16 %v618, %v612
        %v763 = vpack.c.b16 %v619, %v613
        %v764 = vpack.c.b16 %v626, %v620
        %v765 = vpack.c.b16 %v627, %v621
        %v766 = vpack.c.b16 %v628, %v622
        %v767 = vpack.c.b16 %v629, %v623
        %v768 = vpack.c.b16 %v630, %v624
        %v769 = vpack.c.b16 %v631, %v625
        %v770 = vpack.c.b16 %v638, %v632
        %v771 = vpack.c.b16 %v639, %v633
        %v772 = vpack.c.b16 %v640, %v634
        %v773 = vpack.c.b16 %v641, %v635
        %v774 = vpack.c.b16 %v642, %v636
        %v775 = vpack.c.b16 %v643, %v637
        %v776 = vpack.c.b16 %v650, %v644
        %v777 = vpack.c.b16 %v651, %v645
        %v778 = vpack.c.b16 %v652, %v646
        %v779 = vpack.c.b16 %v653, %v647
        %v780 = vpack.c.b16 %v654, %v648
        %v781 = vpack.c.b16 %v655, %v649
        %v782 = vpack.c.b16 %v662, %v656
        %v783 = vpack.c.b16 %v663, %v657
        %v784 = vpack.c.b16 %v664, %v658
        %v785 = vpack.c.b16 %v665, %v659
        %v786 = vpack.c.b16 %v666, %v660
        %v787 = vpack.c.b16 %v667, %v661
        %v788 = vpack.c.b16 %v674, %v668
        %v789 = vpack.c.b16 %v675, %v669
        %v790 = vpack.c.b16 %v676, %v670
        %v791 = vpack.c.b16 %v677, %v671
        %v792 = vpack.c.b16 %v678, %v672
        %v793 = vpack.c.b16 %v679, %v673
        %v794 = vpack.c.b16 %v686, %v680
        %v795 = vpack.c.b16 %v687, %v681
        %v796 = vpack.c.b16 %v688, %v682
        %v797 = vpack.c.b16 %v689, %v683
        %v798 = vpack.c.b16 %v690, %v684
        %v799 = vpack.c.b16 %v691, %v685
        %v800 = vpack.c.b16 %v698, %v692
        %v801 = vpack.c.b16 %v699, %v693
        %v802 = vpack.c.b16 %v700, %v694
        %v803 = vpack.c.b16 %v701, %v695
        %v804 = vpack.c.b16 %v702, %v696
        %v805 = vpack.c.b16 %v703, %v697
        %v806 = vpack.c.b16 %v710, %v704
        %v807 = vpack.c.b16 %v711, %v705
        %v808 = vpack.c.b16 %v712, %v706
        %v809 = vpack.c.b16 %v713, %v707
        %v810 = vpack.c.b16 %v714, %v708
        %v811 = vpack.c.b16 %v715, %v709
        %908 = vmatpush.bf16.msra.mxu0 %v758
        %909 = vmatpush.bf16.msra.mxu0 %v752
        %910 = vmatpush.bf16.msra.mxu0 %v746
        %911 = vmatpush.bf16.msra.mxu0 %v740
        %912 = vmatpush.bf16.msra.mxu0 %v734
        %913 = vmatpush.bf16.msra.mxu0 %v728
        %914 = vmatpush.bf16.msra.mxu0 %v722
        %915 = vmatpush.bf16.msra.mxu0 %v716
        %916 = vmatmul.bf16.gmra.mxu0 %v316
        %v917 = vpop.f32.mrf.mxu0
        %v918 = vadd.f32 %v416, %v917
        %v919 = vpop.f32.mrf.mxu0
        %920 = vdwg.mxu0
        %921 = vmatpush.bf16.msra.mxu0 %v806
        %922 = vmatpush.bf16.msra.mxu0 %v800
        %923 = vmatpush.bf16.msra.mxu0 %v794
        %924 = vmatpush.bf16.msra.mxu0 %v788
        %925 = vmatpush.bf16.msra.mxu0 %v782
        %926 = vmatpush.bf16.msra.mxu0 %v776
        %927 = vmatpush.bf16.msra.mxu0 %v770
        %928 = vmatpush.bf16.msra.mxu0 %v764
        %929 = vmatmul.bf16.gmra.mxu0 %v317
        %v930 = vpop.f32.mrf.mxu0
        %v931 = vadd.f32 %v918, %v930
        %v932 = vpop.f32.mrf.mxu0
        %933 = vdwg.mxu0
        %934 = vmatpush.bf16.msra.mxu0 %v759
        %935 = vmatpush.bf16.msra.mxu0 %v753
        %936 = vmatpush.bf16.msra.mxu0 %v747
        %937 = vmatpush.bf16.msra.mxu0 %v741
        %938 = vmatpush.bf16.msra.mxu0 %v735
        %939 = vmatpush.bf16.msra.mxu0 %v729
        %940 = vmatpush.bf16.msra.mxu0 %v723
        %941 = vmatpush.bf16.msra.mxu0 %v717
        %942 = vmatmul.bf16.gmra.mxu0 %v316
        %v943 = vpop.f32.mrf.mxu0
        %v944 = vadd.f32 %v417, %v943
        %v945 = vpop.f32.mrf.mxu0
        %946 = vdwg.mxu0
        %947 = vmatpush.bf16.msra.mxu0 %v807
        %948 = vmatpush.bf16.msra.mxu0 %v801
        %949 = vmatpush.bf16.msra.mxu0 %v795
        %950 = vmatpush.bf16.msra.mxu0 %v789
        %951 = vmatpush.bf16.msra.mxu0 %v783
        %952 = vmatpush.bf16.msra.mxu0 %v777
        %953 = vmatpush.bf16.msra.mxu0 %v771
        %954 = vmatpush.bf16.msra.mxu0 %v765
        %955 = vmatmul.bf16.gmra.mxu0 %v317
        %v956 = vpop.f32.mrf.mxu0
        %v957 = vadd.f32 %v944, %v956
        %v958 = vpop.f32.mrf.mxu0
        %959 = vdwg.mxu0
        %960 = vmatpush.bf16.msra.mxu0 %v760
        %961 = vmatpush.bf16.msra.mxu0 %v754
        %962 = vmatpush.bf16.msra.mxu0 %v748
        %963 = vmatpush.bf16.msra.mxu0 %v742
        %964 = vmatpush.bf16.msra.mxu0 %v736
        %965 = vmatpush.bf16.msra.mxu0 %v730
        %966 = vmatpush.bf16.msra.mxu0 %v724
        %967 = vmatpush.bf16.msra.mxu0 %v718
        %968 = vmatmul.bf16.gmra.mxu0 %v316
        %v969 = vpop.f32.mrf.mxu0
        %v970 = vadd.f32 %v418, %v969
        %v971 = vpop.f32.mrf.mxu0
        %972 = vdwg.mxu0
        %973 = vmatpush.bf16.msra.mxu0 %v808
        %974 = vmatpush.bf16.msra.mxu0 %v802
        %975 = vmatpush.bf16.msra.mxu0 %v796
        %976 = vmatpush.bf16.msra.mxu0 %v790
        %977 = vmatpush.bf16.msra.mxu0 %v784
        %978 = vmatpush.bf16.msra.mxu0 %v778
        %979 = vmatpush.bf16.msra.mxu0 %v772
        %980 = vmatpush.bf16.msra.mxu0 %v766
        %981 = vmatmul.bf16.gmra.mxu0 %v317
        %v982 = vpop.f32.mrf.mxu0
        %v983 = vadd.f32 %v970, %v982
        %v984 = vpop.f32.mrf.mxu0
        %985 = vdwg.mxu0
        %986 = vmatpush.bf16.msra.mxu0 %v761
        %987 = vmatpush.bf16.msra.mxu0 %v755
        %988 = vmatpush.bf16.msra.mxu0 %v749
        %989 = vmatpush.bf16.msra.mxu0 %v743
        %990 = vmatpush.bf16.msra.mxu0 %v737
        %991 = vmatpush.bf16.msra.mxu0 %v731
        %992 = vmatpush.bf16.msra.mxu0 %v725
        %993 = vmatpush.bf16.msra.mxu0 %v719
        %994 = vmatmul.bf16.gmra.mxu0 %v316
        %v995 = vpop.f32.mrf.mxu0
        %v996 = vadd.f32 %v419, %v995
        %v997 = vpop.f32.mrf.mxu0
        %998 = vdwg.mxu0
        %999 = vmatpush.bf16.msra.mxu0 %v809
        %1000 = vmatpush.bf16.msra.mxu0 %v803
        %1001 = vmatpush.bf16.msra.mxu0 %v797
        %1002 = vmatpush.bf16.msra.mxu0 %v791
        %1003 = vmatpush.bf16.msra.mxu0 %v785
        %1004 = vmatpush.bf16.msra.mxu0 %v779
        %1005 = vmatpush.bf16.msra.mxu0 %v773
        %1006 = vmatpush.bf16.msra.mxu0 %v767
        %1007 = vmatmul.bf16.gmra.mxu0 %v317
        %v1008 = vpop.f32.mrf.mxu0
        %v1009 = vadd.f32 %v996, %v1008
        %v1010 = vpop.f32.mrf.mxu0
        %1011 = vdwg.mxu0
        %1012 = vmatpush.bf16.msra.mxu0 %v762
        %1013 = vmatpush.bf16.msra.mxu0 %v756
        %1014 = vmatpush.bf16.msra.mxu0 %v750
        %1015 = vmatpush.bf16.msra.mxu0 %v744
        %1016 = vmatpush.bf16.msra.mxu0 %v738
        %1017 = vmatpush.bf16.msra.mxu0 %v732
        %1018 = vmatpush.bf16.msra.mxu0 %v726
        %1019 = vmatpush.bf16.msra.mxu0 %v720
        %1020 = vmatmul.bf16.gmra.mxu0 %v316
        %v1021 = vpop.f32.mrf.mxu0
        %v1022 = vadd.f32 %v420, %v1021
        %v1023 = vpop.f32.mrf.mxu0
        %1024 = vdwg.mxu0
        %1025 = vmatpush.bf16.msra.mxu0 %v810
        %1026 = vmatpush.bf16.msra.mxu0 %v804
        %1027 = vmatpush.bf16.msra.mxu0 %v798
        %1028 = vmatpush.bf16.msra.mxu0 %v792
        %1029 = vmatpush.bf16.msra.mxu0 %v786
        %1030 = vmatpush.bf16.msra.mxu0 %v780
        %1031 = vmatpush.bf16.msra.mxu0 %v774
        %1032 = vmatpush.bf16.msra.mxu0 %v768
        %1033 = vmatmul.bf16.gmra.mxu0 %v317
        %v1034 = vpop.f32.mrf.mxu0
        %v1035 = vadd.f32 %v1022, %v1034
        %v1036 = vpop.f32.mrf.mxu0
        %1037 = vdwg.mxu0
        %1038 = vmatpush.bf16.msra.mxu0 %v763
        %1039 = vmatpush.bf16.msra.mxu0 %v757
        %1040 = vmatpush.bf16.msra.mxu0 %v751
        %1041 = vmatpush.bf16.msra.mxu0 %v745
        %1042 = vmatpush.bf16.msra.mxu0 %v739
        %1043 = vmatpush.bf16.msra.mxu0 %v733
        %1044 = vmatpush.bf16.msra.mxu0 %v727
        %1045 = vmatpush.bf16.msra.mxu0 %v721
        %1046 = vmatmul.bf16.gmra.mxu0 %v316
        %v1047 = vpop.f32.mrf.mxu0
        %v1048 = vadd.f32 %v421, %v1047
        %v1049 = vpop.f32.mrf.mxu0
        %1050 = vdwg.mxu0
        %1051 = vmatpush.bf16.msra.mxu0 %v811
        %1052 = vmatpush.bf16.msra.mxu0 %v805
        %1053 = vmatpush.bf16.msra.mxu0 %v799
        %1054 = vmatpush.bf16.msra.mxu0 %v793
        %1055 = vmatpush.bf16.msra.mxu0 %v787
        %1056 = vmatpush.bf16.msra.mxu0 %v781
        %1057 = vmatpush.bf16.msra.mxu0 %v775
        %1058 = vmatpush.bf16.msra.mxu0 %v769
        %1059 = vmatmul.bf16.gmra.mxu0 %v317
        %v1060 = vpop.f32.mrf.mxu0
        %v1061 = vadd.f32 %v1048, %v1060
        %v1062 = vpop.f32.mrf.mxu0
        %1063 = vdwg.mxu0
        %1064 = vst [vmem:[#allocation2] sm:$0xff] %v931
        %1065 = vst [vmem:[#allocation2 + $0x8] sm:$0xff] %v957
        %1066 = vst [vmem:[#allocation2 + $0x10] sm:$0xff] %v983
        %1067 = vst [vmem:[#allocation2 + $0x18] sm:$0xff] %v1009
        %1068 = vst [vmem:[#allocation2 + $0x20] sm:$0xff] %v1035
        %1069 = vst [vmem:[#allocation2 + $0x28] sm:$0xff] %v1061
        loop: start=0, step=1, limit=2
        $region57: #{deep_flatten_forward.8} parent=47 // loop_pre_header
          _
        $region58: #{deep_flatten_forward.8} parent=47 // loop_header
          %s1071 = sphi 0, %s1075
          %p1072 = scmp.ge.s32.totalorder %s1071, 2
        $region59: #{deep_flatten_forward.8} parent=47 // loop_header_branch
          %1074 = sbr.rel (%p1072) target = $region63
        $region60: #{deep_flatten_forward.8} parent=47 // loop_body
          %s1076 = smul.u32 %s1071, 128
          %s1077 = sadd.s32 %s1076, 256
          %s1078 = sadd.s32 %s1076, 512
          %s1079 = sshra.s32 %s1076, 7
          %s1080 = sand.u32 %s1076, 127
          %s1081 = smul.addr %s1079, 8
          %s1082 = scalar_lea.vmem [#allocation2], %s1081
          %v1083 = vld [vmem:[%s1082] sm:$0xff]
          %v1084 = vmul.f32 %v1083, 0.088388346
          %s1085 = sshra.s32 %s1077, 7
          %s1086 = sand.u32 %s1077, 127
          %s1087 = smul.addr %s1085, 8
          %s1088 = scalar_lea.vmem [#allocation2], %s1087
          %v1089 = vld [vmem:[%s1088] sm:$0xff]
          %s1090 = sshra.s32 %s1078, 7
          %s1091 = sand.u32 %s1078, 127
          %s1092 = smul.addr %s1090, 8
          %s1093 = scalar_lea.vmem [#allocation2], %s1092
          %v1094 = vld [vmem:[%s1093] sm:$0xff]
          %v1095 = vpack.c.bf16 %v1084, %v1084
          %v1096 = vpack.c.bf16 %v1089, %v1089
          %1097 = vmatpush.bf16.xpose.msra.mxu0 0
          %1098 = vmatpush.bf16.xpose.msra.mxu0 0
          %1099 = vmatpush.bf16.xpose.msra.mxu0 0
          %1100 = vmatpush.bf16.xpose.msra.mxu0 0
          %1101 = vmatpush.bf16.xpose.msra.mxu0 0
          %1102 = vmatpush.bf16.xpose.msra.mxu0 0
          %1103 = vmatpush.bf16.xpose.msra.mxu0 0
          %1104 = vmatpush.bf16.xpose.msra.mxu0 %v1096
          %1105 = vmatmul.bf16.gmra.mxu0 %v1095
          %v1106 = vpop.f32.mrf.mxu0
          %v1107 = vadd.f32 0.0, %v1106
          %v1108 = vpop.f32.mrf.mxu0
          %1109 = vdwg.mxu0
          %vm1110 = vcmask 64512
          %v1111 = vsel %vm1110, %v1107, -inf
          %1112 = vmax.xlane.f32.xlu0 %v1111
          %v1113 = vpop.xlane.xlu0 %1112
          %v1114 = vsub.f32 %v1107, %v1113
          %v1115 = vmul.f32 %v1114, 1.442695
          %v1116 = vpow.pop %v1115
          %v1117 = vsel %vm1110, %v1116, 0.0
          %1118 = vadd.xlane.f32.xlu0 %v1117
          %v1119 = vpop.xlane.xlu0 %1118
          %v1120 = vrcp.pop %v1119
          %v1121 = vpack.c.bf16 %v1116, %v1116
          %v1122 = vpack.c.bf16 %v1094, %v1094
          %v1124 = vsel %vm1110, %v1121, 0
          %vm1126 = vcmask 1043456
          %v1128 = vsel %vm1126, %v1122, 0
          %1130 = vmatpush.bf16.msra.mxu0 0
          %1131 = vmatpush.bf16.msra.mxu0 0
          %1132 = vmatpush.bf16.msra.mxu0 0
          %1133 = vmatpush.bf16.msra.mxu0 0
          %1134 = vmatpush.bf16.msra.mxu0 0
          %1135 = vmatpush.bf16.msra.mxu0 0
          %1136 = vmatpush.bf16.msra.mxu0 0
          %1137 = vmatpush.bf16.msra.mxu0 %v1128
          %1138 = vmatmul.bf16.gmra.mxu0 %v1124
          %v1139 = vpop.f32.mrf.mxu0
          %v1140 = vadd.f32 0.0, %v1139
          %v1141 = vpop.f32.mrf.mxu0
          %1142 = vdwg.mxu0
          %v1143 = vmul.f32 %v1140, %v1120
          %s1144 = smul.addr %s1079, 8
          %s1145 = scalar_lea.vmem [#allocation3], %s1144
          %1146 = vst [vmem:[%s1145] sm:$0xff] %v1143
        $region61: #{deep_flatten_forward.8} parent=47 // loop_footer
          %s1075 = sadd.s32 1, %s1071
        $region62: #{deep_flatten_forward.8} parent=47 // loop_footer_branch
          %1070 = sbr.rel target = $region58
        $region63: #{deep_flatten_forward.8} parent=47 // loop_exit
          _
        %v1147 = vld [vmem:[#allocation3] sm:$0xff]
        %v1148 = vld [vmem:[#allocation3 + $0x8] sm:$0xff]
        %v1149 = vpack.c.bf16 %v1147, %v1147
        %v1150 = vpack.c.bf16 %v1148, %v1148
        %v1151 = vld [vmem:[#allocation6] sm:$0xff]
        %v1152 = vld [vmem:[#allocation6 + $0x8] sm:$0xff]
        %v1153 = vld [vmem:[#allocation6 + $0x10] sm:$0xff]
        %v1154 = vld [vmem:[#allocation6 + $0x18] sm:$0xff]
        %v1155 = vld [vmem:[#allocation6 + $0x20] sm:$0xff]
        %v1156 = vld [vmem:[#allocation6 + $0x28] sm:$0xff]
        %v1157 = vld [vmem:[#allocation6 + $0x30] sm:$0xff]
        %v1158 = vld [vmem:[#allocation6 + $0x38] sm:$0xff]
        %v1159 = vld [vmem:[#allocation6 + $0x40] sm:$0xff]
        %v1160 = vld [vmem:[#allocation6 + $0x48] sm:$0xff]
        %v1161 = vld [vmem:[#allocation6 + $0x50] sm:$0xff]
        %v1162 = vld [vmem:[#allocation6 + $0x58] sm:$0xff]
        %v1163 = vld [vmem:[#allocation6 + $0x60] sm:$0xff]
        %v1164 = vld [vmem:[#allocation6 + $0x68] sm:$0xff]
        %v1165 = vld [vmem:[#allocation6 + $0x70] sm:$0xff]
        %v1166 = vld [vmem:[#allocation6 + $0x78] sm:$0xff]
        %v1167 = vld [vmem:[#allocation6 + $0x80] sm:$0xff]
        %v1168 = vld [vmem:[#allocation6 + $0x88] sm:$0xff]
        %v1169 = vld [vmem:[#allocation6 + $0x90] sm:$0xff]
        %v1170 = vld [vmem:[#allocation6 + $0x98] sm:$0xff]
        %v1171 = vld [vmem:[#allocation6 + $0xa0] sm:$0xff]
        %v1172 = vld [vmem:[#allocation6 + $0xa8] sm:$0xff]
        %v1173 = vld [vmem:[#allocation6 + $0xb0] sm:$0xff]
        %v1174 = vld [vmem:[#allocation6 + $0xb8] sm:$0xff]
        %v1175 = vld [vmem:[#allocation6 + $0xc0] sm:$0xff]
        %v1176 = vld [vmem:[#allocation6 + $0xc8] sm:$0xff]
        %v1177 = vld [vmem:[#allocation6 + $0xd0] sm:$0xff]
        %v1178 = vld [vmem:[#allocation6 + $0xd8] sm:$0xff]
        %v1179 = vld [vmem:[#allocation6 + $0xe0] sm:$0xff]
        %v1180 = vld [vmem:[#allocation6 + $0xe8] sm:$0xff]
        %v1181 = vld [vmem:[#allocation6 + $0xf0] sm:$0xff]
        %v1182 = vld [vmem:[#allocation6 + $0xf8] sm:$0xff]
        %v1183 = vld [vmem:[%s4] sm:$0x3]
        %v1185 = vperm.slane %v1183, 0
        %v1186 = vperm.slane %v1183, 1
        %v1221 = vunpack.c.l.b16 %v1151
        %v1222 = vunpack.c.h.b16 %v1151
        %v1223 = vunpack.c.l.b16 %v1152
        %v1224 = vunpack.c.h.b16 %v1152
        %v1225 = vunpack.c.l.b16 %v1153
        %v1226 = vunpack.c.h.b16 %v1153
        %v1227 = vunpack.c.l.b16 %v1154
        %v1228 = vunpack.c.h.b16 %v1154
        %v1229 = vunpack.c.l.b16 %v1155
        %v1230 = vunpack.c.h.b16 %v1155
        %v1231 = vunpack.c.l.b16 %v1156
        %v1232 = vunpack.c.h.b16 %v1156
        %v1233 = vunpack.c.l.b16 %v1157
        %v1234 = vunpack.c.h.b16 %v1157
        %v1235 = vunpack.c.l.b16 %v1158
        %v1236 = vunpack.c.h.b16 %v1158
        %v1237 = vunpack.c.l.b16 %v1159
        %v1238 = vunpack.c.h.b16 %v1159
        %v1239 = vunpack.c.l.b16 %v1160
        %v1240 = vunpack.c.h.b16 %v1160
        %v1241 = vunpack.c.l.b16 %v1161
        %v1242 = vunpack.c.h.b16 %v1161
        %v1243 = vunpack.c.l.b16 %v1162
        %v1244 = vunpack.c.h.b16 %v1162
        %v1245 = vunpack.c.l.b16 %v1163
        %v1246 = vunpack.c.h.b16 %v1163
        %v1247 = vunpack.c.l.b16 %v1164
        %v1248 = vunpack.c.h.b16 %v1164
        %v1249 = vunpack.c.l.b16 %v1165
        %v1250 = vunpack.c.h.b16 %v1165
        %v1251 = vunpack.c.l.b16 %v1166
        %v1252 = vunpack.c.h.b16 %v1166
        %v1253 = vunpack.c.l.b16 %v1167
        %v1254 = vunpack.c.h.b16 %v1167
        %v1255 = vunpack.c.l.b16 %v1168
        %v1256 = vunpack.c.h.b16 %v1168
        %v1257 = vunpack.c.l.b16 %v1169
        %v1258 = vunpack.c.h.b16 %v1169
        %v1259 = vunpack.c.l.b16 %v1170
        %v1260 = vunpack.c.h.b16 %v1170
        %v1261 = vunpack.c.l.b16 %v1171
        %v1262 = vunpack.c.h.b16 %v1171
        %v1263 = vunpack.c.l.b16 %v1172
        %v1264 = vunpack.c.h.b16 %v1172
        %v1265 = vunpack.c.l.b16 %v1173
        %v1266 = vunpack.c.h.b16 %v1173
        %v1267 = vunpack.c.l.b16 %v1174
        %v1268 = vunpack.c.h.b16 %v1174
        %v1269 = vunpack.c.l.b16 %v1175
        %v1270 = vunpack.c.h.b16 %v1175
        %v1271 = vunpack.c.l.b16 %v1176
        %v1272 = vunpack.c.h.b16 %v1176
        %v1273 = vunpack.c.l.b16 %v1177
        %v1274 = vunpack.c.h.b16 %v1177
        %v1275 = vunpack.c.l.b16 %v1178
        %v1276 = vunpack.c.h.b16 %v1178
        %v1277 = vunpack.c.l.b16 %v1179
        %v1278 = vunpack.c.h.b16 %v1179
        %v1279 = vunpack.c.l.b16 %v1180
        %v1280 = vunpack.c.h.b16 %v1180
        %v1281 = vunpack.c.l.b16 %v1181
        %v1282 = vunpack.c.h.b16 %v1181
        %v1283 = vunpack.c.l.b16 %v1182
        %v1284 = vunpack.c.h.b16 %v1182
        %v1285 = vpack.c.b16 %v1223, %v1221
        %v1286 = vpack.c.b16 %v1224, %v1222
        %v1287 = vpack.c.b16 %v1227, %v1225
        %v1288 = vpack.c.b16 %v1228, %v1226
        %v1289 = vpack.c.b16 %v1231, %v1229
        %v1290 = vpack.c.b16 %v1232, %v1230
        %v1291 = vpack.c.b16 %v1235, %v1233
        %v1292 = vpack.c.b16 %v1236, %v1234
        %v1293 = vpack.c.b16 %v1239, %v1237
        %v1294 = vpack.c.b16 %v1240, %v1238
        %v1295 = vpack.c.b16 %v1243, %v1241
        %v1296 = vpack.c.b16 %v1244, %v1242
        %v1297 = vpack.c.b16 %v1247, %v1245
        %v1298 = vpack.c.b16 %v1248, %v1246
        %v1299 = vpack.c.b16 %v1251, %v1249
        %v1300 = vpack.c.b16 %v1252, %v1250
        %v1301 = vpack.c.b16 %v1255, %v1253
        %v1302 = vpack.c.b16 %v1256, %v1254
        %v1303 = vpack.c.b16 %v1259, %v1257
        %v1304 = vpack.c.b16 %v1260, %v1258
        %v1305 = vpack.c.b16 %v1263, %v1261
        %v1306 = vpack.c.b16 %v1264, %v1262
        %v1307 = vpack.c.b16 %v1267, %v1265
        %v1308 = vpack.c.b16 %v1268, %v1266
        %v1309 = vpack.c.b16 %v1271, %v1269
        %v1310 = vpack.c.b16 %v1272, %v1270
        %v1311 = vpack.c.b16 %v1275, %v1273
        %v1312 = vpack.c.b16 %v1276, %v1274
        %v1313 = vpack.c.b16 %v1279, %v1277
        %v1314 = vpack.c.b16 %v1280, %v1278
        %v1315 = vpack.c.b16 %v1283, %v1281
        %v1316 = vpack.c.b16 %v1284, %v1282
        %1349 = vmatpush.bf16.msra.mxu0 %v1299
        %1350 = vmatpush.bf16.msra.mxu0 %v1297
        %1351 = vmatpush.bf16.msra.mxu0 %v1295
        %1352 = vmatpush.bf16.msra.mxu0 %v1293
        %1353 = vmatpush.bf16.msra.mxu0 %v1291
        %1354 = vmatpush.bf16.msra.mxu0 %v1289
        %1355 = vmatpush.bf16.msra.mxu0 %v1287
        %1356 = vmatpush.bf16.msra.mxu0 %v1285
        %1357 = vmatmul.bf16.gmra.mxu0 %v1149
        %v1358 = vpop.f32.mrf.mxu0
        %v1359 = vadd.f32 %v1185, %v1358
        %v1360 = vpop.f32.mrf.mxu0
        %1361 = vdwg.mxu0
        %1362 = vmatpush.bf16.msra.mxu0 %v1315
        %1363 = vmatpush.bf16.msra.mxu0 %v1313
        %1364 = vmatpush.bf16.msra.mxu0 %v1311
        %1365 = vmatpush.bf16.msra.mxu0 %v1309
        %1366 = vmatpush.bf16.msra.mxu0 %v1307
        %1367 = vmatpush.bf16.msra.mxu0 %v1305
        %1368 = vmatpush.bf16.msra.mxu0 %v1303
        %1369 = vmatpush.bf16.msra.mxu0 %v1301
        %1370 = vmatmul.bf16.gmra.mxu0 %v1150
        %v1371 = vpop.f32.mrf.mxu0
        %v1372 = vadd.f32 %v1359, %v1371
        %v1373 = vpop.f32.mrf.mxu0
        %1374 = vdwg.mxu0
        %1375 = vmatpush.bf16.msra.mxu0 %v1300
        %1376 = vmatpush.bf16.msra.mxu0 %v1298
        %1377 = vmatpush.bf16.msra.mxu0 %v1296
        %1378 = vmatpush.bf16.msra.mxu0 %v1294
        %1379 = vmatpush.bf16.msra.mxu0 %v1292
        %1380 = vmatpush.bf16.msra.mxu0 %v1290
        %1381 = vmatpush.bf16.msra.mxu0 %v1288
        %1382 = vmatpush.bf16.msra.mxu0 %v1286
        %1383 = vmatmul.bf16.gmra.mxu0 %v1149
        %v1384 = vpop.f32.mrf.mxu0
        %v1385 = vadd.f32 %v1186, %v1384
        %v1386 = vpop.f32.mrf.mxu0
        %1387 = vdwg.mxu0
        %1388 = vmatpush.bf16.msra.mxu0 %v1316
        %1389 = vmatpush.bf16.msra.mxu0 %v1314
        %1390 = vmatpush.bf16.msra.mxu0 %v1312
        %1391 = vmatpush.bf16.msra.mxu0 %v1310
        %1392 = vmatpush.bf16.msra.mxu0 %v1308
        %1393 = vmatpush.bf16.msra.mxu0 %v1306
        %1394 = vmatpush.bf16.msra.mxu0 %v1304
        %1395 = vmatpush.bf16.msra.mxu0 %v1302
        %1396 = vmatmul.bf16.gmra.mxu0 %v1150
        %v1397 = vpop.f32.mrf.mxu0
        %v1398 = vadd.f32 %v1385, %v1397
        %v1399 = vpop.f32.mrf.mxu0
        %1400 = vdwg.mxu0
        %v1401 = vadd.f32 %v1372, %v314
        %v1402 = vadd.f32 %v1398, %v315
        %v1403 = vld [vmem:[%s5] sm:$0x3]
        %v1404 = vld [vmem:[%s6] sm:$0x3]
        %v1405 = vadd.f32 %v1401, %v1402
        %1406 = vadd.xlane.f32.xlu0 %v1405
        %v1407 = vpop.xlane.xlu0 %1406
        %v1408 = vrcp.pop 256.0
        %v1409 = vmul.f32 256.0, %v1408
        %v1410 = vsub.f32 1.0, %v1409
        %v1411 = vmul.f32 %v1408, %v1410
        %v1412 = vadd.f32 %v1408, %v1411
        %vm1413 = vweird.f32 %v1408
        %v1414 = vsel %vm1413, %v1408, %v1412
        %v1415 = vmul.f32 %v1407, %v1414
        %v1416 = vsub.f32 %v1401, %v1415
        %v1417 = vsub.f32 %v1402, %v1415
        %v1418 = vmul.f32 %v1416, %v1416
        %v1419 = vmul.f32 %v1417, %v1417
        %v1420 = vadd.f32 %v1418, %v1419
        %1421 = vadd.xlane.f32.xlu0 %v1420
        %v1422 = vpop.xlane.xlu0 %1421
        %v1423 = vmul.f32 %v1422, %v1414
        %v1424 = vadd.f32 %v1423, 1e-12
        %v1425 = vrsqrt.pop %v1424
        %v1426 = vmul.f32 %v1425, %v1424
        %v1427 = vmul.f32 %v1426, %v1425
        %v1428 = vmul.f32 0.5, %v1427
        %v1429 = vsub.f32 1.5, %v1428
        %v1430 = vmul.f32 %v1425, %v1429
        %vm1431 = vweird.f32 %v1424
        %vm1432 = vweird.f32 %v1425
        %vm1433 = vmor %vm1431, %vm1432
        %v1434 = vsel %vm1433, %v1425, %v1430
        %v1435 = vmul.f32 %v1416, %v1434
        %v1436 = vmul.f32 %v1417, %v1434
        %v1438 = vperm.slane %v1403, 0
        %v1439 = vperm.slane %v1403, 1
        %v1442 = vmul.f32 %v1435, %v1438
        %v1443 = vmul.f32 %v1436, %v1439
        %v1445 = vperm.slane %v1404, 0
        %v1446 = vperm.slane %v1404, 1
        %v1449 = vadd.f32 %v1442, %v1445
        %v1450 = vadd.f32 %v1443, %v1446
        %1451 = vst [vmem:[%s312] sm:$0xff] %v1449
        %1452 = vst [vmem:[%s312 + $0x8] sm:$0xff] %v1450
        %p1453 = scmp.lt.s32.totalorder %s20, 1
        %s1454 = scalar_select %p1453, %s20, 1
        %s1455 = smul.addr %s1454, 2
        %s1456 = smul.addr %s1455, 8
        %s1457 = scalar_lea.vmem %s7, %s1456
        // Predicated region
        $region64: #{deep_flatten_forward.8} parent=47 // pred_check
          %p1458 = pneg %p190
        $region65: #{deep_flatten_forward.8} parent=47 // pred_check_branch
          %1460 = sbr.rel (%p1458) target = $region67
        $region66: #{deep_flatten_forward.8} parent=47 // pred_region
          _
        $region67: #{deep_flatten_forward.8} parent=47 // pred_fallthru
          _
      $region48: #{deep_flatten_forward.8} parent=5 // pred_fallthru
        _
      %p1461 = scmp.le.s32.totalorder 2, %s15
      // Predicated region
      $region68: #{deep_flatten_forward.8} parent=5 // pred_check
        %p1462 = pneg %p1461
      $region69: #{deep_flatten_forward.8} parent=5 // pred_check_branch
        %1464 = sbr.rel (%p1462) target = $region71
      $region70: #{deep_flatten_forward.8} parent=5 // pred_region
        %s1465 = ssub.s32 %s15, 2
        // Predicated region
        $region72: #{deep_flatten_forward.8} parent=70 // pred_check
          %p1466 = pneg %p196
        $region73: #{deep_flatten_forward.8} parent=70 // pred_check_branch
          %1468 = sbr.rel (%p1466) target = $region75
        $region74: #{deep_flatten_forward.8} parent=70 // pred_region
          %p1469 = scmp.lt.s32.totalorder %s21, 1
          %s1470 = scalar_select %p1469, %s21, 1
          %s1471 = smul.addr %s1470, 2
          %s1472 = smul.addr %s1471, 8
          %s1473 = scalar_lea.vmem %s7, %s1472
        $region75: #{deep_flatten_forward.8} parent=70 // pred_fallthru
          _
      $region71: #{deep_flatten_forward.8} parent=5 // pred_fallthru
        _
    $region6: #{deep_flatten_forward.8} parent=1 // loop_footer
      %s19 = sadd.s32 1, %s15
    $region7: #{deep_flatten_forward.8} parent=1 // loop_footer_branch
      %14 = sbr.rel target = $region3
    $region8: #{deep_flatten_forward.8} parent=1 // loop_exit
      _
    %1474 = vsyncpa [#allocation5], 1
    %s1475 = scalar_lea.sflag [#allocation5], 1
    %1476 = vsyncpa %s1475, 1
    %1477 = vsyncpa [#allocation7], 1

</llo_original>
